<compile_context>
chip_gen: v5e
topology: v5e:2x2
jax: 0.10.0
libtpu: 0.0.40
codegen_flags: <defaults>
</compile_context>

<pallas_src>
import functools

import jax
import jax.numpy as jnp
from jax.experimental import pallas as pl
from jax.experimental.pallas import tpu as pltpu


def _elu(v):
    # ELU(x) = x for x>0 else exp(x)-1.  jnp.exp is the guaranteed EUP lowering
    # (expm1 lowering support is not guaranteed); the clamp keeps the dead
    # where() branch finite.  Precision difference is far below test tolerance.
    return jnp.where(v > 0, v, jnp.exp(jnp.minimum(v, 0.0)) - 1.0)


def _temporal_kernel(x_ref, w_ref, a_ref, c_ref, o_ref):
    """Conv2d(1,40,(1,25)) + AvgPool2d((1,51),(1,5)) + BN1(eval) + ELU.

    x_ref: (Bb, 63, T)      bf16  batch block of EEG input
    w_ref: (T, 40*Wp)       bf16  fused Toeplitz(conv1) @ avg-pool matrix
    a_ref: (1, 40*Wp)       f32   folded BN1 scale (per channel, repeated Wp)
    c_ref: (1, 40*Wp)       f32   folded BN1 shift (conv1 bias folded in)
    o_ref: (Bb, 63, 40*Wp)  bf16
    """
    Bb, H, T = x_ref.shape
    x2 = x_ref[...].reshape(Bb * H, T)                     # fold batch into M (252 rows @ Bb=4)
    y = jnp.dot(x2, w_ref[...], preferred_element_type=jnp.float32)   # (Bb*63, 40*Wp)
    y = a_ref[...] * y + c_ref[...]                        # BN1 eval (scale/shift)
    y = _elu(y)
    o_ref[...] = y.reshape(Bb, H, y.shape[-1]).astype(o_ref.dtype)


def _spatial_proj_kernel(z_ref, w2_ref, a2_ref, c2_ref, wp_ref, bp_ref, o_ref):
    """Conv2d(40,40,(63,1)) + BN2(eval) + ELU + Conv2d(40,E,(1,1)) + Rearrange.

    z_ref : (Bb, Wp, 63*40) bf16  activations laid out as (batch, token, h*40+c)
    w2_ref: (63*40, 40)     bf16  spatial conv weights, row index = h*40+c
    a2/c2 : (1, 40)         f32   folded BN2 scale/shift (conv2 bias folded in)
    wp_ref: (40, E)         bf16  1x1 projection weights (transposed)
    bp_ref: (1, E)          f32   projection bias
    o_ref : (Bb, Wp, E)     f32   output tokens (token-major, no transpose)
    """
    Bb, Wp, K = z_ref.shape
    zf = z_ref[...].reshape(Bb * Wp, K)                    # fold batch+tokens into M
    h = jnp.dot(zf, w2_ref[...], preferred_element_type=jnp.float32)  # (Bb*Wp, 40)
    h = a2_ref[...] * h + c2_ref[...]                      # BN2 eval
    h = _elu(h)
    # Dropout(0.5) is identity in eval mode.
    out = jnp.dot(h.astype(wp_ref.dtype), wp_ref[...],
                  preferred_element_type=jnp.float32) + bp_ref[...]   # (Bb*Wp, E)
    o_ref[...] = out.reshape(Bb, Wp, out.shape[-1]).astype(o_ref.dtype)


def _vmem_limit(byte_need):
    # >= the 16/32 MiB scoped defaults everywhere, <= v7x's 64 MiB physical.
    return int(min(64 * 1024 * 1024, max(32 * 1024 * 1024, 2 * int(byte_need))))


def patch_embedding_forward(x, params, emb_size=40):
    """x: (B, 63, T) float32  ->  (B, Wp, emb_size) float32 (eval-mode semantics)."""
    B, H, T = x.shape
    assert H == 63, "the (63,1) spatial conv assumes 63 EEG electrodes"
    C, K1, PK, PS, eps = 40, 25, 51, 5, 1e-5
    E = emb_size
    Wo = T - K1 + 1
    Wp = (Wo - PK) // PS + 1
    assert Wp >= 1

    w1, b1 = params["w1"], params["b1"]            # (40,25), (40,)
    g1, be1, m1, v1 = params["g1"], params["be1"], params["m1"], params["v1"]
    w2, b2 = params["w2"], params["b2"]            # (40,40,63), (40,)
    g2, be2, m2, v2 = params["g2"], params["be2"], params["m2"], params["v2"]
    wp, bp = params["wp"], params["bp"]            # (E,40), (E,)

    # ---------------- host-side parameter glue (no data compute) ----------------
    # Toeplitz form of the temporal conv, fused with the avg-pool matrix.
    t_idx = jnp.arange(T)[:, None]
    q_idx = jnp.arange(Wo)[None, :]
    k_idx = t_idx - q_idx
    valid = (k_idx >= 0) & (k_idx < K1)
    toep = jnp.where(valid[None, :, :], w1[:, jnp.clip(k_idx, 0, K1 - 1)], 0.0)  # (C, T, Wo)
    qq = jnp.arange(Wo)[:, None]
    pp = jnp.arange(Wp)[None, :]
    pool = (((qq >= PS * pp) & (qq < PS * pp + PK)).astype(jnp.float32)) / PK    # (Wo, Wp)
    w1pool = jnp.einsum("ctq,qw->tcw", toep.astype(jnp.float32), pool)           # (T, C, Wp)
    w1pool = w1pool.reshape(T, C * Wp).astype(jnp.bfloat16)                      # col = c*Wp + w

    # eval-mode BatchNorm folded to scale/shift (conv biases folded in).
    a1 = g1 / jnp.sqrt(v1 + eps)
    c1 = be1 + a1 * (b1 - m1)
    a2 = g2 / jnp.sqrt(v2 + eps)
    c2 = be2 + a2 * (b2 - m2)
    a1row = jnp.repeat(a1, Wp)[None, :].astype(jnp.float32)      # (1, C*Wp)
    c1row = jnp.repeat(c1, Wp)[None, :].astype(jnp.float32)
    a2row = a2[None, :].astype(jnp.float32)                      # (1, C)
    c2row = c2[None, :].astype(jnp.float32)

    w2t = jnp.transpose(w2, (2, 1, 0)).reshape(H * C, C).astype(jnp.bfloat16)    # row = h*C + c
    wpt = jnp.transpose(wp).astype(jnp.bfloat16)                                 # (C, E)
    bprow = bp[None, :].astype(jnp.float32)                                      # (1, E)
    # ----------------------------------------------------------------------------

    # Batch block per grid step: fills MXU rows and amortizes per-step overhead.
    Bb = next(d for d in (8, 4, 2, 1) if B % d == 0)
    grid = (B // Bb,)
    N1 = C * Wp
    K2 = H * C

    # ---- stage 1: temporal conv + pool + BN1 + ELU ------------------------------
    bytes1 = (2 * Bb * H * T * 2 + 2 * T * N1 * 2 + 2 * Bb * H * N1 * 2 + 4 * N1 * 4)
    ce1 = pl.CostEstimate(flops=int(2 * B * H * T * N1),
                          transcendentals=int(B * H * N1),
                          bytes_accessed=int(B * H * T * 2 + T * N1 * 2 + B * H * N1 * 2))
    y1 = pl.pallas_call(
        _temporal_kernel,
        out_shape=jax.ShapeDtypeStruct((B, H, N1), jnp.bfloat16),
        grid=grid,
        in_specs=[
            pl.BlockSpec((Bb, H, T), lambda i: (i, 0, 0)),     # x block
            pl.BlockSpec((T, N1), lambda i: (0, 0)),           # fused conv+pool weight
            pl.BlockSpec((1, N1), lambda i: (0, 0)),           # BN1 scale row
            pl.BlockSpec((1, N1), lambda i: (0, 0)),           # BN1 shift row
        ],
        out_specs=pl.BlockSpec((Bb, H, N1), lambda i: (i, 0, 0)),
        compiler_params=pltpu.CompilerParams(dimension_semantics=("parallel",),
                                             vmem_limit_bytes=_vmem_limit(bytes1)),
        cost_estimate=ce1,
    )(x.astype(jnp.bfloat16), w1pool, a1row, c1row)

    # Layout plumbing between the two stages (XLA, outside the kernels):
    # (b, h, c*Wp+w) -> (b, w, h*C+c) so conv2's (h,c) contraction is one matmul axis.
    z = y1.reshape(B, H, C, Wp).transpose(0, 3, 1, 2).reshape(B, Wp, K2)

    # ---- stage 2: spatial conv + BN2 + ELU + 1x1 projection (token-major) -------
    bytes2 = (2 * Bb * Wp * K2 * 2 + 2 * K2 * C * 2 + 2 * C * E * 2 + 2 * Bb * Wp * E * 4)
    ce2 = pl.CostEstimate(flops=int(2 * B * Wp * (K2 * C + C * E)),
                          transcendentals=int(B * Wp * C),
                          bytes_accessed=int(B * Wp * K2 * 2 + K2 * C * 2 + C * E * 2
                                             + B * Wp * E * 4))
    out = pl.pallas_call(
        _spatial_proj_kernel,
        out_shape=jax.ShapeDtypeStruct((B, Wp, E), jnp.float32),
        grid=grid,
        in_specs=[
            pl.BlockSpec((Bb, Wp, K2), lambda i: (i, 0, 0)),   # re-laid-out activations
            pl.BlockSpec((K2, C), lambda i: (0, 0)),           # conv2 weight (h*C+c, f)
            pl.BlockSpec((1, C), lambda i: (0, 0)),            # BN2 scale
            pl.BlockSpec((1, C), lambda i: (0, 0)),            # BN2 shift
            pl.BlockSpec((C, E), lambda i: (0, 0)),            # projection weight^T
            pl.BlockSpec((1, E), lambda i: (0, 0)),            # projection bias
        ],
        out_specs=pl.BlockSpec((Bb, Wp, E), lambda i: (i, 0, 0)),
        compiler_params=pltpu.CompilerParams(dimension_semantics=("parallel",),
                                             vmem_limit_bytes=_vmem_limit(bytes2)),
        cost_estimate=ce2,
    )(z, w2t, a2row, c2row, wpt, bprow)
    return out


def reference_forward(x, params, emb_size=40):
    """Pure-JAX (XLA conv) reference of the PyTorch module in eval mode."""
    eps = 1e-5
    p = params
    dn = ("NCHW", "OIHW", "NCHW")
    xb = x[:, None, :, :].astype(jnp.float32)                                   # (B,1,63,T)
    y = jax.lax.conv_general_dilated(xb, p["w1"].reshape(40, 1, 1, 25), (1, 1),
                                     "VALID", dimension_numbers=dn)
    y = y + p["b1"][None, :, None, None]
    y = jax.lax.reduce_window(y, 0.0, jax.lax.add, (1, 1, 1, 51), (1, 1, 1, 5), "VALID") / 51.0
    y = (y - p["m1"][None, :, None, None]) / jnp.sqrt(p["v1"] + eps)[None, :, None, None] \
        * p["g1"][None, :, None, None] + p["be1"][None, :, None, None]
    y = jnp.where(y > 0, y, jnp.expm1(y))
    y = jax.lax.conv_general_dilated(y, p["w2"][..., None], (1, 1), "VALID",
                                     dimension_numbers=dn) + p["b2"][None, :, None, None]
    y = (y - p["m2"][None, :, None, None]) / jnp.sqrt(p["v2"] + eps)[None, :, None, None] \
        * p["g2"][None, :, None, None] + p["be2"][None, :, None, None]
    y = jnp.where(y > 0, y, jnp.expm1(y))
    y = jax.lax.conv_general_dilated(y, p["wp"][:, :, None, None], (1, 1), "VALID",
                                     dimension_numbers=dn) + p["bp"][None, :, None, None]
    return jnp.transpose(y[:, :, 0, :], (0, 2, 1))                              # (B, Wp, E)


def init_params(key, emb_size=40):
    C, K1, H, E = 40, 25, 63, emb_size
    ks = jax.random.split(key, 16)
    return {
        "w1": 0.2 * jax.random.normal(ks[0], (C, K1), jnp.float32),
        "b1": 0.1 * jax.random.normal(ks[1], (C,), jnp.float32),
        "g1": 1.0 + 0.1 * jax.random.normal(ks[2], (C,), jnp.float32),
        "be1": 0.1 * jax.random.normal(ks[3], (C,), jnp.float32),
        "m1": 0.1 * jax.random.normal(ks[4], (C,), jnp.float32),
        "v1": 0.5 + jax.random.uniform(ks[5], (C,), jnp.float32),
        "w2": 0.05 * jax.random.normal(ks[6], (C, C, H), jnp.float32),
        "b2": 0.1 * jax.random.normal(ks[7], (C,), jnp.float32),
        "g2": 1.0 + 0.1 * jax.random.normal(ks[8], (C,), jnp.float32),
        "be2": 0.1 * jax.random.normal(ks[9], (C,), jnp.float32),
        "m2": 0.1 * jax.random.normal(ks[10], (C,), jnp.float32),
        "v2": 0.5 + jax.random.uniform(ks[11], (C,), jnp.float32),
        "wp": 0.2 * jax.random.normal(ks[12], (E, C), jnp.float32),
        "bp": 0.1 * jax.random.normal(ks[13], (E,), jnp.float32),
    }


if __name__ == "__main__":
    B, H, T, E = 4, 63, 100, 40          # 63 EEG electrodes is fixed by the (63,1) conv
    key = jax.random.PRNGKey(0)
    kx, kp = jax.random.split(key)
    x = jax.random.normal(kx, (B, H, T), jnp.float32)
    params = init_params(kp, emb_size=E)

    fwd = jax.jit(functools.partial(patch_embedding_forward, emb_size=E))
    out = jax.block_until_ready(fwd(x, params))

    Wp = ((T - 24) - 51) // 5 + 1
    assert out.shape == (B, Wp, E), out.shape

    ref = reference_forward(x, params, emb_size=E)
    max_err = float(jnp.max(jnp.abs(out - ref)))
    # bf16 matmul operands with f32 accumulation -> relax tolerance slightly vs pure f32.
    assert jnp.allclose(out, ref, atol=2e-2, rtol=2e-2), max_err

    print("KERNEL_OK")
</pallas_src>

<mosaic_0001>
module attributes {stable_mosaic.version = 11 : i64} {
  func.func @_temporal_kernel(%arg0: i32, %arg1: memref<4x63x100xbf16, #tpu.memory_space<vmem>>, %arg2: memref<100x240xbf16, #tpu.memory_space<vmem>>, %arg3: memref<1x240xf32, #tpu.memory_space<vmem>>, %arg4: memref<1x240xf32, #tpu.memory_space<vmem>>, %arg5: memref<4x63x240xbf16, #tpu.memory_space<vmem>>) attributes {dimension_semantics = [#tpu.dimension_semantics<parallel>], iteration_bounds = array<i64: 1>, scalar_prefetch = 0 : i64, scratch_operands = 0 : i64, tpu.core_type = #tpu.core_type<tc>, window_params = [{transform_indices = @transform_0, window_bounds = array<i64: 4, 63, 100>}, {pipeline_mode = #tpu.pipeline_mode<synchronous>, transform_indices = @transform_1, window_bounds = array<i64: 100, 240>}, {pipeline_mode = #tpu.pipeline_mode<synchronous>, transform_indices = @transform_2, window_bounds = array<i64: 1, 240>}, {pipeline_mode = #tpu.pipeline_mode<synchronous>, transform_indices = @transform_3, window_bounds = array<i64: 1, 240>}, {transform_indices = @transform_4, window_bounds = array<i64: 4, 63, 240>}]} {
    %c0 = arith.constant 0 : index
    %c0_0 = arith.constant 0 : index
    %c0_1 = arith.constant 0 : index
    %0 = vector.load %arg1[%c0, %c0_0, %c0_1] : memref<4x63x100xbf16, #tpu.memory_space<vmem>>, vector<4x63x100xbf16>
    %1 = vector.shape_cast %0 : vector<4x63x100xbf16> to vector<252x100xbf16>
    %c0_2 = arith.constant 0 : index
    %c0_3 = arith.constant 0 : index
    %2 = vector.load %arg2[%c0_2, %c0_3] : memref<100x240xbf16, #tpu.memory_space<vmem>>, vector<100x240xbf16>
    %cst = arith.constant dense<0.000000e+00> : vector<252x240xf32>
    %3 = tpu.matmul %1, %2, %cst {dimension_numbers = #tpu.dot_dimension_numbers<[1], [0], [0], [1], [0, 0, 1, 1], [], []>} : vector<252x100xbf16>, vector<100x240xbf16>, vector<252x240xf32> -> vector<252x240xf32>
    %c0_4 = arith.constant 0 : index
    %c0_5 = arith.constant 0 : index
    %4 = vector.load %arg3[%c0_4, %c0_5] : memref<1x240xf32, #tpu.memory_space<vmem>>, vector<1x240xf32>
    %5 = vector.broadcast %4 : vector<1x240xf32> to vector<252x240xf32>
    %6 = arith.mulf %5, %3 : vector<252x240xf32>
    %c0_6 = arith.constant 0 : index
    %c0_7 = arith.constant 0 : index
    %7 = vector.load %arg4[%c0_6, %c0_7] : memref<1x240xf32, #tpu.memory_space<vmem>>, vector<1x240xf32>
    %8 = vector.broadcast %7 : vector<1x240xf32> to vector<252x240xf32>
    %9 = arith.addf %6, %8 : vector<252x240xf32>
    %cst_8 = arith.constant 0.000000e+00 : f32
    %10 = vector.broadcast %cst_8 : f32 to vector<252x240xf32>
    %11 = arith.cmpf ogt, %9, %10 : vector<252x240xf32>
    %cst_9 = arith.constant 0.000000e+00 : f32
    %12 = vector.broadcast %cst_9 : f32 to vector<252x240xf32>
    %13 = arith.minimumf %9, %12 : vector<252x240xf32>
    %14 = math.exp %13 : vector<252x240xf32>
    %cst_10 = arith.constant 1.000000e+00 : f32
    %15 = vector.broadcast %cst_10 : f32 to vector<252x240xf32>
    %16 = arith.subf %14, %15 : vector<252x240xf32>
    %17 = arith.select %11, %9, %16 : vector<252x240xi1>, vector<252x240xf32>
    %18 = vector.shape_cast %17 : vector<252x240xf32> to vector<4x63x240xf32>
    %19 = arith.truncf %18 : vector<4x63x240xf32> to vector<4x63x240xbf16>
    %c0_11 = arith.constant 0 : index
    %c0_12 = arith.constant 0 : index
    %c0_13 = arith.constant 0 : index
    %20 = vector.load %arg5[%c0_11, %c0_12, %c0_13] : memref<4x63x240xbf16, #tpu.memory_space<vmem>>, vector<4x63x240xbf16>
    tpu.vector_store %arg5[%c0_11, %c0_12, %c0_13], %19 {strides = array<i32>} : memref<4x63x240xbf16, #tpu.memory_space<vmem>>, vector<4x63x240xbf16>,
    return
  }
  func.func @transform_0(%arg0: i32) -> (i32, i32, i32) {
    %c0_i32 = arith.constant 0 : i32
    %c0_i32_0 = arith.constant 0 : i32
    %c0_i32_1 = arith.constant 0 : i32
    return %arg0, %c0_i32, %c0_i32_0 : i32, i32, i32
  }
  func.func @transform_1(%arg0: i32) -> (i32, i32) {
    %c0_i32 = arith.constant 0 : i32
    %c0_i32_0 = arith.constant 0 : i32
    %c0_i32_1 = arith.constant 0 : i32
    return %c0_i32, %c0_i32_0 : i32, i32
  }
  func.func @transform_2(%arg0: i32) -> (i32, i32) {
    %c0_i32 = arith.constant 0 : i32
    %c0_i32_0 = arith.constant 0 : i32
    %c0_i32_1 = arith.constant 0 : i32
    return %c0_i32, %c0_i32_0 : i32, i32
  }
  func.func @transform_3(%arg0: i32) -> (i32, i32) {
    %c0_i32 = arith.constant 0 : i32
    %c0_i32_0 = arith.constant 0 : i32
    %c0_i32_1 = arith.constant 0 : i32
    return %c0_i32, %c0_i32_0 : i32, i32
  }
  func.func @transform_4(%arg0: i32) -> (i32, i32, i32) {
    %c0_i32 = arith.constant 0 : i32
    %c0_i32_0 = arith.constant 0 : i32
    %c0_i32_1 = arith.constant 0 : i32
    return %arg0, %c0_i32, %c0_i32_0 : i32, i32, i32
  }
}

module attributes {stable_mosaic.version = 11 : i64} {
  func.func @_spatial_proj_kernel(%arg0: i32, %arg1: memref<4x6x2520xbf16, #tpu.memory_space<vmem>>, %arg2: memref<2520x40xbf16, #tpu.memory_space<vmem>>, %arg3: memref<1x40xf32, #tpu.memory_space<vmem>>, %arg4: memref<1x40xf32, #tpu.memory_space<vmem>>, %arg5: memref<40x40xbf16, #tpu.memory_space<vmem>>, %arg6: memref<1x40xf32, #tpu.memory_space<vmem>>, %arg7: memref<4x6x40xf32, #tpu.memory_space<vmem>>) attributes {dimension_semantics = [#tpu.dimension_semantics<parallel>], iteration_bounds = array<i64: 1>, scalar_prefetch = 0 : i64, scratch_operands = 0 : i64, tpu.core_type = #tpu.core_type<tc>, window_params = [{transform_indices = @transform_0, window_bounds = array<i64: 4, 6, 2520>}, {pipeline_mode = #tpu.pipeline_mode<synchronous>, transform_indices = @transform_1, window_bounds = array<i64: 2520, 40>}, {pipeline_mode = #tpu.pipeline_mode<synchronous>, transform_indices = @transform_2, window_bounds = array<i64: 1, 40>}, {pipeline_mode = #tpu.pipeline_mode<synchronous>, transform_indices = @transform_3, window_bounds = array<i64: 1, 40>}, {pipeline_mode = #tpu.pipeline_mode<synchronous>, transform_indices = @transform_4, window_bounds = array<i64: 40, 40>}, {pipeline_mode = #tpu.pipeline_mode<synchronous>, transform_indices = @transform_5, window_bounds = array<i64: 1, 40>}, {transform_indices = @transform_6, window_bounds = array<i64: 4, 6, 40>}]} {
    %c0 = arith.constant 0 : index
    %c0_0 = arith.constant 0 : index
    %c0_1 = arith.constant 0 : index
    %0 = vector.load %arg1[%c0, %c0_0, %c0_1] : memref<4x6x2520xbf16, #tpu.memory_space<vmem>>, vector<4x6x2520xbf16>
    %1 = vector.shape_cast %0 : vector<4x6x2520xbf16> to vector<24x2520xbf16>
    %c0_2 = arith.constant 0 : index
    %c0_3 = arith.constant 0 : index
    %2 = vector.load %arg2[%c0_2, %c0_3] : memref<2520x40xbf16, #tpu.memory_space<vmem>>, vector<2520x40xbf16>
    %cst = arith.constant dense<0.000000e+00> : vector<24x40xf32>
    %3 = tpu.matmul %1, %2, %cst {dimension_numbers = #tpu.dot_dimension_numbers<[1], [0], [0], [1], [0, 0, 1, 1], [], []>} : vector<24x2520xbf16>, vector<2520x40xbf16>, vector<24x40xf32> -> vector<24x40xf32>
    %c0_4 = arith.constant 0 : index
    %c0_5 = arith.constant 0 : index
    %4 = vector.load %arg3[%c0_4, %c0_5] : memref<1x40xf32, #tpu.memory_space<vmem>>, vector<1x40xf32>
    %5 = vector.broadcast %4 : vector<1x40xf32> to vector<24x40xf32>
    %6 = arith.mulf %5, %3 : vector<24x40xf32>
    %c0_6 = arith.constant 0 : index
    %c0_7 = arith.constant 0 : index
    %7 = vector.load %arg4[%c0_6, %c0_7] : memref<1x40xf32, #tpu.memory_space<vmem>>, vector<1x40xf32>
    %8 = vector.broadcast %7 : vector<1x40xf32> to vector<24x40xf32>
    %9 = arith.addf %6, %8 : vector<24x40xf32>
    %cst_8 = arith.constant 0.000000e+00 : f32
    %10 = vector.broadcast %cst_8 : f32 to vector<24x40xf32>
    %11 = arith.cmpf ogt, %9, %10 : vector<24x40xf32>
    %cst_9 = arith.constant 0.000000e+00 : f32
    %12 = vector.broadcast %cst_9 : f32 to vector<24x40xf32>
    %13 = arith.minimumf %9, %12 : vector<24x40xf32>
    %14 = math.exp %13 : vector<24x40xf32>
    %cst_10 = arith.constant 1.000000e+00 : f32
    %15 = vector.broadcast %cst_10 : f32 to vector<24x40xf32>
    %16 = arith.subf %14, %15 : vector<24x40xf32>
    %17 = arith.select %11, %9, %16 : vector<24x40xi1>, vector<24x40xf32>
    %18 = arith.truncf %17 : vector<24x40xf32> to vector<24x40xbf16>
    %c0_11 = arith.constant 0 : index
    %c0_12 = arith.constant 0 : index
    %19 = vector.load %arg5[%c0_11, %c0_12] : memref<40x40xbf16, #tpu.memory_space<vmem>>, vector<40x40xbf16>
    %cst_13 = arith.constant dense<0.000000e+00> : vector<24x40xf32>
    %20 = tpu.matmul %18, %19, %cst_13 {dimension_numbers = #tpu.dot_dimension_numbers<[1], [0], [0], [1], [0, 0, 1, 1], [], []>} : vector<24x40xbf16>, vector<40x40xbf16>, vector<24x40xf32> -> vector<24x40xf32>
    %c0_14 = arith.constant 0 : index
    %c0_15 = arith.constant 0 : index
    %21 = vector.load %arg6[%c0_14, %c0_15] : memref<1x40xf32, #tpu.memory_space<vmem>>, vector<1x40xf32>
    %22 = vector.broadcast %21 : vector<1x40xf32> to vector<24x40xf32>
    %23 = arith.addf %20, %22 : vector<24x40xf32>
    %24 = vector.shape_cast %23 : vector<24x40xf32> to vector<4x6x40xf32>
    %c0_16 = arith.constant 0 : index
    %c0_17 = arith.constant 0 : index
    %c0_18 = arith.constant 0 : index
    %25 = vector.load %arg7[%c0_16, %c0_17, %c0_18] : memref<4x6x40xf32, #tpu.memory_space<vmem>>, vector<4x6x40xf32>
    tpu.vector_store %arg7[%c0_16, %c0_17, %c0_18], %24 {strides = array<i32>} : memref<4x6x40xf32, #tpu.memory_space<vmem>>, vector<4x6x40xf32>,
    return
  }
  func.func @transform_0(%arg0: i32) -> (i32, i32, i32) {
    %c0_i32 = arith.constant 0 : i32
    %c0_i32_0 = arith.constant 0 : i32
    %c0_i32_1 = arith.constant 0 : i32
    return %arg0, %c0_i32, %c0_i32_0 : i32, i32, i32
  }
  func.func @transform_1(%arg0: i32) -> (i32, i32) {
    %c0_i32 = arith.constant 0 : i32
    %c0_i32_0 = arith.constant 0 : i32
    %c0_i32_1 = arith.constant 0 : i32
    return %c0_i32, %c0_i32_0 : i32, i32
  }
  func.func @transform_2(%arg0: i32) -> (i32, i32) {
    %c0_i32 = arith.constant 0 : i32
    %c0_i32_0 = arith.constant 0 : i32
    %c0_i32_1 = arith.constant 0 : i32
    return %c0_i32, %c0_i32_0 : i32, i32
  }
  func.func @transform_3(%arg0: i32) -> (i32, i32) {
    %c0_i32 = arith.constant 0 : i32
    %c0_i32_0 = arith.constant 0 : i32
    %c0_i32_1 = arith.constant 0 : i32
    return %c0_i32, %c0_i32_0 : i32, i32
  }
  func.func @transform_4(%arg0: i32) -> (i32, i32) {
    %c0_i32 = arith.constant 0 : i32
    %c0_i32_0 = arith.constant 0 : i32
    %c0_i32_1 = arith.constant 0 : i32
    return %c0_i32, %c0_i32_0 : i32, i32
  }
  func.func @transform_5(%arg0: i32) -> (i32, i32) {
    %c0_i32 = arith.constant 0 : i32
    %c0_i32_0 = arith.constant 0 : i32
    %c0_i32_1 = arith.constant 0 : i32
    return %c0_i32, %c0_i32_0 : i32, i32
  }
  func.func @transform_6(%arg0: i32) -> (i32, i32, i32) {
    %c0_i32 = arith.constant 0 : i32
    %c0_i32_0 = arith.constant 0 : i32
    %c0_i32_1 = arith.constant 0 : i32
    return %arg0, %c0_i32, %c0_i32_0 : i32, i32, i32
  }
}

</mosaic_0001>

<llo_original>
// kernel: patch_embedding_forward.2
$region0: #{patch_embedding_forward.2}
  #allocation0 [shape = 'u32[]', space=smem, size = 0x4, offset = 0x4, fixed_abs, tag = 'smem constant byte address 0x4 - core index']
  #allocation1 [shape = 'u32[72,128]{1,0:T(1,128)}', space=vmem, size = 0x9000, scoped, tag = 'internal scratch']
  %s0 = inlined_call_operand.vmem [shape: bf16[4,63,100], index: 0, kind: input, shape index: {}]
  %s1 = inlined_call_operand.vmem [shape: bf16[100,240], index: 1, kind: input, shape index: {}]
  %s2 = inlined_call_operand.vmem [shape: f32[1,240], index: 2, kind: input, shape index: {}]
  %s3 = inlined_call_operand.vmem [shape: f32[1,240], index: 3, kind: input, shape index: {}]
  %s4 = inlined_call_operand.vmem [shape: bf16[4,63,240], index: 4, kind: output, shape index: {}]
  %s5 = sld [smem:[#allocation0]]
  $region26: #{patch_embedding_forward.2} parent=0
    _
  %s7 = ssub.s32 1, %s5
  %s8 = scalar_select 0, %s7, %s5
  // Predicated region
  $region2: #{patch_embedding_forward.2} parent=0 // pred_check
    _
  $region3: #{patch_embedding_forward.2} parent=0 // pred_check_branch
    %10 = sbr.rel (0) target = $region5
  $region4: #{patch_embedding_forward.2} parent=0 // pred_region
    _
  $region5: #{patch_embedding_forward.2} parent=0 // pred_fallthru
    _
  // Predicated region
  $region6: #{patch_embedding_forward.2} parent=0 // pred_check
    _
  $region7: #{patch_embedding_forward.2} parent=0 // pred_check_branch
    %12 = sbr.rel (0) target = $region9
  $region8: #{patch_embedding_forward.2} parent=0 // pred_region
    _
  $region9: #{patch_embedding_forward.2} parent=0 // pred_fallthru
    _
  // Predicated region
  $region10: #{patch_embedding_forward.2} parent=0 // pred_check
    _
  $region11: #{patch_embedding_forward.2} parent=0 // pred_check_branch
    %14 = sbr.rel (0) target = $region13
  $region12: #{patch_embedding_forward.2} parent=0 // pred_region
    _
  $region13: #{patch_embedding_forward.2} parent=0 // pred_fallthru
    _
  // Predicated region
  $region14: #{patch_embedding_forward.2} parent=0 // pred_check
    _
  $region15: #{patch_embedding_forward.2} parent=0 // pred_check_branch
    %16 = sbr.rel (0) target = $region17
  $region16: #{patch_embedding_forward.2} parent=0 // pred_region
    _
  $region17: #{patch_embedding_forward.2} parent=0 // pred_fallthru
    _
  %v18 = vld [vmem:[%s0] sm:$0xf]
  %v19 = vld [vmem:[%s0 + $0x4] sm:$0xf]
  %v20 = vld [vmem:[%s0 + $0x8] sm:$0xf]
  %v21 = vld [vmem:[%s0 + $0xc] sm:$0xf]
  %v22 = vld [vmem:[%s0 + $0x10] sm:$0xf]
  %v23 = vld [vmem:[%s0 + $0x14] sm:$0xf]
  %v24 = vld [vmem:[%s0 + $0x18] sm:$0xf]
  %v25 = vld [vmem:[%s0 + $0x1c] sm:$0xf]
  %v26 = vld [vmem:[%s0 + $0x20] sm:$0xf]
  %v27 = vld [vmem:[%s0 + $0x24] sm:$0xf]
  %v28 = vld [vmem:[%s0 + $0x28] sm:$0xf]
  %v29 = vld [vmem:[%s0 + $0x2c] sm:$0xf]
  %v30 = vld [vmem:[%s0 + $0x30] sm:$0xf]
  %v31 = vld [vmem:[%s0 + $0x34] sm:$0xf]
  %v32 = vld [vmem:[%s0 + $0x38] sm:$0xf]
  %v33 = vld [vmem:[%s0 + $0x3c] sm:$0xf]
  %v34 = vld [vmem:[%s0 + $0x40] sm:$0xf]
  %v35 = vld [vmem:[%s0 + $0x44] sm:$0xf]
  %v36 = vld [vmem:[%s0 + $0x48] sm:$0xf]
  %v37 = vld [vmem:[%s0 + $0x4c] sm:$0xf]
  %v38 = vld [vmem:[%s0 + $0x50] sm:$0xf]
  %v39 = vld [vmem:[%s0 + $0x54] sm:$0xf]
  %v40 = vld [vmem:[%s0 + $0x58] sm:$0xf]
  %v41 = vld [vmem:[%s0 + $0x5c] sm:$0xf]
  %v42 = vld [vmem:[%s0 + $0x60] sm:$0xf]
  %v43 = vld [vmem:[%s0 + $0x64] sm:$0xf]
  %v44 = vld [vmem:[%s0 + $0x68] sm:$0xf]
  %v45 = vld [vmem:[%s0 + $0x6c] sm:$0xf]
  %v46 = vld [vmem:[%s0 + $0x70] sm:$0xf]
  %v47 = vld [vmem:[%s0 + $0x74] sm:$0xf]
  %v48 = vld [vmem:[%s0 + $0x78] sm:$0xf]
  %v49 = vld [vmem:[%s0 + $0x7c] sm:$0xf]
  %v82 = vrot.slane %v18, 3
  %v83 = vrot.slane %v19, 3
  %v84 = vrot.slane %v20, 3
  %v85 = vrot.slane %v21, 3
  %v86 = vrot.slane %v22, 3
  %v87 = vrot.slane %v23, 3
  %v88 = vrot.slane %v24, 3
  %v89 = vrot.slane %v25, 3
  %v90 = vrot.slane %v26, 3
  %v91 = vrot.slane %v27, 3
  %v92 = vrot.slane %v28, 3
  %v93 = vrot.slane %v29, 3
  %v94 = vrot.slane %v30, 3
  %v95 = vrot.slane %v31, 3
  %v96 = vrot.slane %v32, 3
  %v97 = vrot.slane %v33, 3
  %v98 = vrot.slane %v34, 3
  %v99 = vrot.slane %v35, 3
  %v100 = vrot.slane %v36, 3
  %v101 = vrot.slane %v37, 3
  %v102 = vrot.slane %v38, 3
  %v103 = vrot.slane %v39, 3
  %v104 = vrot.slane %v40, 3
  %v105 = vrot.slane %v41, 3
  %v106 = vrot.slane %v42, 3
  %v107 = vrot.slane %v43, 3
  %v108 = vrot.slane %v44, 3
  %v109 = vrot.slane %v45, 3
  %v110 = vrot.slane %v46, 3
  %v111 = vrot.slane %v47, 3
  %v112 = vrot.slane %v48, 3
  %v113 = vrot.slane %v49, 3
  %vm114 = vcmask 1040384
  %v117 = vsel %vm114, %v18, %v82
  %vm119 = vcmask 1041409
  %v120 = vsel %vm119, %v18, %v82
  %v122 = vrot.slane %v120, 1
  %vm123 = vcmask 1042434
  %v124 = vsel %vm123, %v18, %v82
  %v126 = vrot.slane %v124, 2
  %vm127 = vcmask 1043459
  %v128 = vsel %vm127, %v18, %v82
  %v130 = vrot.slane %v128, 3
  %v133 = vsel %vm114, %v19, %v83
  %v135 = vsel %vm119, %v19, %v83
  %v137 = vrot.slane %v135, 1
  %v138 = vsel %vm123, %v19, %v83
  %v140 = vrot.slane %v138, 2
  %v141 = vsel %vm127, %v19, %v83
  %v143 = vrot.slane %v141, 3
  %v146 = vsel %vm114, %v20, %v84
  %v148 = vsel %vm119, %v20, %v84
  %v150 = vrot.slane %v148, 1
  %v151 = vsel %vm123, %v20, %v84
  %v153 = vrot.slane %v151, 2
  %v154 = vsel %vm127, %v20, %v84
  %v156 = vrot.slane %v154, 3
  %v159 = vsel %vm114, %v21, %v85
  %v161 = vsel %vm119, %v21, %v85
  %v163 = vrot.slane %v161, 1
  %v164 = vsel %vm123, %v21, %v85
  %v166 = vrot.slane %v164, 2
  %v167 = vsel %vm127, %v21, %v85
  %v169 = vrot.slane %v167, 3
  %v172 = vsel %vm114, %v22, %v86
  %v174 = vsel %vm119, %v22, %v86
  %v176 = vrot.slane %v174, 1
  %v177 = vsel %vm123, %v22, %v86
  %v179 = vrot.slane %v177, 2
  %v180 = vsel %vm127, %v22, %v86
  %v182 = vrot.slane %v180, 3
  %v185 = vsel %vm114, %v23, %v87
  %v187 = vsel %vm119, %v23, %v87
  %v189 = vrot.slane %v187, 1
  %v190 = vsel %vm123, %v23, %v87
  %v192 = vrot.slane %v190, 2
  %v193 = vsel %vm127, %v23, %v87
  %v195 = vrot.slane %v193, 3
  %v198 = vsel %vm114, %v24, %v88
  %v200 = vsel %vm119, %v24, %v88
  %v202 = vrot.slane %v200, 1
  %v203 = vsel %vm123, %v24, %v88
  %v205 = vrot.slane %v203, 2
  %v206 = vsel %vm127, %v24, %v88
  %v208 = vrot.slane %v206, 3
  %v211 = vsel %vm114, %v25, %v89
  %v213 = vsel %vm119, %v25, %v89
  %v215 = vrot.slane %v213, 1
  %v216 = vsel %vm123, %v25, %v89
  %v218 = vrot.slane %v216, 2
  %v219 = vsel %vm127, %v25, %v89
  %v221 = vrot.slane %v219, 3
  %v224 = vsel %vm114, %v26, %v90
  %v226 = vsel %vm119, %v26, %v90
  %v228 = vrot.slane %v226, 1
  %v229 = vsel %vm123, %v26, %v90
  %v231 = vrot.slane %v229, 2
  %v232 = vsel %vm127, %v26, %v90
  %v234 = vrot.slane %v232, 3
  %v237 = vsel %vm114, %v27, %v91
  %v239 = vsel %vm119, %v27, %v91
  %v241 = vrot.slane %v239, 1
  %v242 = vsel %vm123, %v27, %v91
  %v244 = vrot.slane %v242, 2
  %v245 = vsel %vm127, %v27, %v91
  %v247 = vrot.slane %v245, 3
  %v250 = vsel %vm114, %v28, %v92
  %v252 = vsel %vm119, %v28, %v92
  %v254 = vrot.slane %v252, 1
  %v255 = vsel %vm123, %v28, %v92
  %v257 = vrot.slane %v255, 2
  %v258 = vsel %vm127, %v28, %v92
  %v260 = vrot.slane %v258, 3
  %v263 = vsel %vm114, %v29, %v93
  %v265 = vsel %vm119, %v29, %v93
  %v267 = vrot.slane %v265, 1
  %v268 = vsel %vm123, %v29, %v93
  %v270 = vrot.slane %v268, 2
  %v271 = vsel %vm127, %v29, %v93
  %v273 = vrot.slane %v271, 3
  %v276 = vsel %vm114, %v30, %v94
  %v278 = vsel %vm119, %v30, %v94
  %v280 = vrot.slane %v278, 1
  %v281 = vsel %vm123, %v30, %v94
  %v283 = vrot.slane %v281, 2
  %v284 = vsel %vm127, %v30, %v94
  %v286 = vrot.slane %v284, 3
  %v289 = vsel %vm114, %v31, %v95
  %v291 = vsel %vm119, %v31, %v95
  %v293 = vrot.slane %v291, 1
  %v294 = vsel %vm123, %v31, %v95
  %v296 = vrot.slane %v294, 2
  %v297 = vsel %vm127, %v31, %v95
  %v299 = vrot.slane %v297, 3
  %v302 = vsel %vm114, %v32, %v96
  %v304 = vsel %vm119, %v32, %v96
  %v306 = vrot.slane %v304, 1
  %v307 = vsel %vm123, %v32, %v96
  %v309 = vrot.slane %v307, 2
  %v310 = vsel %vm127, %v32, %v96
  %v312 = vrot.slane %v310, 3
  %v315 = vsel %vm114, %v33, %v97
  %v317 = vsel %vm119, %v33, %v97
  %v319 = vrot.slane %v317, 1
  %v320 = vsel %vm123, %v33, %v97
  %v322 = vrot.slane %v320, 2
  %v323 = vsel %vm127, %v33, %v97
  %v325 = vrot.slane %v323, 3
  %v328 = vsel %vm114, %v34, %v98
  %v330 = vsel %vm119, %v34, %v98
  %v332 = vrot.slane %v330, 1
  %v333 = vsel %vm123, %v34, %v98
  %v335 = vrot.slane %v333, 2
  %v336 = vsel %vm127, %v34, %v98
  %v338 = vrot.slane %v336, 3
  %v341 = vsel %vm114, %v35, %v99
  %v343 = vsel %vm119, %v35, %v99
  %v345 = vrot.slane %v343, 1
  %v346 = vsel %vm123, %v35, %v99
  %v348 = vrot.slane %v346, 2
  %v349 = vsel %vm127, %v35, %v99
  %v351 = vrot.slane %v349, 3
  %v354 = vsel %vm114, %v36, %v100
  %v356 = vsel %vm119, %v36, %v100
  %v358 = vrot.slane %v356, 1
  %v359 = vsel %vm123, %v36, %v100
  %v361 = vrot.slane %v359, 2
  %v362 = vsel %vm127, %v36, %v100
  %v364 = vrot.slane %v362, 3
  %v367 = vsel %vm114, %v37, %v101
  %v369 = vsel %vm119, %v37, %v101
  %v371 = vrot.slane %v369, 1
  %v372 = vsel %vm123, %v37, %v101
  %v374 = vrot.slane %v372, 2
  %v375 = vsel %vm127, %v37, %v101
  %v377 = vrot.slane %v375, 3
  %v380 = vsel %vm114, %v38, %v102
  %v382 = vsel %vm119, %v38, %v102
  %v384 = vrot.slane %v382, 1
  %v385 = vsel %vm123, %v38, %v102
  %v387 = vrot.slane %v385, 2
  %v388 = vsel %vm127, %v38, %v102
  %v390 = vrot.slane %v388, 3
  %v393 = vsel %vm114, %v39, %v103
  %v395 = vsel %vm119, %v39, %v103
  %v397 = vrot.slane %v395, 1
  %v398 = vsel %vm123, %v39, %v103
  %v400 = vrot.slane %v398, 2
  %v401 = vsel %vm127, %v39, %v103
  %v403 = vrot.slane %v401, 3
  %v406 = vsel %vm114, %v40, %v104
  %v408 = vsel %vm119, %v40, %v104
  %v410 = vrot.slane %v408, 1
  %v411 = vsel %vm123, %v40, %v104
  %v413 = vrot.slane %v411, 2
  %v414 = vsel %vm127, %v40, %v104
  %v416 = vrot.slane %v414, 3
  %v419 = vsel %vm114, %v41, %v105
  %v421 = vsel %vm119, %v41, %v105
  %v423 = vrot.slane %v421, 1
  %v424 = vsel %vm123, %v41, %v105
  %v426 = vrot.slane %v424, 2
  %v427 = vsel %vm127, %v41, %v105
  %v429 = vrot.slane %v427, 3
  %v432 = vsel %vm114, %v42, %v106
  %v434 = vsel %vm119, %v42, %v106
  %v436 = vrot.slane %v434, 1
  %v437 = vsel %vm123, %v42, %v106
  %v439 = vrot.slane %v437, 2
  %v440 = vsel %vm127, %v42, %v106
  %v442 = vrot.slane %v440, 3
  %v445 = vsel %vm114, %v43, %v107
  %v447 = vsel %vm119, %v43, %v107
  %v449 = vrot.slane %v447, 1
  %v450 = vsel %vm123, %v43, %v107
  %v452 = vrot.slane %v450, 2
  %v453 = vsel %vm127, %v43, %v107
  %v455 = vrot.slane %v453, 3
  %v458 = vsel %vm114, %v44, %v108
  %v460 = vsel %vm119, %v44, %v108
  %v462 = vrot.slane %v460, 1
  %v463 = vsel %vm123, %v44, %v108
  %v465 = vrot.slane %v463, 2
  %v466 = vsel %vm127, %v44, %v108
  %v468 = vrot.slane %v466, 3
  %v471 = vsel %vm114, %v45, %v109
  %v473 = vsel %vm119, %v45, %v109
  %v475 = vrot.slane %v473, 1
  %v476 = vsel %vm123, %v45, %v109
  %v478 = vrot.slane %v476, 2
  %v479 = vsel %vm127, %v45, %v109
  %v481 = vrot.slane %v479, 3
  %v484 = vsel %vm114, %v46, %v110
  %v486 = vsel %vm119, %v46, %v110
  %v488 = vrot.slane %v486, 1
  %v489 = vsel %vm123, %v46, %v110
  %v491 = vrot.slane %v489, 2
  %v492 = vsel %vm127, %v46, %v110
  %v494 = vrot.slane %v492, 3
  %v497 = vsel %vm114, %v47, %v111
  %v499 = vsel %vm119, %v47, %v111
  %v501 = vrot.slane %v499, 1
  %v502 = vsel %vm123, %v47, %v111
  %v504 = vrot.slane %v502, 2
  %v505 = vsel %vm127, %v47, %v111
  %v507 = vrot.slane %v505, 3
  %v510 = vsel %vm114, %v48, %v112
  %v512 = vsel %vm119, %v48, %v112
  %v514 = vrot.slane %v512, 1
  %v515 = vsel %vm123, %v48, %v112
  %v517 = vrot.slane %v515, 2
  %v518 = vsel %vm127, %v48, %v112
  %v520 = vrot.slane %v518, 3
  %v523 = vsel %vm114, %v49, %v113
  %v525 = vsel %vm119, %v49, %v113
  %v527 = vrot.slane %v525, 1
  %v528 = vsel %vm123, %v49, %v113
  %v530 = vrot.slane %v528, 2
  %v531 = vsel %vm127, %v49, %v113
  %v533 = vrot.slane %v531, 3
  %v534 = vunpack.i.l.s16 %v117
  %v535 = vunpack.i.h.s16 %v117
  %v536 = vunpack.i.l.s16 %v122
  %v537 = vunpack.i.h.s16 %v122
  %v538 = vunpack.i.l.s16 %v126
  %v539 = vunpack.i.h.s16 %v126
  %v540 = vunpack.i.l.s16 %v130
  %v541 = vunpack.i.h.s16 %v130
  %v542 = vunpack.i.l.s16 %v133
  %v543 = vunpack.i.h.s16 %v133
  %v544 = vunpack.i.l.s16 %v137
  %v545 = vunpack.i.h.s16 %v137
  %v546 = vunpack.i.l.s16 %v140
  %v547 = vunpack.i.h.s16 %v140
  %v548 = vunpack.i.l.s16 %v143
  %v549 = vunpack.i.h.s16 %v143
  %v550 = vunpack.i.l.s16 %v146
  %v551 = vunpack.i.h.s16 %v146
  %v552 = vunpack.i.l.s16 %v150
  %v553 = vunpack.i.h.s16 %v150
  %v554 = vunpack.i.l.s16 %v153
  %v555 = vunpack.i.h.s16 %v153
  %v556 = vunpack.i.l.s16 %v156
  %v557 = vunpack.i.h.s16 %v156
  %v558 = vunpack.i.l.s16 %v159
  %v559 = vunpack.i.h.s16 %v159
  %v560 = vunpack.i.l.s16 %v163
  %v561 = vunpack.i.h.s16 %v163
  %v562 = vunpack.i.l.s16 %v166
  %v563 = vunpack.i.h.s16 %v166
  %v564 = vunpack.i.l.s16 %v169
  %v565 = vunpack.i.h.s16 %v169
  %v566 = vunpack.i.l.s16 %v172
  %v567 = vunpack.i.h.s16 %v172
  %v568 = vunpack.i.l.s16 %v176
  %v569 = vunpack.i.h.s16 %v176
  %v570 = vunpack.i.l.s16 %v179
  %v571 = vunpack.i.h.s16 %v179
  %v572 = vunpack.i.l.s16 %v182
  %v573 = vunpack.i.h.s16 %v182
  %v574 = vunpack.i.l.s16 %v185
  %v575 = vunpack.i.h.s16 %v185
  %v576 = vunpack.i.l.s16 %v189
  %v577 = vunpack.i.h.s16 %v189
  %v578 = vunpack.i.l.s16 %v192
  %v579 = vunpack.i.h.s16 %v192
  %v580 = vunpack.i.l.s16 %v195
  %v581 = vunpack.i.h.s16 %v195
  %v582 = vunpack.i.l.s16 %v198
  %v583 = vunpack.i.h.s16 %v198
  %v584 = vunpack.i.l.s16 %v202
  %v585 = vunpack.i.h.s16 %v202
  %v586 = vunpack.i.l.s16 %v205
  %v587 = vunpack.i.h.s16 %v205
  %v588 = vunpack.i.l.s16 %v208
  %v589 = vunpack.i.h.s16 %v208
  %v590 = vunpack.i.l.s16 %v211
  %v591 = vunpack.i.h.s16 %v211
  %v592 = vunpack.i.l.s16 %v215
  %v593 = vunpack.i.h.s16 %v215
  %v594 = vunpack.i.l.s16 %v218
  %v595 = vunpack.i.h.s16 %v218
  %v596 = vunpack.i.l.s16 %v221
  %v597 = vunpack.i.l.s16 %v224
  %v598 = vunpack.i.h.s16 %v224
  %v599 = vunpack.i.l.s16 %v228
  %v600 = vunpack.i.h.s16 %v228
  %v601 = vunpack.i.l.s16 %v231
  %v602 = vunpack.i.h.s16 %v231
  %v603 = vunpack.i.l.s16 %v234
  %v604 = vunpack.i.h.s16 %v234
  %v605 = vunpack.i.l.s16 %v237
  %v606 = vunpack.i.h.s16 %v237
  %v607 = vunpack.i.l.s16 %v241
  %v608 = vunpack.i.h.s16 %v241
  %v609 = vunpack.i.l.s16 %v244
  %v610 = vunpack.i.h.s16 %v244
  %v611 = vunpack.i.l.s16 %v247
  %v612 = vunpack.i.h.s16 %v247
  %v613 = vunpack.i.l.s16 %v250
  %v614 = vunpack.i.h.s16 %v250
  %v615 = vunpack.i.l.s16 %v254
  %v616 = vunpack.i.h.s16 %v254
  %v617 = vunpack.i.l.s16 %v257
  %v618 = vunpack.i.h.s16 %v257
  %v619 = vunpack.i.l.s16 %v260
  %v620 = vunpack.i.h.s16 %v260
  %v621 = vunpack.i.l.s16 %v263
  %v622 = vunpack.i.h.s16 %v263
  %v623 = vunpack.i.l.s16 %v267
  %v624 = vunpack.i.h.s16 %v267
  %v625 = vunpack.i.l.s16 %v270
  %v626 = vunpack.i.h.s16 %v270
  %v627 = vunpack.i.l.s16 %v273
  %v628 = vunpack.i.h.s16 %v273
  %v629 = vunpack.i.l.s16 %v276
  %v630 = vunpack.i.h.s16 %v276
  %v631 = vunpack.i.l.s16 %v280
  %v632 = vunpack.i.h.s16 %v280
  %v633 = vunpack.i.l.s16 %v283
  %v634 = vunpack.i.h.s16 %v283
  %v635 = vunpack.i.l.s16 %v286
  %v636 = vunpack.i.h.s16 %v286
  %v637 = vunpack.i.l.s16 %v289
  %v638 = vunpack.i.h.s16 %v289
  %v639 = vunpack.i.l.s16 %v293
  %v640 = vunpack.i.h.s16 %v293
  %v641 = vunpack.i.l.s16 %v296
  %v642 = vunpack.i.h.s16 %v296
  %v643 = vunpack.i.l.s16 %v299
  %v644 = vunpack.i.h.s16 %v299
  %v645 = vunpack.i.l.s16 %v302
  %v646 = vunpack.i.h.s16 %v302
  %v647 = vunpack.i.l.s16 %v306
  %v648 = vunpack.i.h.s16 %v306
  %v649 = vunpack.i.l.s16 %v309
  %v650 = vunpack.i.h.s16 %v309
  %v651 = vunpack.i.l.s16 %v312
  %v652 = vunpack.i.h.s16 %v312
  %v653 = vunpack.i.l.s16 %v315
  %v654 = vunpack.i.h.s16 %v315
  %v655 = vunpack.i.l.s16 %v319
  %v656 = vunpack.i.h.s16 %v319
  %v657 = vunpack.i.l.s16 %v322
  %v658 = vunpack.i.h.s16 %v322
  %v659 = vunpack.i.l.s16 %v325
  %v660 = vunpack.i.l.s16 %v328
  %v661 = vunpack.i.h.s16 %v328
  %v662 = vunpack.i.l.s16 %v332
  %v663 = vunpack.i.h.s16 %v332
  %v664 = vunpack.i.l.s16 %v335
  %v665 = vunpack.i.h.s16 %v335
  %v666 = vunpack.i.l.s16 %v338
  %v667 = vunpack.i.h.s16 %v338
  %v668 = vunpack.i.l.s16 %v341
  %v669 = vunpack.i.h.s16 %v341
  %v670 = vunpack.i.l.s16 %v345
  %v671 = vunpack.i.h.s16 %v345
  %v672 = vunpack.i.l.s16 %v348
  %v673 = vunpack.i.h.s16 %v348
  %v674 = vunpack.i.l.s16 %v351
  %v675 = vunpack.i.h.s16 %v351
  %v676 = vunpack.i.l.s16 %v354
  %v677 = vunpack.i.h.s16 %v354
  %v678 = vunpack.i.l.s16 %v358
  %v679 = vunpack.i.h.s16 %v358
  %v680 = vunpack.i.l.s16 %v361
  %v681 = vunpack.i.h.s16 %v361
  %v682 = vunpack.i.l.s16 %v364
  %v683 = vunpack.i.h.s16 %v364
  %v684 = vunpack.i.l.s16 %v367
  %v685 = vunpack.i.h.s16 %v367
  %v686 = vunpack.i.l.s16 %v371
  %v687 = vunpack.i.h.s16 %v371
  %v688 = vunpack.i.l.s16 %v374
  %v689 = vunpack.i.h.s16 %v374
  %v690 = vunpack.i.l.s16 %v377
  %v691 = vunpack.i.h.s16 %v377
  %v692 = vunpack.i.l.s16 %v380
  %v693 = vunpack.i.h.s16 %v380
  %v694 = vunpack.i.l.s16 %v384
  %v695 = vunpack.i.h.s16 %v384
  %v696 = vunpack.i.l.s16 %v387
  %v697 = vunpack.i.h.s16 %v387
  %v698 = vunpack.i.l.s16 %v390
  %v699 = vunpack.i.h.s16 %v390
  %v700 = vunpack.i.l.s16 %v393
  %v701 = vunpack.i.h.s16 %v393
  %v702 = vunpack.i.l.s16 %v397
  %v703 = vunpack.i.h.s16 %v397
  %v704 = vunpack.i.l.s16 %v400
  %v705 = vunpack.i.h.s16 %v400
  %v706 = vunpack.i.l.s16 %v403
  %v707 = vunpack.i.h.s16 %v403
  %v708 = vunpack.i.l.s16 %v406
  %v709 = vunpack.i.h.s16 %v406
  %v710 = vunpack.i.l.s16 %v410
  %v711 = vunpack.i.h.s16 %v410
  %v712 = vunpack.i.l.s16 %v413
  %v713 = vunpack.i.h.s16 %v413
  %v714 = vunpack.i.l.s16 %v416
  %v715 = vunpack.i.h.s16 %v416
  %v716 = vunpack.i.l.s16 %v419
  %v717 = vunpack.i.h.s16 %v419
  %v718 = vunpack.i.l.s16 %v423
  %v719 = vunpack.i.h.s16 %v423
  %v720 = vunpack.i.l.s16 %v426
  %v721 = vunpack.i.h.s16 %v426
  %v722 = vunpack.i.l.s16 %v429
  %v723 = vunpack.i.l.s16 %v432
  %v724 = vunpack.i.h.s16 %v432
  %v725 = vunpack.i.l.s16 %v436
  %v726 = vunpack.i.h.s16 %v436
  %v727 = vunpack.i.l.s16 %v439
  %v728 = vunpack.i.h.s16 %v439
  %v729 = vunpack.i.l.s16 %v442
  %v730 = vunpack.i.h.s16 %v442
  %v731 = vunpack.i.l.s16 %v445
  %v732 = vunpack.i.h.s16 %v445
  %v733 = vunpack.i.l.s16 %v449
  %v734 = vunpack.i.h.s16 %v449
  %v735 = vunpack.i.l.s16 %v452
  %v736 = vunpack.i.h.s16 %v452
  %v737 = vunpack.i.l.s16 %v455
  %v738 = vunpack.i.h.s16 %v455
  %v739 = vunpack.i.l.s16 %v458
  %v740 = vunpack.i.h.s16 %v458
  %v741 = vunpack.i.l.s16 %v462
  %v742 = vunpack.i.h.s16 %v462
  %v743 = vunpack.i.l.s16 %v465
  %v744 = vunpack.i.h.s16 %v465
  %v745 = vunpack.i.l.s16 %v468
  %v746 = vunpack.i.h.s16 %v468
  %v747 = vunpack.i.l.s16 %v471
  %v748 = vunpack.i.h.s16 %v471
  %v749 = vunpack.i.l.s16 %v475
  %v750 = vunpack.i.h.s16 %v475
  %v751 = vunpack.i.l.s16 %v478
  %v752 = vunpack.i.h.s16 %v478
  %v753 = vunpack.i.l.s16 %v481
  %v754 = vunpack.i.h.s16 %v481
  %v755 = vunpack.i.l.s16 %v484
  %v756 = vunpack.i.h.s16 %v484
  %v757 = vunpack.i.l.s16 %v488
  %v758 = vunpack.i.h.s16 %v488
  %v759 = vunpack.i.l.s16 %v491
  %v760 = vunpack.i.h.s16 %v491
  %v761 = vunpack.i.l.s16 %v494
  %v762 = vunpack.i.h.s16 %v494
  %v763 = vunpack.i.l.s16 %v497
  %v764 = vunpack.i.h.s16 %v497
  %v765 = vunpack.i.l.s16 %v501
  %v766 = vunpack.i.h.s16 %v501
  %v767 = vunpack.i.l.s16 %v504
  %v768 = vunpack.i.h.s16 %v504
  %v769 = vunpack.i.l.s16 %v507
  %v770 = vunpack.i.h.s16 %v507
  %v771 = vunpack.i.l.s16 %v510
  %v772 = vunpack.i.h.s16 %v510
  %v773 = vunpack.i.l.s16 %v514
  %v774 = vunpack.i.h.s16 %v514
  %v775 = vunpack.i.l.s16 %v517
  %v776 = vunpack.i.h.s16 %v517
  %v777 = vunpack.i.l.s16 %v520
  %v778 = vunpack.i.h.s16 %v520
  %v779 = vunpack.i.l.s16 %v523
  %v780 = vunpack.i.h.s16 %v523
  %v781 = vunpack.i.l.s16 %v527
  %v782 = vunpack.i.h.s16 %v527
  %v783 = vunpack.i.l.s16 %v530
  %v784 = vunpack.i.h.s16 %v530
  %v785 = vunpack.i.l.s16 %v533
  %v786 = vld [vmem:[%s1] sm:$0xff]
  %v787 = vld [vmem:[%s1 + $0x8] sm:$0xff]
  %v788 = vld [vmem:[%s1 + $0x10] sm:$0xff]
  %v789 = vld [vmem:[%s1 + $0x18] sm:$0xff]
  %v790 = vld [vmem:[%s1 + $0x20] sm:$0xff]
  %v791 = vld [vmem:[%s1 + $0x28] sm:$0xff]
  %v792 = vld [vmem:[%s1 + $0x30] sm:$0xff]
  %v793 = vld [vmem:[%s1 + $0x38] sm:$0xff]
  %v794 = vld [vmem:[%s1 + $0x40] sm:$0xff]
  %v795 = vld [vmem:[%s1 + $0x48] sm:$0xff]
  %v796 = vld [vmem:[%s1 + $0x50] sm:$0xff]
  %v797 = vld [vmem:[%s1 + $0x58] sm:$0xff]
  %v798 = vld [vmem:[%s1 + $0x60] sm:$0x33]
  %v799 = vpack.i.b16 %v535, %v534
  %v800 = vpack.i.b16 %v537, %v536
  %v801 = vpack.i.b16 %v539, %v538
  %v802 = vpack.i.b16 %v541, %v540
  %v803 = vpack.i.b16 %v543, %v542
  %v804 = vpack.i.b16 %v545, %v544
  %v805 = vpack.i.b16 %v547, %v546
  %v806 = vpack.i.b16 %v549, %v548
  %v807 = vpack.i.b16 %v551, %v550
  %v808 = vpack.i.b16 %v553, %v552
  %v809 = vpack.i.b16 %v555, %v554
  %v810 = vpack.i.b16 %v557, %v556
  %v811 = vpack.i.b16 %v559, %v558
  %v812 = vpack.i.b16 %v561, %v560
  %v813 = vpack.i.b16 %v563, %v562
  %v814 = vpack.i.b16 %v565, %v564
  %v815 = vpack.i.b16 %v567, %v566
  %v816 = vpack.i.b16 %v569, %v568
  %v817 = vpack.i.b16 %v571, %v570
  %v818 = vpack.i.b16 %v573, %v572
  %v819 = vpack.i.b16 %v575, %v574
  %v820 = vpack.i.b16 %v577, %v576
  %v821 = vpack.i.b16 %v579, %v578
  %v822 = vpack.i.b16 %v581, %v580
  %v823 = vpack.i.b16 %v583, %v582
  %v824 = vpack.i.b16 %v585, %v584
  %v825 = vpack.i.b16 %v587, %v586
  %v826 = vpack.i.b16 %v589, %v588
  %v827 = vpack.i.b16 %v591, %v590
  %v828 = vpack.i.b16 %v593, %v592
  %v829 = vpack.i.b16 %v595, %v594
  %v830 = vpack.i.b16 %v597, %v596
  %v831 = vpack.i.b16 %v599, %v598
  %v832 = vpack.i.b16 %v601, %v600
  %v833 = vpack.i.b16 %v603, %v602
  %v834 = vpack.i.b16 %v605, %v604
  %v835 = vpack.i.b16 %v607, %v606
  %v836 = vpack.i.b16 %v609, %v608
  %v837 = vpack.i.b16 %v611, %v610
  %v838 = vpack.i.b16 %v613, %v612
  %v839 = vpack.i.b16 %v615, %v614
  %v840 = vpack.i.b16 %v617, %v616
  %v841 = vpack.i.b16 %v619, %v618
  %v842 = vpack.i.b16 %v621, %v620
  %v843 = vpack.i.b16 %v623, %v622
  %v844 = vpack.i.b16 %v625, %v624
  %v845 = vpack.i.b16 %v627, %v626
  %v846 = vpack.i.b16 %v629, %v628
  %v847 = vpack.i.b16 %v631, %v630
  %v848 = vpack.i.b16 %v633, %v632
  %v849 = vpack.i.b16 %v635, %v634
  %v850 = vpack.i.b16 %v637, %v636
  %v851 = vpack.i.b16 %v639, %v638
  %v852 = vpack.i.b16 %v641, %v640
  %v853 = vpack.i.b16 %v643, %v642
  %v854 = vpack.i.b16 %v645, %v644
  %v855 = vpack.i.b16 %v647, %v646
  %v856 = vpack.i.b16 %v649, %v648
  %v857 = vpack.i.b16 %v651, %v650
  %v858 = vpack.i.b16 %v653, %v652
  %v859 = vpack.i.b16 %v655, %v654
  %v860 = vpack.i.b16 %v657, %v656
  %v861 = vpack.i.b16 %v659, %v658
  %v862 = vpack.i.b16 %v661, %v660
  %v863 = vpack.i.b16 %v663, %v662
  %v864 = vpack.i.b16 %v665, %v664
  %v865 = vpack.i.b16 %v667, %v666
  %v866 = vpack.i.b16 %v669, %v668
  %v867 = vpack.i.b16 %v671, %v670
  %v868 = vpack.i.b16 %v673, %v672
  %v869 = vpack.i.b16 %v675, %v674
  %v870 = vpack.i.b16 %v677, %v676
  %v871 = vpack.i.b16 %v679, %v678
  %v872 = vpack.i.b16 %v681, %v680
  %v873 = vpack.i.b16 %v683, %v682
  %v874 = vpack.i.b16 %v685, %v684
  %v875 = vpack.i.b16 %v687, %v686
  %v876 = vpack.i.b16 %v689, %v688
  %v877 = vpack.i.b16 %v691, %v690
  %v878 = vpack.i.b16 %v693, %v692
  %v879 = vpack.i.b16 %v695, %v694
  %v880 = vpack.i.b16 %v697, %v696
  %v881 = vpack.i.b16 %v699, %v698
  %v882 = vpack.i.b16 %v701, %v700
  %v883 = vpack.i.b16 %v703, %v702
  %v884 = vpack.i.b16 %v705, %v704
  %v885 = vpack.i.b16 %v707, %v706
  %v886 = vpack.i.b16 %v709, %v708
  %v887 = vpack.i.b16 %v711, %v710
  %v888 = vpack.i.b16 %v713, %v712
  %v889 = vpack.i.b16 %v715, %v714
  %v890 = vpack.i.b16 %v717, %v716
  %v891 = vpack.i.b16 %v719, %v718
  %v892 = vpack.i.b16 %v721, %v720
  %v893 = vpack.i.b16 %v723, %v722
  %v894 = vpack.i.b16 %v725, %v724
  %v895 = vpack.i.b16 %v727, %v726
  %v896 = vpack.i.b16 %v729, %v728
  %v897 = vpack.i.b16 %v731, %v730
  %v898 = vpack.i.b16 %v733, %v732
  %v899 = vpack.i.b16 %v735, %v734
  %v900 = vpack.i.b16 %v737, %v736
  %v901 = vpack.i.b16 %v739, %v738
  %v902 = vpack.i.b16 %v741, %v740
  %v903 = vpack.i.b16 %v743, %v742
  %v904 = vpack.i.b16 %v745, %v744
  %v905 = vpack.i.b16 %v747, %v746
  %v906 = vpack.i.b16 %v749, %v748
  %v907 = vpack.i.b16 %v751, %v750
  %v908 = vpack.i.b16 %v753, %v752
  %v909 = vpack.i.b16 %v755, %v754
  %v910 = vpack.i.b16 %v757, %v756
  %v911 = vpack.i.b16 %v759, %v758
  %v912 = vpack.i.b16 %v761, %v760
  %v913 = vpack.i.b16 %v763, %v762
  %v914 = vpack.i.b16 %v765, %v764
  %v915 = vpack.i.b16 %v767, %v766
  %v916 = vpack.i.b16 %v769, %v768
  %v917 = vpack.i.b16 %v771, %v770
  %v918 = vpack.i.b16 %v773, %v772
  %v919 = vpack.i.b16 %v775, %v774
  %v920 = vpack.i.b16 %v777, %v776
  %v921 = vpack.i.b16 %v779, %v778
  %v922 = vpack.i.b16 %v781, %v780
  %v923 = vpack.i.b16 %v783, %v782
  %v924 = vpack.i.b16 %v785, %v784
  %926 = vst [vmem:[#allocation1] ss:$9 sm:$0xff] %v799
  %s928 = scalar_lea.vmem [#allocation1], 1
  %929 = vst [vmem:[%s928] ss:$9 sm:$0xff] %v800
  %s931 = scalar_lea.vmem [#allocation1], 2
  %932 = vst [vmem:[%s931] ss:$9 sm:$0xff] %v801
  %s934 = scalar_lea.vmem [#allocation1], 3
  %935 = vst [vmem:[%s934] ss:$9 sm:$0xff] %v802
  %s937 = scalar_lea.vmem [#allocation1], 4
  %938 = vst [vmem:[%s937] ss:$9 sm:$0xff] %v803
  %s940 = scalar_lea.vmem [#allocation1], 5
  %941 = vst [vmem:[%s940] ss:$9 sm:$0xff] %v804
  %s943 = scalar_lea.vmem [#allocation1], 6
  %944 = vst [vmem:[%s943] ss:$9 sm:$0xff] %v805
  %s946 = scalar_lea.vmem [#allocation1], 7
  %947 = vst [vmem:[%s946] ss:$9 sm:$0xff] %v806
  %v948 = vld [vmem:[#allocation1] sm:$0xff]
  %950 = vst [vmem:[#allocation1] ss:$9 sm:$0xff] %v807
  %952 = vst [vmem:[%s928] ss:$9 sm:$0xff] %v808
  %954 = vst [vmem:[%s931] ss:$9 sm:$0xff] %v809
  %956 = vst [vmem:[%s934] ss:$9 sm:$0xff] %v810
  %958 = vst [vmem:[%s937] ss:$9 sm:$0xff] %v811
  %960 = vst [vmem:[%s940] ss:$9 sm:$0xff] %v812
  %962 = vst [vmem:[%s943] ss:$9 sm:$0xff] %v813
  %964 = vst [vmem:[%s946] ss:$9 sm:$0xff] %v814
  %v965 = vld [vmem:[#allocation1] sm:$0xff]
  %967 = vst [vmem:[#allocation1] ss:$9 sm:$0xff] %v815
  %969 = vst [vmem:[%s928] ss:$9 sm:$0xff] %v816
  %971 = vst [vmem:[%s931] ss:$9 sm:$0xff] %v817
  %973 = vst [vmem:[%s934] ss:$9 sm:$0xff] %v818
  %975 = vst [vmem:[%s937] ss:$9 sm:$0xff] %v819
  %977 = vst [vmem:[%s940] ss:$9 sm:$0xff] %v820
  %979 = vst [vmem:[%s943] ss:$9 sm:$0xff] %v821
  %981 = vst [vmem:[%s946] ss:$9 sm:$0xff] %v822
  %v982 = vld [vmem:[#allocation1] sm:$0xff]
  %984 = vst [vmem:[#allocation1] ss:$9 sm:$0xff] %v823
  %986 = vst [vmem:[%s928] ss:$9 sm:$0xff] %v824
  %988 = vst [vmem:[%s931] ss:$9 sm:$0xff] %v825
  %990 = vst [vmem:[%s934] ss:$9 sm:$0xff] %v826
  %992 = vst [vmem:[%s937] ss:$9 sm:$0xff] %v827
  %994 = vst [vmem:[%s940] ss:$9 sm:$0xff] %v828
  %996 = vst [vmem:[%s943] ss:$9 sm:$0xff] %v829
  %998 = vst [vmem:[%s946] ss:$9 sm:$0xff] %v830
  %v999 = vld [vmem:[#allocation1] sm:$0xff]
  %1001 = vst [vmem:[#allocation1] ss:$9 sm:$0xff] %v831
  %1003 = vst [vmem:[%s928] ss:$9 sm:$0xff] %v832
  %1005 = vst [vmem:[%s931] ss:$9 sm:$0xff] %v833
  %1007 = vst [vmem:[%s934] ss:$9 sm:$0xff] %v834
  %1009 = vst [vmem:[%s937] ss:$9 sm:$0xff] %v835
  %1011 = vst [vmem:[%s940] ss:$9 sm:$0xff] %v836
  %1013 = vst [vmem:[%s943] ss:$9 sm:$0xff] %v837
  %1015 = vst [vmem:[%s946] ss:$9 sm:$0xff] %v838
  %v1016 = vld [vmem:[#allocation1] sm:$0xff]
  %1018 = vst [vmem:[#allocation1] ss:$9 sm:$0xff] %v839
  %1020 = vst [vmem:[%s928] ss:$9 sm:$0xff] %v840
  %1022 = vst [vmem:[%s931] ss:$9 sm:$0xff] %v841
  %1024 = vst [vmem:[%s934] ss:$9 sm:$0xff] %v842
  %1026 = vst [vmem:[%s937] ss:$9 sm:$0xff] %v843
  %1028 = vst [vmem:[%s940] ss:$9 sm:$0xff] %v844
  %1030 = vst [vmem:[%s943] ss:$9 sm:$0xff] %v845
  %1032 = vst [vmem:[%s946] ss:$9 sm:$0xff] %v846
  %v1033 = vld [vmem:[#allocation1] sm:$0xff]
  %1035 = vst [vmem:[#allocation1] ss:$9 sm:$0xff] %v847
  %1037 = vst [vmem:[%s928] ss:$9 sm:$0xff] %v848
  %1039 = vst [vmem:[%s931] ss:$9 sm:$0xff] %v849
  %1041 = vst [vmem:[%s934] ss:$9 sm:$0xff] %v850
  %1043 = vst [vmem:[%s937] ss:$9 sm:$0xff] %v851
  %1045 = vst [vmem:[%s940] ss:$9 sm:$0xff] %v852
  %1047 = vst [vmem:[%s943] ss:$9 sm:$0xff] %v853
  %1049 = vst [vmem:[%s946] ss:$9 sm:$0xff] %v854
  %v1050 = vld [vmem:[#allocation1] sm:$0xff]
  %1052 = vst [vmem:[#allocation1] ss:$9 sm:$0xff] %v855
  %1054 = vst [vmem:[%s928] ss:$9 sm:$0xff] %v856
  %1056 = vst [vmem:[%s931] ss:$9 sm:$0xff] %v857
  %1058 = vst [vmem:[%s934] ss:$9 sm:$0xff] %v858
  %1060 = vst [vmem:[%s937] ss:$9 sm:$0xff] %v859
  %1062 = vst [vmem:[%s940] ss:$9 sm:$0xff] %v860
  %1064 = vst [vmem:[%s943] ss:$9 sm:$0xff] %v861
  %1066 = vst [vmem:[%s946] ss:$9 sm:$0xff] %v862
  %v1067 = vld [vmem:[#allocation1] sm:$0xff]
  %1069 = vst [vmem:[#allocation1] ss:$9 sm:$0xff] %v863
  %1071 = vst [vmem:[%s928] ss:$9 sm:$0xff] %v864
  %1073 = vst [vmem:[%s931] ss:$9 sm:$0xff] %v865
  %1075 = vst [vmem:[%s934] ss:$9 sm:$0xff] %v866
  %1077 = vst [vmem:[%s937] ss:$9 sm:$0xff] %v867
  %1079 = vst [vmem:[%s940] ss:$9 sm:$0xff] %v868
  %1081 = vst [vmem:[%s943] ss:$9 sm:$0xff] %v869
  %1083 = vst [vmem:[%s946] ss:$9 sm:$0xff] %v870
  %v1084 = vld [vmem:[#allocation1] sm:$0xff]
  %1086 = vst [vmem:[#allocation1] ss:$9 sm:$0xff] %v871
  %1088 = vst [vmem:[%s928] ss:$9 sm:$0xff] %v872
  %1090 = vst [vmem:[%s931] ss:$9 sm:$0xff] %v873
  %1092 = vst [vmem:[%s934] ss:$9 sm:$0xff] %v874
  %1094 = vst [vmem:[%s937] ss:$9 sm:$0xff] %v875
  %1096 = vst [vmem:[%s940] ss:$9 sm:$0xff] %v876
  %1098 = vst [vmem:[%s943] ss:$9 sm:$0xff] %v877
  %1100 = vst [vmem:[%s946] ss:$9 sm:$0xff] %v878
  %v1101 = vld [vmem:[#allocation1] sm:$0xff]
  %1103 = vst [vmem:[#allocation1] ss:$9 sm:$0xff] %v879
  %1105 = vst [vmem:[%s928] ss:$9 sm:$0xff] %v880
  %1107 = vst [vmem:[%s931] ss:$9 sm:$0xff] %v881
  %1109 = vst [vmem:[%s934] ss:$9 sm:$0xff] %v882
  %1111 = vst [vmem:[%s937] ss:$9 sm:$0xff] %v883
  %1113 = vst [vmem:[%s940] ss:$9 sm:$0xff] %v884
  %1115 = vst [vmem:[%s943] ss:$9 sm:$0xff] %v885
  %1117 = vst [vmem:[%s946] ss:$9 sm:$0xff] %v886
  %v1118 = vld [vmem:[#allocation1] sm:$0xff]
  %1120 = vst [vmem:[#allocation1] ss:$9 sm:$0xff] %v887
  %1122 = vst [vmem:[%s928] ss:$9 sm:$0xff] %v888
  %1124 = vst [vmem:[%s931] ss:$9 sm:$0xff] %v889
  %1126 = vst [vmem:[%s934] ss:$9 sm:$0xff] %v890
  %1128 = vst [vmem:[%s937] ss:$9 sm:$0xff] %v891
  %1130 = vst [vmem:[%s940] ss:$9 sm:$0xff] %v892
  %1132 = vst [vmem:[%s943] ss:$9 sm:$0xff] %v893
  %1134 = vst [vmem:[%s946] ss:$9 sm:$0xff] %v894
  %v1135 = vld [vmem:[#allocation1] sm:$0xff]
  %1137 = vst [vmem:[#allocation1] ss:$9 sm:$0xff] %v895
  %1139 = vst [vmem:[%s928] ss:$9 sm:$0xff] %v896
  %1141 = vst [vmem:[%s931] ss:$9 sm:$0xff] %v897
  %1143 = vst [vmem:[%s934] ss:$9 sm:$0xff] %v898
  %1145 = vst [vmem:[%s937] ss:$9 sm:$0xff] %v899
  %1147 = vst [vmem:[%s940] ss:$9 sm:$0xff] %v900
  %1149 = vst [vmem:[%s943] ss:$9 sm:$0xff] %v901
  %1151 = vst [vmem:[%s946] ss:$9 sm:$0xff] %v902
  %v1152 = vld [vmem:[#allocation1] sm:$0xff]
  %1154 = vst [vmem:[#allocation1] ss:$9 sm:$0xff] %v903
  %1156 = vst [vmem:[%s928] ss:$9 sm:$0xff] %v904
  %1158 = vst [vmem:[%s931] ss:$9 sm:$0xff] %v905
  %1160 = vst [vmem:[%s934] ss:$9 sm:$0xff] %v906
  %1162 = vst [vmem:[%s937] ss:$9 sm:$0xff] %v907
  %1164 = vst [vmem:[%s940] ss:$9 sm:$0xff] %v908
  %1166 = vst [vmem:[%s943] ss:$9 sm:$0xff] %v909
  %1168 = vst [vmem:[%s946] ss:$9 sm:$0xff] %v910
  %v1169 = vld [vmem:[#allocation1] sm:$0xff]
  %1171 = vst [vmem:[#allocation1] ss:$9 sm:$0xff] %v911
  %1173 = vst [vmem:[%s928] ss:$9 sm:$0xff] %v912
  %1175 = vst [vmem:[%s931] ss:$9 sm:$0xff] %v913
  %1177 = vst [vmem:[%s934] ss:$9 sm:$0xff] %v914
  %1179 = vst [vmem:[%s937] ss:$9 sm:$0xff] %v915
  %1181 = vst [vmem:[%s940] ss:$9 sm:$0xff] %v916
  %1183 = vst [vmem:[%s943] ss:$9 sm:$0xff] %v917
  %1185 = vst [vmem:[%s946] ss:$9 sm:$0xff] %v918
  %v1186 = vld [vmem:[#allocation1] sm:$0xff]
  %1188 = vst [vmem:[#allocation1] ss:$9 sm:$0xff] %v919
  %1190 = vst [vmem:[%s928] ss:$9 sm:$0xff] %v920
  %1192 = vst [vmem:[%s931] ss:$9 sm:$0xff] %v921
  %1194 = vst [vmem:[%s934] ss:$9 sm:$0xff] %v922
  %1196 = vst [vmem:[%s937] ss:$9 sm:$0xff] %v923
  %1198 = vst [vmem:[%s940] ss:$9 sm:$0xff] %v924
  %v1199 = vld [vmem:[#allocation1] sm:$0xff]
  %v1213 = vunpack.c.l.b16 %v786
  %v1214 = vunpack.c.h.b16 %v786
  %v1215 = vunpack.c.l.b16 %v787
  %v1216 = vunpack.c.h.b16 %v787
  %v1217 = vunpack.c.l.b16 %v788
  %v1218 = vunpack.c.h.b16 %v788
  %v1219 = vunpack.c.l.b16 %v789
  %v1220 = vunpack.c.h.b16 %v789
  %v1221 = vunpack.c.l.b16 %v790
  %v1222 = vunpack.c.h.b16 %v790
  %v1223 = vunpack.c.l.b16 %v791
  %v1224 = vunpack.c.h.b16 %v791
  %v1225 = vunpack.c.l.b16 %v792
  %v1226 = vunpack.c.h.b16 %v792
  %v1227 = vunpack.c.l.b16 %v793
  %v1228 = vunpack.c.h.b16 %v793
  %v1229 = vunpack.c.l.b16 %v794
  %v1230 = vunpack.c.h.b16 %v794
  %v1231 = vunpack.c.l.b16 %v795
  %v1232 = vunpack.c.h.b16 %v795
  %v1233 = vunpack.c.l.b16 %v796
  %v1234 = vunpack.c.h.b16 %v796
  %v1235 = vunpack.c.l.b16 %v797
  %v1236 = vunpack.c.h.b16 %v797
  %v1237 = vunpack.c.l.b16 %v798
  %v1238 = vunpack.c.h.b16 %v798
  %v1239 = vpack.c.b16 %v1215, %v1213
  %v1240 = vpack.c.b16 %v1216, %v1214
  %v1241 = vpack.c.b16 %v1219, %v1217
  %v1242 = vpack.c.b16 %v1220, %v1218
  %v1243 = vpack.c.b16 %v1223, %v1221
  %v1244 = vpack.c.b16 %v1224, %v1222
  %v1245 = vpack.c.b16 %v1227, %v1225
  %v1246 = vpack.c.b16 %v1228, %v1226
  %v1247 = vpack.c.b16 %v1231, %v1229
  %v1248 = vpack.c.b16 %v1232, %v1230
  %v1249 = vpack.c.b16 %v1235, %v1233
  %v1250 = vpack.c.b16 %v1236, %v1234
  %v1251 = vpack.c.b16 %v1237, %v1237
  %v1252 = vpack.c.b16 %v1238, %v1238
  %vm1265 = vcmask 818176
  %v1266 = vsel %vm1265, %v948, 0
  %v1268 = vsel %vm1265, %v965, 0
  %v1270 = vsel %vm1265, %v982, 0
  %v1272 = vsel %vm1265, %v999, 0
  %v1274 = vsel %vm1265, %v1016, 0
  %v1276 = vsel %vm1265, %v1033, 0
  %v1278 = vsel %vm1265, %v1050, 0
  %v1280 = vsel %vm1265, %v1067, 0
  %v1282 = vsel %vm1265, %v1084, 0
  %v1284 = vsel %vm1265, %v1101, 0
  %v1286 = vsel %vm1265, %v1118, 0
  %v1288 = vsel %vm1265, %v1135, 0
  %v1290 = vsel %vm1265, %v1152, 0
  %v1292 = vsel %vm1265, %v1169, 0
  %v1294 = vsel %vm1265, %v1186, 0
  %v1296 = vsel %vm1265, %v1199, 0
  %vm1298 = vcmask 1041408
  %v1300 = vsel %vm1298, %v1251, 0
  %v1303 = vsel %vm1298, %v1252, 0
  %1305 = vmatpush.bf16.msra.mxu0 0
  %1306 = vmatpush.bf16.msra.mxu0 %v1300
  %1307 = vmatpush.bf16.msra.mxu0 %v1249
  %1308 = vmatpush.bf16.msra.mxu0 %v1247
  %1309 = vmatpush.bf16.msra.mxu0 %v1245
  %1310 = vmatpush.bf16.msra.mxu0 %v1243
  %1311 = vmatpush.bf16.msra.mxu0 %v1241
  %1312 = vmatpush.bf16.msra.mxu0 %v1239
  %1313 = vmatmul.bf16.gmra.mxu0 %v1266
  %v1314 = vpop.f32.mrf.mxu0
  %v1315 = vadd.f32 0.0, %v1314
  %v1316 = vpop.f32.mrf.mxu0
  %v1317 = vadd.f32 0.0, %v1316
  %1318 = vmatmul.bf16.gmra.mxu0 %v1268
  %v1319 = vpop.f32.mrf.mxu0
  %v1320 = vadd.f32 0.0, %v1319
  %v1321 = vpop.f32.mrf.mxu0
  %v1322 = vadd.f32 0.0, %v1321
  %1323 = vmatmul.bf16.gmra.mxu0 %v1270
  %v1324 = vpop.f32.mrf.mxu0
  %v1325 = vadd.f32 0.0, %v1324
  %v1326 = vpop.f32.mrf.mxu0
  %v1327 = vadd.f32 0.0, %v1326
  %1328 = vmatmul.bf16.gmra.mxu0 %v1272
  %v1329 = vpop.f32.mrf.mxu0
  %v1330 = vadd.f32 0.0, %v1329
  %v1331 = vpop.f32.mrf.mxu0
  %v1332 = vadd.f32 0.0, %v1331
  %1333 = vmatmul.bf16.gmra.mxu0 %v1274
  %v1334 = vpop.f32.mrf.mxu0
  %v1335 = vadd.f32 0.0, %v1334
  %v1336 = vpop.f32.mrf.mxu0
  %v1337 = vadd.f32 0.0, %v1336
  %1338 = vmatmul.bf16.gmra.mxu0 %v1276
  %v1339 = vpop.f32.mrf.mxu0
  %v1340 = vadd.f32 0.0, %v1339
  %v1341 = vpop.f32.mrf.mxu0
  %v1342 = vadd.f32 0.0, %v1341
  %1343 = vmatmul.bf16.gmra.mxu0 %v1278
  %v1344 = vpop.f32.mrf.mxu0
  %v1345 = vadd.f32 0.0, %v1344
  %v1346 = vpop.f32.mrf.mxu0
  %v1347 = vadd.f32 0.0, %v1346
  %1348 = vmatmul.bf16.gmra.mxu0 %v1280
  %v1349 = vpop.f32.mrf.mxu0
  %v1350 = vadd.f32 0.0, %v1349
  %v1351 = vpop.f32.mrf.mxu0
  %v1352 = vadd.f32 0.0, %v1351
  %1353 = vmatmul.bf16.gmra.mxu0 %v1282
  %v1354 = vpop.f32.mrf.mxu0
  %v1355 = vadd.f32 0.0, %v1354
  %v1356 = vpop.f32.mrf.mxu0
  %v1357 = vadd.f32 0.0, %v1356
  %1358 = vmatmul.bf16.gmra.mxu0 %v1284
  %v1359 = vpop.f32.mrf.mxu0
  %v1360 = vadd.f32 0.0, %v1359
  %v1361 = vpop.f32.mrf.mxu0
  %v1362 = vadd.f32 0.0, %v1361
  %1363 = vmatmul.bf16.gmra.mxu0 %v1286
  %v1364 = vpop.f32.mrf.mxu0
  %v1365 = vadd.f32 0.0, %v1364
  %v1366 = vpop.f32.mrf.mxu0
  %v1367 = vadd.f32 0.0, %v1366
  %1368 = vmatmul.bf16.gmra.mxu0 %v1288
  %v1369 = vpop.f32.mrf.mxu0
  %v1370 = vadd.f32 0.0, %v1369
  %v1371 = vpop.f32.mrf.mxu0
  %v1372 = vadd.f32 0.0, %v1371
  %1373 = vmatmul.bf16.gmra.mxu0 %v1290
  %v1374 = vpop.f32.mrf.mxu0
  %v1375 = vadd.f32 0.0, %v1374
  %v1376 = vpop.f32.mrf.mxu0
  %v1377 = vadd.f32 0.0, %v1376
  %1378 = vmatmul.bf16.gmra.mxu0 %v1292
  %v1379 = vpop.f32.mrf.mxu0
  %v1380 = vadd.f32 0.0, %v1379
  %v1381 = vpop.f32.mrf.mxu0
  %v1382 = vadd.f32 0.0, %v1381
  %1383 = vmatmul.bf16.gmra.mxu0 %v1294
  %v1384 = vpop.f32.mrf.mxu0
  %v1385 = vadd.f32 0.0, %v1384
  %v1386 = vpop.f32.mrf.mxu0
  %v1387 = vadd.f32 0.0, %v1386
  %1388 = vmatmul.bf16.gmra.mxu0 %v1296
  %v1389 = vpop.f32.mrf.mxu0
  %v1390 = vadd.f32 0.0, %v1389
  %v1391 = vpop.f32.mrf.mxu0
  %v1392 = vadd.f32 0.0, %v1391
  %1393 = vdwg.mxu0
  %1394 = vmatpush.bf16.msra.mxu0 0
  %1395 = vmatpush.bf16.msra.mxu0 %v1303
  %1396 = vmatpush.bf16.msra.mxu0 %v1250
  %1397 = vmatpush.bf16.msra.mxu0 %v1248
  %1398 = vmatpush.bf16.msra.mxu0 %v1246
  %1399 = vmatpush.bf16.msra.mxu0 %v1244
  %1400 = vmatpush.bf16.msra.mxu0 %v1242
  %1401 = vmatpush.bf16.msra.mxu0 %v1240
  %1402 = vmatmul.bf16.gmra.mxu0 %v1266
  %v1403 = vpop.f32.mrf.mxu0
  %v1404 = vadd.f32 0.0, %v1403
  %v1405 = vpop.f32.mrf.mxu0
  %v1406 = vadd.f32 0.0, %v1405
  %1407 = vmatmul.bf16.gmra.mxu0 %v1268
  %v1408 = vpop.f32.mrf.mxu0
  %v1409 = vadd.f32 0.0, %v1408
  %v1410 = vpop.f32.mrf.mxu0
  %v1411 = vadd.f32 0.0, %v1410
  %1412 = vmatmul.bf16.gmra.mxu0 %v1270
  %v1413 = vpop.f32.mrf.mxu0
  %v1414 = vadd.f32 0.0, %v1413
  %v1415 = vpop.f32.mrf.mxu0
  %v1416 = vadd.f32 0.0, %v1415
  %1417 = vmatmul.bf16.gmra.mxu0 %v1272
  %v1418 = vpop.f32.mrf.mxu0
  %v1419 = vadd.f32 0.0, %v1418
  %v1420 = vpop.f32.mrf.mxu0
  %v1421 = vadd.f32 0.0, %v1420
  %1422 = vmatmul.bf16.gmra.mxu0 %v1274
  %v1423 = vpop.f32.mrf.mxu0
  %v1424 = vadd.f32 0.0, %v1423
  %v1425 = vpop.f32.mrf.mxu0
  %v1426 = vadd.f32 0.0, %v1425
  %1427 = vmatmul.bf16.gmra.mxu0 %v1276
  %v1428 = vpop.f32.mrf.mxu0
  %v1429 = vadd.f32 0.0, %v1428
  %v1430 = vpop.f32.mrf.mxu0
  %v1431 = vadd.f32 0.0, %v1430
  %1432 = vmatmul.bf16.gmra.mxu0 %v1278
  %v1433 = vpop.f32.mrf.mxu0
  %v1434 = vadd.f32 0.0, %v1433
  %v1435 = vpop.f32.mrf.mxu0
  %v1436 = vadd.f32 0.0, %v1435
  %1437 = vmatmul.bf16.gmra.mxu0 %v1280
  %v1438 = vpop.f32.mrf.mxu0
  %v1439 = vadd.f32 0.0, %v1438
  %v1440 = vpop.f32.mrf.mxu0
  %v1441 = vadd.f32 0.0, %v1440
  %1442 = vmatmul.bf16.gmra.mxu0 %v1282
  %v1443 = vpop.f32.mrf.mxu0
  %v1444 = vadd.f32 0.0, %v1443
  %v1445 = vpop.f32.mrf.mxu0
  %v1446 = vadd.f32 0.0, %v1445
  %1447 = vmatmul.bf16.gmra.mxu0 %v1284
  %v1448 = vpop.f32.mrf.mxu0
  %v1449 = vadd.f32 0.0, %v1448
  %v1450 = vpop.f32.mrf.mxu0
  %v1451 = vadd.f32 0.0, %v1450
  %1452 = vmatmul.bf16.gmra.mxu0 %v1286
  %v1453 = vpop.f32.mrf.mxu0
  %v1454 = vadd.f32 0.0, %v1453
  %v1455 = vpop.f32.mrf.mxu0
  %v1456 = vadd.f32 0.0, %v1455
  %1457 = vmatmul.bf16.gmra.mxu0 %v1288
  %v1458 = vpop.f32.mrf.mxu0
  %v1459 = vadd.f32 0.0, %v1458
  %v1460 = vpop.f32.mrf.mxu0
  %v1461 = vadd.f32 0.0, %v1460
  %1462 = vmatmul.bf16.gmra.mxu0 %v1290
  %v1463 = vpop.f32.mrf.mxu0
  %v1464 = vadd.f32 0.0, %v1463
  %v1465 = vpop.f32.mrf.mxu0
  %v1466 = vadd.f32 0.0, %v1465
  %1467 = vmatmul.bf16.gmra.mxu0 %v1292
  %v1468 = vpop.f32.mrf.mxu0
  %v1469 = vadd.f32 0.0, %v1468
  %v1470 = vpop.f32.mrf.mxu0
  %v1471 = vadd.f32 0.0, %v1470
  %1472 = vmatmul.bf16.gmra.mxu0 %v1294
  %v1473 = vpop.f32.mrf.mxu0
  %v1474 = vadd.f32 0.0, %v1473
  %v1475 = vpop.f32.mrf.mxu0
  %v1476 = vadd.f32 0.0, %v1475
  %1477 = vmatmul.bf16.gmra.mxu0 %v1296
  %v1478 = vpop.f32.mrf.mxu0
  %v1479 = vadd.f32 0.0, %v1478
  %v1480 = vpop.f32.mrf.mxu0
  %v1481 = vadd.f32 0.0, %v1480
  %1482 = vdwg.mxu0
  %v1483 = vld [vmem:[%s2] sm:$0x3]
  %v1485 = vperm.slane %v1483, 0
  %v1486 = vperm.slane %v1483, 1
  %v1489 = vmul.f32 %v1485, %v1315
  %v1490 = vmul.f32 %v1486, %v1404
  %v1491 = vmul.f32 %v1485, %v1317
  %v1492 = vmul.f32 %v1486, %v1406
  %v1493 = vmul.f32 %v1485, %v1320
  %v1494 = vmul.f32 %v1486, %v1409
  %v1495 = vmul.f32 %v1485, %v1322
  %v1496 = vmul.f32 %v1486, %v1411
  %v1497 = vmul.f32 %v1485, %v1325
  %v1498 = vmul.f32 %v1486, %v1414
  %v1499 = vmul.f32 %v1485, %v1327
  %v1500 = vmul.f32 %v1486, %v1416
  %v1501 = vmul.f32 %v1485, %v1330
  %v1502 = vmul.f32 %v1486, %v1419
  %v1503 = vmul.f32 %v1485, %v1332
  %v1504 = vmul.f32 %v1486, %v1421
  %v1505 = vmul.f32 %v1485, %v1335
  %v1506 = vmul.f32 %v1486, %v1424
  %v1507 = vmul.f32 %v1485, %v1337
  %v1508 = vmul.f32 %v1486, %v1426
  %v1509 = vmul.f32 %v1485, %v1340
  %v1510 = vmul.f32 %v1486, %v1429
  %v1511 = vmul.f32 %v1485, %v1342
  %v1512 = vmul.f32 %v1486, %v1431
  %v1513 = vmul.f32 %v1485, %v1345
  %v1514 = vmul.f32 %v1486, %v1434
  %v1515 = vmul.f32 %v1485, %v1347
  %v1516 = vmul.f32 %v1486, %v1436
  %v1517 = vmul.f32 %v1485, %v1350
  %v1518 = vmul.f32 %v1486, %v1439
  %v1519 = vmul.f32 %v1485, %v1352
  %v1520 = vmul.f32 %v1486, %v1441
  %v1521 = vmul.f32 %v1485, %v1355
  %v1522 = vmul.f32 %v1486, %v1444
  %v1523 = vmul.f32 %v1485, %v1357
  %v1524 = vmul.f32 %v1486, %v1446
  %v1525 = vmul.f32 %v1485, %v1360
  %v1526 = vmul.f32 %v1486, %v1449
  %v1527 = vmul.f32 %v1485, %v1362
  %v1528 = vmul.f32 %v1486, %v1451
  %v1529 = vmul.f32 %v1485, %v1365
  %v1530 = vmul.f32 %v1486, %v1454
  %v1531 = vmul.f32 %v1485, %v1367
  %v1532 = vmul.f32 %v1486, %v1456
  %v1533 = vmul.f32 %v1485, %v1370
  %v1534 = vmul.f32 %v1486, %v1459
  %v1535 = vmul.f32 %v1485, %v1372
  %v1536 = vmul.f32 %v1486, %v1461
  %v1537 = vmul.f32 %v1485, %v1375
  %v1538 = vmul.f32 %v1486, %v1464
  %v1539 = vmul.f32 %v1485, %v1377
  %v1540 = vmul.f32 %v1486, %v1466
  %v1541 = vmul.f32 %v1485, %v1380
  %v1542 = vmul.f32 %v1486, %v1469
  %v1543 = vmul.f32 %v1485, %v1382
  %v1544 = vmul.f32 %v1486, %v1471
  %v1545 = vmul.f32 %v1485, %v1385
  %v1546 = vmul.f32 %v1486, %v1474
  %v1547 = vmul.f32 %v1485, %v1387
  %v1548 = vmul.f32 %v1486, %v1476
  %v1549 = vmul.f32 %v1485, %v1390
  %v1550 = vmul.f32 %v1486, %v1479
  %v1551 = vmul.f32 %v1485, %v1392
  %v1552 = vmul.f32 %v1486, %v1481
  %v1553 = vld [vmem:[%s3] sm:$0x3]
  %v1555 = vperm.slane %v1553, 0
  %v1556 = vperm.slane %v1553, 1
  %v1559 = vadd.f32 %v1489, %v1555
  %v1560 = vadd.f32 %v1490, %v1556
  %v1561 = vadd.f32 %v1491, %v1555
  %v1562 = vadd.f32 %v1492, %v1556
  %v1563 = vadd.f32 %v1493, %v1555
  %v1564 = vadd.f32 %v1494, %v1556
  %v1565 = vadd.f32 %v1495, %v1555
  %v1566 = vadd.f32 %v1496, %v1556
  %v1567 = vadd.f32 %v1497, %v1555
  %v1568 = vadd.f32 %v1498, %v1556
  %v1569 = vadd.f32 %v1499, %v1555
  %v1570 = vadd.f32 %v1500, %v1556
  %v1571 = vadd.f32 %v1501, %v1555
  %v1572 = vadd.f32 %v1502, %v1556
  %v1573 = vadd.f32 %v1503, %v1555
  %v1574 = vadd.f32 %v1504, %v1556
  %v1575 = vadd.f32 %v1505, %v1555
  %v1576 = vadd.f32 %v1506, %v1556
  %v1577 = vadd.f32 %v1507, %v1555
  %v1578 = vadd.f32 %v1508, %v1556
  %v1579 = vadd.f32 %v1509, %v1555
  %v1580 = vadd.f32 %v1510, %v1556
  %v1581 = vadd.f32 %v1511, %v1555
  %v1582 = vadd.f32 %v1512, %v1556
  %v1583 = vadd.f32 %v1513, %v1555
  %v1584 = vadd.f32 %v1514, %v1556
  %v1585 = vadd.f32 %v1515, %v1555
  %v1586 = vadd.f32 %v1516, %v1556
  %v1587 = vadd.f32 %v1517, %v1555
  %v1588 = vadd.f32 %v1518, %v1556
  %v1589 = vadd.f32 %v1519, %v1555
  %v1590 = vadd.f32 %v1520, %v1556
  %v1591 = vadd.f32 %v1521, %v1555
  %v1592 = vadd.f32 %v1522, %v1556
  %v1593 = vadd.f32 %v1523, %v1555
  %v1594 = vadd.f32 %v1524, %v1556
  %v1595 = vadd.f32 %v1525, %v1555
  %v1596 = vadd.f32 %v1526, %v1556
  %v1597 = vadd.f32 %v1527, %v1555
  %v1598 = vadd.f32 %v1528, %v1556
  %v1599 = vadd.f32 %v1529, %v1555
  %v1600 = vadd.f32 %v1530, %v1556
  %v1601 = vadd.f32 %v1531, %v1555
  %v1602 = vadd.f32 %v1532, %v1556
  %v1603 = vadd.f32 %v1533, %v1555
  %v1604 = vadd.f32 %v1534, %v1556
  %v1605 = vadd.f32 %v1535, %v1555
  %v1606 = vadd.f32 %v1536, %v1556
  %v1607 = vadd.f32 %v1537, %v1555
  %v1608 = vadd.f32 %v1538, %v1556
  %v1609 = vadd.f32 %v1539, %v1555
  %v1610 = vadd.f32 %v1540, %v1556
  %v1611 = vadd.f32 %v1541, %v1555
  %v1612 = vadd.f32 %v1542, %v1556
  %v1613 = vadd.f32 %v1543, %v1555
  %v1614 = vadd.f32 %v1544, %v1556
  %v1615 = vadd.f32 %v1545, %v1555
  %v1616 = vadd.f32 %v1546, %v1556
  %v1617 = vadd.f32 %v1547, %v1555
  %v1618 = vadd.f32 %v1548, %v1556
  %v1619 = vadd.f32 %v1549, %v1555
  %v1620 = vadd.f32 %v1550, %v1556
  %v1621 = vadd.f32 %v1551, %v1555
  %v1622 = vadd.f32 %v1552, %v1556
  %vm1623 = vcmp.gt.f32.partialorder %v1559, 0.0
  %vm1624 = vcmp.gt.f32.partialorder %v1560, 0.0
  %vm1625 = vcmp.gt.f32.partialorder %v1561, 0.0
  %vm1626 = vcmp.gt.f32.partialorder %v1562, 0.0
  %vm1627 = vcmp.gt.f32.partialorder %v1563, 0.0
  %vm1628 = vcmp.gt.f32.partialorder %v1564, 0.0
  %vm1629 = vcmp.gt.f32.partialorder %v1565, 0.0
  %vm1630 = vcmp.gt.f32.partialorder %v1566, 0.0
  %vm1631 = vcmp.gt.f32.partialorder %v1567, 0.0
  %vm1632 = vcmp.gt.f32.partialorder %v1568, 0.0
  %vm1633 = vcmp.gt.f32.partialorder %v1569, 0.0
  %vm1634 = vcmp.gt.f32.partialorder %v1570, 0.0
  %vm1635 = vcmp.gt.f32.partialorder %v1571, 0.0
  %vm1636 = vcmp.gt.f32.partialorder %v1572, 0.0
  %vm1637 = vcmp.gt.f32.partialorder %v1573, 0.0
  %vm1638 = vcmp.gt.f32.partialorder %v1574, 0.0
  %vm1639 = vcmp.gt.f32.partialorder %v1575, 0.0
  %vm1640 = vcmp.gt.f32.partialorder %v1576, 0.0
  %vm1641 = vcmp.gt.f32.partialorder %v1577, 0.0
  %vm1642 = vcmp.gt.f32.partialorder %v1578, 0.0
  %vm1643 = vcmp.gt.f32.partialorder %v1579, 0.0
  %vm1644 = vcmp.gt.f32.partialorder %v1580, 0.0
  %vm1645 = vcmp.gt.f32.partialorder %v1581, 0.0
  %vm1646 = vcmp.gt.f32.partialorder %v1582, 0.0
  %vm1647 = vcmp.gt.f32.partialorder %v1583, 0.0
  %vm1648 = vcmp.gt.f32.partialorder %v1584, 0.0
  %vm1649 = vcmp.gt.f32.partialorder %v1585, 0.0
  %vm1650 = vcmp.gt.f32.partialorder %v1586, 0.0
  %vm1651 = vcmp.gt.f32.partialorder %v1587, 0.0
  %vm1652 = vcmp.gt.f32.partialorder %v1588, 0.0
  %vm1653 = vcmp.gt.f32.partialorder %v1589, 0.0
  %vm1654 = vcmp.gt.f32.partialorder %v1590, 0.0
  %vm1655 = vcmp.gt.f32.partialorder %v1591, 0.0
  %vm1656 = vcmp.gt.f32.partialorder %v1592, 0.0
  %vm1657 = vcmp.gt.f32.partialorder %v1593, 0.0
  %vm1658 = vcmp.gt.f32.partialorder %v1594, 0.0
  %vm1659 = vcmp.gt.f32.partialorder %v1595, 0.0
  %vm1660 = vcmp.gt.f32.partialorder %v1596, 0.0
  %vm1661 = vcmp.gt.f32.partialorder %v1597, 0.0
  %vm1662 = vcmp.gt.f32.partialorder %v1598, 0.0
  %vm1663 = vcmp.gt.f32.partialorder %v1599, 0.0
  %vm1664 = vcmp.gt.f32.partialorder %v1600, 0.0
  %vm1665 = vcmp.gt.f32.partialorder %v1601, 0.0
  %vm1666 = vcmp.gt.f32.partialorder %v1602, 0.0
  %vm1667 = vcmp.gt.f32.partialorder %v1603, 0.0
  %vm1668 = vcmp.gt.f32.partialorder %v1604, 0.0
  %vm1669 = vcmp.gt.f32.partialorder %v1605, 0.0
  %vm1670 = vcmp.gt.f32.partialorder %v1606, 0.0
  %vm1671 = vcmp.gt.f32.partialorder %v1607, 0.0
  %vm1672 = vcmp.gt.f32.partialorder %v1608, 0.0
  %vm1673 = vcmp.gt.f32.partialorder %v1609, 0.0
  %vm1674 = vcmp.gt.f32.partialorder %v1610, 0.0
  %vm1675 = vcmp.gt.f32.partialorder %v1611, 0.0
  %vm1676 = vcmp.gt.f32.partialorder %v1612, 0.0
  %vm1677 = vcmp.gt.f32.partialorder %v1613, 0.0
  %vm1678 = vcmp.gt.f32.partialorder %v1614, 0.0
  %vm1679 = vcmp.gt.f32.partialorder %v1615, 0.0
  %vm1680 = vcmp.gt.f32.partialorder %v1616, 0.0
  %vm1681 = vcmp.gt.f32.partialorder %v1617, 0.0
  %vm1682 = vcmp.gt.f32.partialorder %v1618, 0.0
  %vm1683 = vcmp.gt.f32.partialorder %v1619, 0.0
  %vm1684 = vcmp.gt.f32.partialorder %v1620, 0.0
  %vm1685 = vcmp.gt.f32.partialorder %v1621, 0.0
  %vm1686 = vcmp.gt.f32.partialorder %v1622, 0.0
  %v1687 = vmin.f32 %v1559, 0.0
  %v1688 = vmin.f32 %v1560, 0.0
  %v1689 = vmin.f32 %v1561, 0.0
  %v1690 = vmin.f32 %v1562, 0.0
  %v1691 = vmin.f32 %v1563, 0.0
  %v1692 = vmin.f32 %v1564, 0.0
  %v1693 = vmin.f32 %v1565, 0.0
  %v1694 = vmin.f32 %v1566, 0.0
  %v1695 = vmin.f32 %v1567, 0.0
  %v1696 = vmin.f32 %v1568, 0.0
  %v1697 = vmin.f32 %v1569, 0.0
  %v1698 = vmin.f32 %v1570, 0.0
  %v1699 = vmin.f32 %v1571, 0.0
  %v1700 = vmin.f32 %v1572, 0.0
  %v1701 = vmin.f32 %v1573, 0.0
  %v1702 = vmin.f32 %v1574, 0.0
  %v1703 = vmin.f32 %v1575, 0.0
  %v1704 = vmin.f32 %v1576, 0.0
  %v1705 = vmin.f32 %v1577, 0.0
  %v1706 = vmin.f32 %v1578, 0.0
  %v1707 = vmin.f32 %v1579, 0.0
  %v1708 = vmin.f32 %v1580, 0.0
  %v1709 = vmin.f32 %v1581, 0.0
  %v1710 = vmin.f32 %v1582, 0.0
  %v1711 = vmin.f32 %v1583, 0.0
  %v1712 = vmin.f32 %v1584, 0.0
  %v1713 = vmin.f32 %v1585, 0.0
  %v1714 = vmin.f32 %v1586, 0.0
  %v1715 = vmin.f32 %v1587, 0.0
  %v1716 = vmin.f32 %v1588, 0.0
  %v1717 = vmin.f32 %v1589, 0.0
  %v1718 = vmin.f32 %v1590, 0.0
  %v1719 = vmin.f32 %v1591, 0.0
  %v1720 = vmin.f32 %v1592, 0.0
  %v1721 = vmin.f32 %v1593, 0.0
  %v1722 = vmin.f32 %v1594, 0.0
  %v1723 = vmin.f32 %v1595, 0.0
  %v1724 = vmin.f32 %v1596, 0.0
  %v1725 = vmin.f32 %v1597, 0.0
  %v1726 = vmin.f32 %v1598, 0.0
  %v1727 = vmin.f32 %v1599, 0.0
  %v1728 = vmin.f32 %v1600, 0.0
  %v1729 = vmin.f32 %v1601, 0.0
  %v1730 = vmin.f32 %v1602, 0.0
  %v1731 = vmin.f32 %v1603, 0.0
  %v1732 = vmin.f32 %v1604, 0.0
  %v1733 = vmin.f32 %v1605, 0.0
  %v1734 = vmin.f32 %v1606, 0.0
  %v1735 = vmin.f32 %v1607, 0.0
  %v1736 = vmin.f32 %v1608, 0.0
  %v1737 = vmin.f32 %v1609, 0.0
  %v1738 = vmin.f32 %v1610, 0.0
  %v1739 = vmin.f32 %v1611, 0.0
  %v1740 = vmin.f32 %v1612, 0.0
  %v1741 = vmin.f32 %v1613, 0.0
  %v1742 = vmin.f32 %v1614, 0.0
  %v1743 = vmin.f32 %v1615, 0.0
  %v1744 = vmin.f32 %v1616, 0.0
  %v1745 = vmin.f32 %v1617, 0.0
  %v1746 = vmin.f32 %v1618, 0.0
  %v1747 = vmin.f32 %v1619, 0.0
  %v1748 = vmin.f32 %v1620, 0.0
  %v1749 = vmin.f32 %v1621, 0.0
  %v1750 = vmin.f32 %v1622, 0.0
  %v1751 = vmul.f32 %v1687, 1.442695
  %v1752 = vpow.pop %v1751
  %v1753 = vmul.f32 %v1688, 1.442695
  %v1754 = vpow.pop %v1753
  %v1755 = vmul.f32 %v1689, 1.442695
  %v1756 = vpow.pop %v1755
  %v1757 = vmul.f32 %v1690, 1.442695
  %v1758 = vpow.pop %v1757
  %v1759 = vmul.f32 %v1691, 1.442695
  %v1760 = vpow.pop %v1759
  %v1761 = vmul.f32 %v1692, 1.442695
  %v1762 = vpow.pop %v1761
  %v1763 = vmul.f32 %v1693, 1.442695
  %v1764 = vpow.pop %v1763
  %v1765 = vmul.f32 %v1694, 1.442695
  %v1766 = vpow.pop %v1765
  %v1767 = vmul.f32 %v1695, 1.442695
  %v1768 = vpow.pop %v1767
  %v1769 = vmul.f32 %v1696, 1.442695
  %v1770 = vpow.pop %v1769
  %v1771 = vmul.f32 %v1697, 1.442695
  %v1772 = vpow.pop %v1771
  %v1773 = vmul.f32 %v1698, 1.442695
  %v1774 = vpow.pop %v1773
  %v1775 = vmul.f32 %v1699, 1.442695
  %v1776 = vpow.pop %v1775
  %v1777 = vmul.f32 %v1700, 1.442695
  %v1778 = vpow.pop %v1777
  %v1779 = vmul.f32 %v1701, 1.442695
  %v1780 = vpow.pop %v1779
  %v1781 = vmul.f32 %v1702, 1.442695
  %v1782 = vpow.pop %v1781
  %v1783 = vmul.f32 %v1703, 1.442695
  %v1784 = vpow.pop %v1783
  %v1785 = vmul.f32 %v1704, 1.442695
  %v1786 = vpow.pop %v1785
  %v1787 = vmul.f32 %v1705, 1.442695
  %v1788 = vpow.pop %v1787
  %v1789 = vmul.f32 %v1706, 1.442695
  %v1790 = vpow.pop %v1789
  %v1791 = vmul.f32 %v1707, 1.442695
  %v1792 = vpow.pop %v1791
  %v1793 = vmul.f32 %v1708, 1.442695
  %v1794 = vpow.pop %v1793
  %v1795 = vmul.f32 %v1709, 1.442695
  %v1796 = vpow.pop %v1795
  %v1797 = vmul.f32 %v1710, 1.442695
  %v1798 = vpow.pop %v1797
  %v1799 = vmul.f32 %v1711, 1.442695
  %v1800 = vpow.pop %v1799
  %v1801 = vmul.f32 %v1712, 1.442695
  %v1802 = vpow.pop %v1801
  %v1803 = vmul.f32 %v1713, 1.442695
  %v1804 = vpow.pop %v1803
  %v1805 = vmul.f32 %v1714, 1.442695
  %v1806 = vpow.pop %v1805
  %v1807 = vmul.f32 %v1715, 1.442695
  %v1808 = vpow.pop %v1807
  %v1809 = vmul.f32 %v1716, 1.442695
  %v1810 = vpow.pop %v1809
  %v1811 = vmul.f32 %v1717, 1.442695
  %v1812 = vpow.pop %v1811
  %v1813 = vmul.f32 %v1718, 1.442695
  %v1814 = vpow.pop %v1813
  %v1815 = vmul.f32 %v1719, 1.442695
  %v1816 = vpow.pop %v1815
  %v1817 = vmul.f32 %v1720, 1.442695
  %v1818 = vpow.pop %v1817
  %v1819 = vmul.f32 %v1721, 1.442695
  %v1820 = vpow.pop %v1819
  %v1821 = vmul.f32 %v1722, 1.442695
  %v1822 = vpow.pop %v1821
  %v1823 = vmul.f32 %v1723, 1.442695
  %v1824 = vpow.pop %v1823
  %v1825 = vmul.f32 %v1724, 1.442695
  %v1826 = vpow.pop %v1825
  %v1827 = vmul.f32 %v1725, 1.442695
  %v1828 = vpow.pop %v1827
  %v1829 = vmul.f32 %v1726, 1.442695
  %v1830 = vpow.pop %v1829
  %v1831 = vmul.f32 %v1727, 1.442695
  %v1832 = vpow.pop %v1831
  %v1833 = vmul.f32 %v1728, 1.442695
  %v1834 = vpow.pop %v1833
  %v1835 = vmul.f32 %v1729, 1.442695
  %v1836 = vpow.pop %v1835
  %v1837 = vmul.f32 %v1730, 1.442695
  %v1838 = vpow.pop %v1837
  %v1839 = vmul.f32 %v1731, 1.442695
  %v1840 = vpow.pop %v1839
  %v1841 = vmul.f32 %v1732, 1.442695
  %v1842 = vpow.pop %v1841
  %v1843 = vmul.f32 %v1733, 1.442695
  %v1844 = vpow.pop %v1843
  %v1845 = vmul.f32 %v1734, 1.442695
  %v1846 = vpow.pop %v1845
  %v1847 = vmul.f32 %v1735, 1.442695
  %v1848 = vpow.pop %v1847
  %v1849 = vmul.f32 %v1736, 1.442695
  %v1850 = vpow.pop %v1849
  %v1851 = vmul.f32 %v1737, 1.442695
  %v1852 = vpow.pop %v1851
  %v1853 = vmul.f32 %v1738, 1.442695
  %v1854 = vpow.pop %v1853
  %v1855 = vmul.f32 %v1739, 1.442695
  %v1856 = vpow.pop %v1855
  %v1857 = vmul.f32 %v1740, 1.442695
  %v1858 = vpow.pop %v1857
  %v1859 = vmul.f32 %v1741, 1.442695
  %v1860 = vpow.pop %v1859
  %v1861 = vmul.f32 %v1742, 1.442695
  %v1862 = vpow.pop %v1861
  %v1863 = vmul.f32 %v1743, 1.442695
  %v1864 = vpow.pop %v1863
  %v1865 = vmul.f32 %v1744, 1.442695
  %v1866 = vpow.pop %v1865
  %v1867 = vmul.f32 %v1745, 1.442695
  %v1868 = vpow.pop %v1867
  %v1869 = vmul.f32 %v1746, 1.442695
  %v1870 = vpow.pop %v1869
  %v1871 = vmul.f32 %v1747, 1.442695
  %v1872 = vpow.pop %v1871
  %v1873 = vmul.f32 %v1748, 1.442695
  %v1874 = vpow.pop %v1873
  %v1875 = vmul.f32 %v1749, 1.442695
  %v1876 = vpow.pop %v1875
  %v1877 = vmul.f32 %v1750, 1.442695
  %v1878 = vpow.pop %v1877
  %v1879 = vsub.f32 %v1752, 1.0
  %v1880 = vsub.f32 %v1754, 1.0
  %v1881 = vsub.f32 %v1756, 1.0
  %v1882 = vsub.f32 %v1758, 1.0
  %v1883 = vsub.f32 %v1760, 1.0
  %v1884 = vsub.f32 %v1762, 1.0
  %v1885 = vsub.f32 %v1764, 1.0
  %v1886 = vsub.f32 %v1766, 1.0
  %v1887 = vsub.f32 %v1768, 1.0
  %v1888 = vsub.f32 %v1770, 1.0
  %v1889 = vsub.f32 %v1772, 1.0
  %v1890 = vsub.f32 %v1774, 1.0
  %v1891 = vsub.f32 %v1776, 1.0
  %v1892 = vsub.f32 %v1778, 1.0
  %v1893 = vsub.f32 %v1780, 1.0
  %v1894 = vsub.f32 %v1782, 1.0
  %v1895 = vsub.f32 %v1784, 1.0
  %v1896 = vsub.f32 %v1786, 1.0
  %v1897 = vsub.f32 %v1788, 1.0
  %v1898 = vsub.f32 %v1790, 1.0
  %v1899 = vsub.f32 %v1792, 1.0
  %v1900 = vsub.f32 %v1794, 1.0
  %v1901 = vsub.f32 %v1796, 1.0
  %v1902 = vsub.f32 %v1798, 1.0
  %v1903 = vsub.f32 %v1800, 1.0
  %v1904 = vsub.f32 %v1802, 1.0
  %v1905 = vsub.f32 %v1804, 1.0
  %v1906 = vsub.f32 %v1806, 1.0
  %v1907 = vsub.f32 %v1808, 1.0
  %v1908 = vsub.f32 %v1810, 1.0
  %v1909 = vsub.f32 %v1812, 1.0
  %v1910 = vsub.f32 %v1814, 1.0
  %v1911 = vsub.f32 %v1816, 1.0
  %v1912 = vsub.f32 %v1818, 1.0
  %v1913 = vsub.f32 %v1820, 1.0
  %v1914 = vsub.f32 %v1822, 1.0
  %v1915 = vsub.f32 %v1824, 1.0
  %v1916 = vsub.f32 %v1826, 1.0
  %v1917 = vsub.f32 %v1828, 1.0
  %v1918 = vsub.f32 %v1830, 1.0
  %v1919 = vsub.f32 %v1832, 1.0
  %v1920 = vsub.f32 %v1834, 1.0
  %v1921 = vsub.f32 %v1836, 1.0
  %v1922 = vsub.f32 %v1838, 1.0
  %v1923 = vsub.f32 %v1840, 1.0
  %v1924 = vsub.f32 %v1842, 1.0
  %v1925 = vsub.f32 %v1844, 1.0
  %v1926 = vsub.f32 %v1846, 1.0
  %v1927 = vsub.f32 %v1848, 1.0
  %v1928 = vsub.f32 %v1850, 1.0
  %v1929 = vsub.f32 %v1852, 1.0
  %v1930 = vsub.f32 %v1854, 1.0
  %v1931 = vsub.f32 %v1856, 1.0
  %v1932 = vsub.f32 %v1858, 1.0
  %v1933 = vsub.f32 %v1860, 1.0
  %v1934 = vsub.f32 %v1862, 1.0
  %v1935 = vsub.f32 %v1864, 1.0
  %v1936 = vsub.f32 %v1866, 1.0
  %v1937 = vsub.f32 %v1868, 1.0
  %v1938 = vsub.f32 %v1870, 1.0
  %v1939 = vsub.f32 %v1872, 1.0
  %v1940 = vsub.f32 %v1874, 1.0
  %v1941 = vsub.f32 %v1876, 1.0
  %v1942 = vsub.f32 %v1878, 1.0
  %v1943 = vsel %vm1623, %v1559, %v1879
  %v1944 = vsel %vm1624, %v1560, %v1880
  %v1945 = vsel %vm1625, %v1561, %v1881
  %v1946 = vsel %vm1626, %v1562, %v1882
  %v1947 = vsel %vm1627, %v1563, %v1883
  %v1948 = vsel %vm1628, %v1564, %v1884
  %v1949 = vsel %vm1629, %v1565, %v1885
  %v1950 = vsel %vm1630, %v1566, %v1886
  %v1951 = vsel %vm1631, %v1567, %v1887
  %v1952 = vsel %vm1632, %v1568, %v1888
  %v1953 = vsel %vm1633, %v1569, %v1889
  %v1954 = vsel %vm1634, %v1570, %v1890
  %v1955 = vsel %vm1635, %v1571, %v1891
  %v1956 = vsel %vm1636, %v1572, %v1892
  %v1957 = vsel %vm1637, %v1573, %v1893
  %v1958 = vsel %vm1638, %v1574, %v1894
  %v1959 = vsel %vm1639, %v1575, %v1895
  %v1960 = vsel %vm1640, %v1576, %v1896
  %v1961 = vsel %vm1641, %v1577, %v1897
  %v1962 = vsel %vm1642, %v1578, %v1898
  %v1963 = vsel %vm1643, %v1579, %v1899
  %v1964 = vsel %vm1644, %v1580, %v1900
  %v1965 = vsel %vm1645, %v1581, %v1901
  %v1966 = vsel %vm1646, %v1582, %v1902
  %v1967 = vsel %vm1647, %v1583, %v1903
  %v1968 = vsel %vm1648, %v1584, %v1904
  %v1969 = vsel %vm1649, %v1585, %v1905
  %v1970 = vsel %vm1650, %v1586, %v1906
  %v1971 = vsel %vm1651, %v1587, %v1907
  %v1972 = vsel %vm1652, %v1588, %v1908
  %v1973 = vsel %vm1653, %v1589, %v1909
  %v1974 = vsel %vm1654, %v1590, %v1910
  %v1975 = vsel %vm1655, %v1591, %v1911
  %v1976 = vsel %vm1656, %v1592, %v1912
  %v1977 = vsel %vm1657, %v1593, %v1913
  %v1978 = vsel %vm1658, %v1594, %v1914
  %v1979 = vsel %vm1659, %v1595, %v1915
  %v1980 = vsel %vm1660, %v1596, %v1916
  %v1981 = vsel %vm1661, %v1597, %v1917
  %v1982 = vsel %vm1662, %v1598, %v1918
  %v1983 = vsel %vm1663, %v1599, %v1919
  %v1984 = vsel %vm1664, %v1600, %v1920
  %v1985 = vsel %vm1665, %v1601, %v1921
  %v1986 = vsel %vm1666, %v1602, %v1922
  %v1987 = vsel %vm1667, %v1603, %v1923
  %v1988 = vsel %vm1668, %v1604, %v1924
  %v1989 = vsel %vm1669, %v1605, %v1925
  %v1990 = vsel %vm1670, %v1606, %v1926
  %v1991 = vsel %vm1671, %v1607, %v1927
  %v1992 = vsel %vm1672, %v1608, %v1928
  %v1993 = vsel %vm1673, %v1609, %v1929
  %v1994 = vsel %vm1674, %v1610, %v1930
  %v1995 = vsel %vm1675, %v1611, %v1931
  %v1996 = vsel %vm1676, %v1612, %v1932
  %v1997 = vsel %vm1677, %v1613, %v1933
  %v1998 = vsel %vm1678, %v1614, %v1934
  %v1999 = vsel %vm1679, %v1615, %v1935
  %v2000 = vsel %vm1680, %v1616, %v1936
  %v2001 = vsel %vm1681, %v1617, %v1937
  %v2002 = vsel %vm1682, %v1618, %v1938
  %v2003 = vsel %vm1683, %v1619, %v1939
  %v2004 = vsel %vm1684, %v1620, %v1940
  %v2005 = vsel %vm1685, %v1621, %v1941
  %v2006 = vsel %vm1686, %v1622, %v1942
  %v2071 = vrot.slane %v1944, 7
  %v2072 = vrot.slane %v1946, 7
  %v2073 = vrot.slane %v1948, 7
  %v2074 = vrot.slane %v1950, 7
  %v2075 = vrot.slane %v1952, 7
  %v2076 = vrot.slane %v1954, 7
  %v2077 = vrot.slane %v1956, 7
  %v2078 = vrot.slane %v1958, 7
  %v2079 = vrot.slane %v1960, 7
  %v2080 = vrot.slane %v1962, 7
  %v2081 = vrot.slane %v1964, 7
  %v2082 = vrot.slane %v1966, 7
  %v2083 = vrot.slane %v1968, 7
  %v2084 = vrot.slane %v1970, 7
  %v2085 = vrot.slane %v1972, 7
  %v2086 = vrot.slane %v1974, 7
  %v2087 = vrot.slane %v1976, 7
  %v2088 = vrot.slane %v1978, 7
  %v2089 = vrot.slane %v1980, 7
  %v2090 = vrot.slane %v1982, 7
  %v2091 = vrot.slane %v1984, 7
  %v2092 = vrot.slane %v1986, 7
  %v2093 = vrot.slane %v1988, 7
  %v2094 = vrot.slane %v1990, 7
  %v2095 = vrot.slane %v1992, 7
  %v2096 = vrot.slane %v1994, 7
  %v2097 = vrot.slane %v1996, 7
  %v2098 = vrot.slane %v1998, 7
  %v2099 = vrot.slane %v2000, 7
  %v2100 = vrot.slane %v2002, 7
  %v2101 = vrot.slane %v2004, 7
  %v2102 = vrot.slane %v2006, 7
  %v2103 = vsel %vm114, %v1943, %v2071
  %v2104 = vsel %vm119, %v1943, %v2071
  %v2105 = vrot.slane %v2104, 1
  %v2106 = vsel %vm123, %v1943, %v2071
  %v2107 = vrot.slane %v2106, 2
  %v2108 = vsel %vm127, %v1943, %v2071
  %v2109 = vrot.slane %v2108, 3
  %vm2110 = vcmask 1044484
  %v2111 = vsel %vm2110, %v1943, %v2071
  %v2112 = vrot.slane %v2111, 4
  %vm2113 = vcmask 1045509
  %v2114 = vsel %vm2113, %v1943, %v2071
  %v2115 = vrot.slane %v2114, 5
  %vm2116 = vcmask 1046534
  %v2117 = vsel %vm2116, %v1943, %v2071
  %v2118 = vrot.slane %v2117, 6
  %vm2119 = vcmask 1046528
  %v2120 = vsel %vm2119, %v2071, %v1943
  %v2121 = vrot.slane %v2120, 7
  %v2122 = vsel %vm114, %v1945, %v2072
  %v2123 = vsel %vm119, %v1945, %v2072
  %v2124 = vrot.slane %v2123, 1
  %v2125 = vsel %vm123, %v1945, %v2072
  %v2126 = vrot.slane %v2125, 2
  %v2127 = vsel %vm127, %v1945, %v2072
  %v2128 = vrot.slane %v2127, 3
  %v2129 = vsel %vm2110, %v1945, %v2072
  %v2130 = vrot.slane %v2129, 4
  %v2131 = vsel %vm2113, %v1945, %v2072
  %v2132 = vrot.slane %v2131, 5
  %v2133 = vsel %vm2116, %v1945, %v2072
  %v2134 = vrot.slane %v2133, 6
  %v2135 = vsel %vm2119, %v2072, %v1945
  %v2136 = vrot.slane %v2135, 7
  %v2137 = vsel %vm114, %v1947, %v2073
  %v2138 = vsel %vm119, %v1947, %v2073
  %v2139 = vrot.slane %v2138, 1
  %v2140 = vsel %vm123, %v1947, %v2073
  %v2141 = vrot.slane %v2140, 2
  %v2142 = vsel %vm127, %v1947, %v2073
  %v2143 = vrot.slane %v2142, 3
  %v2144 = vsel %vm2110, %v1947, %v2073
  %v2145 = vrot.slane %v2144, 4
  %v2146 = vsel %vm2113, %v1947, %v2073
  %v2147 = vrot.slane %v2146, 5
  %v2148 = vsel %vm2116, %v1947, %v2073
  %v2149 = vrot.slane %v2148, 6
  %v2150 = vsel %vm2119, %v2073, %v1947
  %v2151 = vrot.slane %v2150, 7
  %v2152 = vsel %vm114, %v1949, %v2074
  %v2153 = vsel %vm119, %v1949, %v2074
  %v2154 = vrot.slane %v2153, 1
  %v2155 = vsel %vm123, %v1949, %v2074
  %v2156 = vrot.slane %v2155, 2
  %v2157 = vsel %vm127, %v1949, %v2074
  %v2158 = vrot.slane %v2157, 3
  %v2159 = vsel %vm2110, %v1949, %v2074
  %v2160 = vrot.slane %v2159, 4
  %v2161 = vsel %vm2113, %v1949, %v2074
  %v2162 = vrot.slane %v2161, 5
  %v2163 = vsel %vm2116, %v1949, %v2074
  %v2164 = vrot.slane %v2163, 6
  %v2165 = vsel %vm2119, %v2074, %v1949
  %v2166 = vrot.slane %v2165, 7
  %v2167 = vsel %vm114, %v1951, %v2075
  %v2168 = vsel %vm119, %v1951, %v2075
  %v2169 = vrot.slane %v2168, 1
  %v2170 = vsel %vm123, %v1951, %v2075
  %v2171 = vrot.slane %v2170, 2
  %v2172 = vsel %vm127, %v1951, %v2075
  %v2173 = vrot.slane %v2172, 3
  %v2174 = vsel %vm2110, %v1951, %v2075
  %v2175 = vrot.slane %v2174, 4
  %v2176 = vsel %vm2113, %v1951, %v2075
  %v2177 = vrot.slane %v2176, 5
  %v2178 = vsel %vm2116, %v1951, %v2075
  %v2179 = vrot.slane %v2178, 6
  %v2180 = vsel %vm2119, %v2075, %v1951
  %v2181 = vrot.slane %v2180, 7
  %v2182 = vsel %vm114, %v1953, %v2076
  %v2183 = vsel %vm119, %v1953, %v2076
  %v2184 = vrot.slane %v2183, 1
  %v2185 = vsel %vm123, %v1953, %v2076
  %v2186 = vrot.slane %v2185, 2
  %v2187 = vsel %vm127, %v1953, %v2076
  %v2188 = vrot.slane %v2187, 3
  %v2189 = vsel %vm2110, %v1953, %v2076
  %v2190 = vrot.slane %v2189, 4
  %v2191 = vsel %vm2113, %v1953, %v2076
  %v2192 = vrot.slane %v2191, 5
  %v2193 = vsel %vm2116, %v1953, %v2076
  %v2194 = vrot.slane %v2193, 6
  %v2195 = vsel %vm2119, %v2076, %v1953
  %v2196 = vrot.slane %v2195, 7
  %v2197 = vsel %vm114, %v1955, %v2077
  %v2198 = vsel %vm119, %v1955, %v2077
  %v2199 = vrot.slane %v2198, 1
  %v2200 = vsel %vm123, %v1955, %v2077
  %v2201 = vrot.slane %v2200, 2
  %v2202 = vsel %vm127, %v1955, %v2077
  %v2203 = vrot.slane %v2202, 3
  %v2204 = vsel %vm2110, %v1955, %v2077
  %v2205 = vrot.slane %v2204, 4
  %v2206 = vsel %vm2113, %v1955, %v2077
  %v2207 = vrot.slane %v2206, 5
  %v2208 = vsel %vm2116, %v1955, %v2077
  %v2209 = vrot.slane %v2208, 6
  %v2210 = vsel %vm2119, %v2077, %v1955
  %v2211 = vrot.slane %v2210, 7
  %v2212 = vsel %vm114, %v1957, %v2078
  %v2213 = vsel %vm119, %v1957, %v2078
  %v2214 = vrot.slane %v2213, 1
  %v2215 = vsel %vm123, %v1957, %v2078
  %v2216 = vrot.slane %v2215, 2
  %v2217 = vsel %vm127, %v1957, %v2078
  %v2218 = vrot.slane %v2217, 3
  %v2219 = vsel %vm2110, %v1957, %v2078
  %v2220 = vrot.slane %v2219, 4
  %v2221 = vsel %vm2113, %v1957, %v2078
  %v2222 = vrot.slane %v2221, 5
  %v2223 = vsel %vm2116, %v1957, %v2078
  %v2224 = vrot.slane %v2223, 6
  %v2225 = vsel %vm2119, %v2078, %v1957
  %v2226 = vrot.slane %v2225, 7
  %v2227 = vsel %vm114, %v1959, %v2079
  %v2228 = vsel %vm119, %v1959, %v2079
  %v2229 = vrot.slane %v2228, 1
  %v2230 = vsel %vm123, %v1959, %v2079
  %v2231 = vrot.slane %v2230, 2
  %v2232 = vsel %vm127, %v1959, %v2079
  %v2233 = vrot.slane %v2232, 3
  %v2234 = vsel %vm2110, %v1959, %v2079
  %v2235 = vrot.slane %v2234, 4
  %v2236 = vsel %vm2113, %v1959, %v2079
  %v2237 = vrot.slane %v2236, 5
  %v2238 = vsel %vm2116, %v1959, %v2079
  %v2239 = vrot.slane %v2238, 6
  %v2240 = vsel %vm2119, %v2079, %v1959
  %v2241 = vrot.slane %v2240, 7
  %v2242 = vsel %vm114, %v1961, %v2080
  %v2243 = vsel %vm119, %v1961, %v2080
  %v2244 = vrot.slane %v2243, 1
  %v2245 = vsel %vm123, %v1961, %v2080
  %v2246 = vrot.slane %v2245, 2
  %v2247 = vsel %vm127, %v1961, %v2080
  %v2248 = vrot.slane %v2247, 3
  %v2249 = vsel %vm2110, %v1961, %v2080
  %v2250 = vrot.slane %v2249, 4
  %v2251 = vsel %vm2113, %v1961, %v2080
  %v2252 = vrot.slane %v2251, 5
  %v2253 = vsel %vm2116, %v1961, %v2080
  %v2254 = vrot.slane %v2253, 6
  %v2255 = vsel %vm2119, %v2080, %v1961
  %v2256 = vrot.slane %v2255, 7
  %v2257 = vsel %vm114, %v1963, %v2081
  %v2258 = vsel %vm119, %v1963, %v2081
  %v2259 = vrot.slane %v2258, 1
  %v2260 = vsel %vm123, %v1963, %v2081
  %v2261 = vrot.slane %v2260, 2
  %v2262 = vsel %vm127, %v1963, %v2081
  %v2263 = vrot.slane %v2262, 3
  %v2264 = vsel %vm2110, %v1963, %v2081
  %v2265 = vrot.slane %v2264, 4
  %v2266 = vsel %vm2113, %v1963, %v2081
  %v2267 = vrot.slane %v2266, 5
  %v2268 = vsel %vm2116, %v1963, %v2081
  %v2269 = vrot.slane %v2268, 6
  %v2270 = vsel %vm2119, %v2081, %v1963
  %v2271 = vrot.slane %v2270, 7
  %v2272 = vsel %vm114, %v1965, %v2082
  %v2273 = vsel %vm119, %v1965, %v2082
  %v2274 = vrot.slane %v2273, 1
  %v2275 = vsel %vm123, %v1965, %v2082
  %v2276 = vrot.slane %v2275, 2
  %v2277 = vsel %vm127, %v1965, %v2082
  %v2278 = vrot.slane %v2277, 3
  %v2279 = vsel %vm2110, %v1965, %v2082
  %v2280 = vrot.slane %v2279, 4
  %v2281 = vsel %vm2113, %v1965, %v2082
  %v2282 = vrot.slane %v2281, 5
  %v2283 = vsel %vm2116, %v1965, %v2082
  %v2284 = vrot.slane %v2283, 6
  %v2285 = vsel %vm2119, %v2082, %v1965
  %v2286 = vrot.slane %v2285, 7
  %v2287 = vsel %vm114, %v1967, %v2083
  %v2288 = vsel %vm119, %v1967, %v2083
  %v2289 = vrot.slane %v2288, 1
  %v2290 = vsel %vm123, %v1967, %v2083
  %v2291 = vrot.slane %v2290, 2
  %v2292 = vsel %vm127, %v1967, %v2083
  %v2293 = vrot.slane %v2292, 3
  %v2294 = vsel %vm2110, %v1967, %v2083
  %v2295 = vrot.slane %v2294, 4
  %v2296 = vsel %vm2113, %v1967, %v2083
  %v2297 = vrot.slane %v2296, 5
  %v2298 = vsel %vm2116, %v1967, %v2083
  %v2299 = vrot.slane %v2298, 6
  %v2300 = vsel %vm2119, %v2083, %v1967
  %v2301 = vrot.slane %v2300, 7
  %v2302 = vsel %vm114, %v1969, %v2084
  %v2303 = vsel %vm119, %v1969, %v2084
  %v2304 = vrot.slane %v2303, 1
  %v2305 = vsel %vm123, %v1969, %v2084
  %v2306 = vrot.slane %v2305, 2
  %v2307 = vsel %vm127, %v1969, %v2084
  %v2308 = vrot.slane %v2307, 3
  %v2309 = vsel %vm2110, %v1969, %v2084
  %v2310 = vrot.slane %v2309, 4
  %v2311 = vsel %vm2113, %v1969, %v2084
  %v2312 = vrot.slane %v2311, 5
  %v2313 = vsel %vm2116, %v1969, %v2084
  %v2314 = vrot.slane %v2313, 6
  %v2315 = vsel %vm2119, %v2084, %v1969
  %v2316 = vrot.slane %v2315, 7
  %v2317 = vsel %vm114, %v1971, %v2085
  %v2318 = vsel %vm119, %v1971, %v2085
  %v2319 = vrot.slane %v2318, 1
  %v2320 = vsel %vm123, %v1971, %v2085
  %v2321 = vrot.slane %v2320, 2
  %v2322 = vsel %vm127, %v1971, %v2085
  %v2323 = vrot.slane %v2322, 3
  %v2324 = vsel %vm2110, %v1971, %v2085
  %v2325 = vrot.slane %v2324, 4
  %v2326 = vsel %vm2113, %v1971, %v2085
  %v2327 = vrot.slane %v2326, 5
  %v2328 = vsel %vm2116, %v1971, %v2085
  %v2329 = vrot.slane %v2328, 6
  %v2330 = vsel %vm2119, %v2085, %v1971
  %v2331 = vrot.slane %v2330, 7
  %v2332 = vsel %vm114, %v1973, %v2086
  %v2333 = vsel %vm119, %v1973, %v2086
  %v2334 = vrot.slane %v2333, 1
  %v2335 = vsel %vm123, %v1973, %v2086
  %v2336 = vrot.slane %v2335, 2
  %v2337 = vsel %vm127, %v1973, %v2086
  %v2338 = vrot.slane %v2337, 3
  %v2339 = vsel %vm2110, %v1973, %v2086
  %v2340 = vrot.slane %v2339, 4
  %v2341 = vsel %vm2113, %v1973, %v2086
  %v2342 = vrot.slane %v2341, 5
  %v2343 = vsel %vm2116, %v1973, %v2086
  %v2344 = vrot.slane %v2343, 6
  %v2345 = vsel %vm2119, %v2086, %v1973
  %v2346 = vrot.slane %v2345, 7
  %v2347 = vsel %vm114, %v1975, %v2087
  %v2348 = vsel %vm119, %v1975, %v2087
  %v2349 = vrot.slane %v2348, 1
  %v2350 = vsel %vm123, %v1975, %v2087
  %v2351 = vrot.slane %v2350, 2
  %v2352 = vsel %vm127, %v1975, %v2087
  %v2353 = vrot.slane %v2352, 3
  %v2354 = vsel %vm2110, %v1975, %v2087
  %v2355 = vrot.slane %v2354, 4
  %v2356 = vsel %vm2113, %v1975, %v2087
  %v2357 = vrot.slane %v2356, 5
  %v2358 = vsel %vm2116, %v1975, %v2087
  %v2359 = vrot.slane %v2358, 6
  %v2360 = vsel %vm2119, %v2087, %v1975
  %v2361 = vrot.slane %v2360, 7
  %v2362 = vsel %vm114, %v1977, %v2088
  %v2363 = vsel %vm119, %v1977, %v2088
  %v2364 = vrot.slane %v2363, 1
  %v2365 = vsel %vm123, %v1977, %v2088
  %v2366 = vrot.slane %v2365, 2
  %v2367 = vsel %vm127, %v1977, %v2088
  %v2368 = vrot.slane %v2367, 3
  %v2369 = vsel %vm2110, %v1977, %v2088
  %v2370 = vrot.slane %v2369, 4
  %v2371 = vsel %vm2113, %v1977, %v2088
  %v2372 = vrot.slane %v2371, 5
  %v2373 = vsel %vm2116, %v1977, %v2088
  %v2374 = vrot.slane %v2373, 6
  %v2375 = vsel %vm2119, %v2088, %v1977
  %v2376 = vrot.slane %v2375, 7
  %v2377 = vsel %vm114, %v1979, %v2089
  %v2378 = vsel %vm119, %v1979, %v2089
  %v2379 = vrot.slane %v2378, 1
  %v2380 = vsel %vm123, %v1979, %v2089
  %v2381 = vrot.slane %v2380, 2
  %v2382 = vsel %vm127, %v1979, %v2089
  %v2383 = vrot.slane %v2382, 3
  %v2384 = vsel %vm2110, %v1979, %v2089
  %v2385 = vrot.slane %v2384, 4
  %v2386 = vsel %vm2113, %v1979, %v2089
  %v2387 = vrot.slane %v2386, 5
  %v2388 = vsel %vm2116, %v1979, %v2089
  %v2389 = vrot.slane %v2388, 6
  %v2390 = vsel %vm2119, %v2089, %v1979
  %v2391 = vrot.slane %v2390, 7
  %v2392 = vsel %vm114, %v1981, %v2090
  %v2393 = vsel %vm119, %v1981, %v2090
  %v2394 = vrot.slane %v2393, 1
  %v2395 = vsel %vm123, %v1981, %v2090
  %v2396 = vrot.slane %v2395, 2
  %v2397 = vsel %vm127, %v1981, %v2090
  %v2398 = vrot.slane %v2397, 3
  %v2399 = vsel %vm2110, %v1981, %v2090
  %v2400 = vrot.slane %v2399, 4
  %v2401 = vsel %vm2113, %v1981, %v2090
  %v2402 = vrot.slane %v2401, 5
  %v2403 = vsel %vm2116, %v1981, %v2090
  %v2404 = vrot.slane %v2403, 6
  %v2405 = vsel %vm2119, %v2090, %v1981
  %v2406 = vrot.slane %v2405, 7
  %v2407 = vsel %vm114, %v1983, %v2091
  %v2408 = vsel %vm119, %v1983, %v2091
  %v2409 = vrot.slane %v2408, 1
  %v2410 = vsel %vm123, %v1983, %v2091
  %v2411 = vrot.slane %v2410, 2
  %v2412 = vsel %vm127, %v1983, %v2091
  %v2413 = vrot.slane %v2412, 3
  %v2414 = vsel %vm2110, %v1983, %v2091
  %v2415 = vrot.slane %v2414, 4
  %v2416 = vsel %vm2113, %v1983, %v2091
  %v2417 = vrot.slane %v2416, 5
  %v2418 = vsel %vm2116, %v1983, %v2091
  %v2419 = vrot.slane %v2418, 6
  %v2420 = vsel %vm2119, %v2091, %v1983
  %v2421 = vrot.slane %v2420, 7
  %v2422 = vsel %vm114, %v1985, %v2092
  %v2423 = vsel %vm119, %v1985, %v2092
  %v2424 = vrot.slane %v2423, 1
  %v2425 = vsel %vm123, %v1985, %v2092
  %v2426 = vrot.slane %v2425, 2
  %v2427 = vsel %vm127, %v1985, %v2092
  %v2428 = vrot.slane %v2427, 3
  %v2429 = vsel %vm2110, %v1985, %v2092
  %v2430 = vrot.slane %v2429, 4
  %v2431 = vsel %vm2113, %v1985, %v2092
  %v2432 = vrot.slane %v2431, 5
  %v2433 = vsel %vm2116, %v1985, %v2092
  %v2434 = vrot.slane %v2433, 6
  %v2435 = vsel %vm2119, %v2092, %v1985
  %v2436 = vrot.slane %v2435, 7
  %v2437 = vsel %vm114, %v1987, %v2093
  %v2438 = vsel %vm119, %v1987, %v2093
  %v2439 = vrot.slane %v2438, 1
  %v2440 = vsel %vm123, %v1987, %v2093
  %v2441 = vrot.slane %v2440, 2
  %v2442 = vsel %vm127, %v1987, %v2093
  %v2443 = vrot.slane %v2442, 3
  %v2444 = vsel %vm2110, %v1987, %v2093
  %v2445 = vrot.slane %v2444, 4
  %v2446 = vsel %vm2113, %v1987, %v2093
  %v2447 = vrot.slane %v2446, 5
  %v2448 = vsel %vm2116, %v1987, %v2093
  %v2449 = vrot.slane %v2448, 6
  %v2450 = vsel %vm2119, %v2093, %v1987
  %v2451 = vrot.slane %v2450, 7
  %v2452 = vsel %vm114, %v1989, %v2094
  %v2453 = vsel %vm119, %v1989, %v2094
  %v2454 = vrot.slane %v2453, 1
  %v2455 = vsel %vm123, %v1989, %v2094
  %v2456 = vrot.slane %v2455, 2
  %v2457 = vsel %vm127, %v1989, %v2094
  %v2458 = vrot.slane %v2457, 3
  %v2459 = vsel %vm2110, %v1989, %v2094
  %v2460 = vrot.slane %v2459, 4
  %v2461 = vsel %vm2113, %v1989, %v2094
  %v2462 = vrot.slane %v2461, 5
  %v2463 = vsel %vm2116, %v1989, %v2094
  %v2464 = vrot.slane %v2463, 6
  %v2465 = vsel %vm2119, %v2094, %v1989
  %v2466 = vrot.slane %v2465, 7
  %v2467 = vsel %vm114, %v1991, %v2095
  %v2468 = vsel %vm119, %v1991, %v2095
  %v2469 = vrot.slane %v2468, 1
  %v2470 = vsel %vm123, %v1991, %v2095
  %v2471 = vrot.slane %v2470, 2
  %v2472 = vsel %vm127, %v1991, %v2095
  %v2473 = vrot.slane %v2472, 3
  %v2474 = vsel %vm2110, %v1991, %v2095
  %v2475 = vrot.slane %v2474, 4
  %v2476 = vsel %vm2113, %v1991, %v2095
  %v2477 = vrot.slane %v2476, 5
  %v2478 = vsel %vm2116, %v1991, %v2095
  %v2479 = vrot.slane %v2478, 6
  %v2480 = vsel %vm2119, %v2095, %v1991
  %v2481 = vrot.slane %v2480, 7
  %v2482 = vsel %vm114, %v1993, %v2096
  %v2483 = vsel %vm119, %v1993, %v2096
  %v2484 = vrot.slane %v2483, 1
  %v2485 = vsel %vm123, %v1993, %v2096
  %v2486 = vrot.slane %v2485, 2
  %v2487 = vsel %vm127, %v1993, %v2096
  %v2488 = vrot.slane %v2487, 3
  %v2489 = vsel %vm2110, %v1993, %v2096
  %v2490 = vrot.slane %v2489, 4
  %v2491 = vsel %vm2113, %v1993, %v2096
  %v2492 = vrot.slane %v2491, 5
  %v2493 = vsel %vm2116, %v1993, %v2096
  %v2494 = vrot.slane %v2493, 6
  %v2495 = vsel %vm2119, %v2096, %v1993
  %v2496 = vrot.slane %v2495, 7
  %v2497 = vsel %vm114, %v1995, %v2097
  %v2498 = vsel %vm119, %v1995, %v2097
  %v2499 = vrot.slane %v2498, 1
  %v2500 = vsel %vm123, %v1995, %v2097
  %v2501 = vrot.slane %v2500, 2
  %v2502 = vsel %vm127, %v1995, %v2097
  %v2503 = vrot.slane %v2502, 3
  %v2504 = vsel %vm2110, %v1995, %v2097
  %v2505 = vrot.slane %v2504, 4
  %v2506 = vsel %vm2113, %v1995, %v2097
  %v2507 = vrot.slane %v2506, 5
  %v2508 = vsel %vm2116, %v1995, %v2097
  %v2509 = vrot.slane %v2508, 6
  %v2510 = vsel %vm2119, %v2097, %v1995
  %v2511 = vrot.slane %v2510, 7
  %v2512 = vsel %vm114, %v1997, %v2098
  %v2513 = vsel %vm119, %v1997, %v2098
  %v2514 = vrot.slane %v2513, 1
  %v2515 = vsel %vm123, %v1997, %v2098
  %v2516 = vrot.slane %v2515, 2
  %v2517 = vsel %vm127, %v1997, %v2098
  %v2518 = vrot.slane %v2517, 3
  %v2519 = vsel %vm2110, %v1997, %v2098
  %v2520 = vrot.slane %v2519, 4
  %v2521 = vsel %vm2113, %v1997, %v2098
  %v2522 = vrot.slane %v2521, 5
  %v2523 = vsel %vm2116, %v1997, %v2098
  %v2524 = vrot.slane %v2523, 6
  %v2525 = vsel %vm2119, %v2098, %v1997
  %v2526 = vrot.slane %v2525, 7
  %v2527 = vsel %vm114, %v1999, %v2099
  %v2528 = vsel %vm119, %v1999, %v2099
  %v2529 = vrot.slane %v2528, 1
  %v2530 = vsel %vm123, %v1999, %v2099
  %v2531 = vrot.slane %v2530, 2
  %v2532 = vsel %vm127, %v1999, %v2099
  %v2533 = vrot.slane %v2532, 3
  %v2534 = vsel %vm2110, %v1999, %v2099
  %v2535 = vrot.slane %v2534, 4
  %v2536 = vsel %vm2113, %v1999, %v2099
  %v2537 = vrot.slane %v2536, 5
  %v2538 = vsel %vm2116, %v1999, %v2099
  %v2539 = vrot.slane %v2538, 6
  %v2540 = vsel %vm2119, %v2099, %v1999
  %v2541 = vrot.slane %v2540, 7
  %v2542 = vsel %vm114, %v2001, %v2100
  %v2543 = vsel %vm119, %v2001, %v2100
  %v2544 = vrot.slane %v2543, 1
  %v2545 = vsel %vm123, %v2001, %v2100
  %v2546 = vrot.slane %v2545, 2
  %v2547 = vsel %vm127, %v2001, %v2100
  %v2548 = vrot.slane %v2547, 3
  %v2549 = vsel %vm2110, %v2001, %v2100
  %v2550 = vrot.slane %v2549, 4
  %v2551 = vsel %vm2113, %v2001, %v2100
  %v2552 = vrot.slane %v2551, 5
  %v2553 = vsel %vm2116, %v2001, %v2100
  %v2554 = vrot.slane %v2553, 6
  %v2555 = vsel %vm2119, %v2100, %v2001
  %v2556 = vrot.slane %v2555, 7
  %v2557 = vsel %vm114, %v2003, %v2101
  %v2558 = vsel %vm119, %v2003, %v2101
  %v2559 = vrot.slane %v2558, 1
  %v2560 = vsel %vm123, %v2003, %v2101
  %v2561 = vrot.slane %v2560, 2
  %v2562 = vsel %vm127, %v2003, %v2101
  %v2563 = vrot.slane %v2562, 3
  %v2564 = vsel %vm2110, %v2003, %v2101
  %v2565 = vrot.slane %v2564, 4
  %v2566 = vsel %vm2113, %v2003, %v2101
  %v2567 = vrot.slane %v2566, 5
  %v2568 = vsel %vm2116, %v2003, %v2101
  %v2569 = vrot.slane %v2568, 6
  %v2570 = vsel %vm2119, %v2101, %v2003
  %v2571 = vrot.slane %v2570, 7
  %v2572 = vsel %vm114, %v2005, %v2102
  %v2573 = vsel %vm119, %v2005, %v2102
  %v2574 = vrot.slane %v2573, 1
  %v2575 = vsel %vm123, %v2005, %v2102
  %v2576 = vrot.slane %v2575, 2
  %v2577 = vsel %vm127, %v2005, %v2102
  %v2578 = vrot.slane %v2577, 3
  %2579 = vst [vmem:[#allocation1] ss:$9 sm:$0xff] %v2103
  %s2580 = scalar_lea.vmem [#allocation1], 1
  %2581 = vst [vmem:[%s2580] ss:$9 sm:$0xff] %v2105
  %s2582 = scalar_lea.vmem [#allocation1], 2
  %2583 = vst [vmem:[%s2582] ss:$9 sm:$0xff] %v2107
  %s2584 = scalar_lea.vmem [#allocation1], 3
  %2585 = vst [vmem:[%s2584] ss:$9 sm:$0xff] %v2109
  %s2586 = scalar_lea.vmem [#allocation1], 4
  %2587 = vst [vmem:[%s2586] ss:$9 sm:$0xff] %v2112
  %s2588 = scalar_lea.vmem [#allocation1], 5
  %2589 = vst [vmem:[%s2588] ss:$9 sm:$0xff] %v2115
  %s2590 = scalar_lea.vmem [#allocation1], 6
  %2591 = vst [vmem:[%s2590] ss:$9 sm:$0xff] %v2118
  %s2592 = scalar_lea.vmem [#allocation1], 7
  %2593 = vst [vmem:[%s2592] ss:$9 sm:$0xff] %v2121
  %v2594 = vld [vmem:[#allocation1] sm:$0xff]
  %v2595 = vld [vmem:[#allocation1 + $0x9] sm:$0xff]
  %2596 = vst [vmem:[#allocation1] ss:$9 sm:$0xff] %v2122
  %2597 = vst [vmem:[%s2580] ss:$9 sm:$0xff] %v2124
  %2598 = vst [vmem:[%s2582] ss:$9 sm:$0xff] %v2126
  %2599 = vst [vmem:[%s2584] ss:$9 sm:$0xff] %v2128
  %2600 = vst [vmem:[%s2586] ss:$9 sm:$0xff] %v2130
  %2601 = vst [vmem:[%s2588] ss:$9 sm:$0xff] %v2132
  %2602 = vst [vmem:[%s2590] ss:$9 sm:$0xff] %v2134
  %2603 = vst [vmem:[%s2592] ss:$9 sm:$0xff] %v2136
  %v2604 = vld [vmem:[#allocation1] sm:$0xff]
  %v2605 = vld [vmem:[#allocation1 + $0x9] sm:$0xff]
  %2606 = vst [vmem:[#allocation1] ss:$9 sm:$0xff] %v2137
  %2607 = vst [vmem:[%s2580] ss:$9 sm:$0xff] %v2139
  %2608 = vst [vmem:[%s2582] ss:$9 sm:$0xff] %v2141
  %2609 = vst [vmem:[%s2584] ss:$9 sm:$0xff] %v2143
  %2610 = vst [vmem:[%s2586] ss:$9 sm:$0xff] %v2145
  %2611 = vst [vmem:[%s2588] ss:$9 sm:$0xff] %v2147
  %2612 = vst [vmem:[%s2590] ss:$9 sm:$0xff] %v2149
  %2613 = vst [vmem:[%s2592] ss:$9 sm:$0xff] %v2151
  %v2614 = vld [vmem:[#allocation1] sm:$0xff]
  %v2615 = vld [vmem:[#allocation1 + $0x9] sm:$0xff]
  %2616 = vst [vmem:[#allocation1] ss:$9 sm:$0xff] %v2152
  %2617 = vst [vmem:[%s2580] ss:$9 sm:$0xff] %v2154
  %2618 = vst [vmem:[%s2582] ss:$9 sm:$0xff] %v2156
  %2619 = vst [vmem:[%s2584] ss:$9 sm:$0xff] %v2158
  %2620 = vst [vmem:[%s2586] ss:$9 sm:$0xff] %v2160
  %2621 = vst [vmem:[%s2588] ss:$9 sm:$0xff] %v2162
  %2622 = vst [vmem:[%s2590] ss:$9 sm:$0xff] %v2164
  %2623 = vst [vmem:[%s2592] ss:$9 sm:$0xff] %v2166
  %v2624 = vld [vmem:[#allocation1] sm:$0xff]
  %v2625 = vld [vmem:[#allocation1 + $0x9] sm:$0xff]
  %2626 = vst [vmem:[#allocation1] ss:$9 sm:$0xff] %v2167
  %2627 = vst [vmem:[%s2580] ss:$9 sm:$0xff] %v2169
  %2628 = vst [vmem:[%s2582] ss:$9 sm:$0xff] %v2171
  %2629 = vst [vmem:[%s2584] ss:$9 sm:$0xff] %v2173
  %2630 = vst [vmem:[%s2586] ss:$9 sm:$0xff] %v2175
  %2631 = vst [vmem:[%s2588] ss:$9 sm:$0xff] %v2177
  %2632 = vst [vmem:[%s2590] ss:$9 sm:$0xff] %v2179
  %2633 = vst [vmem:[%s2592] ss:$9 sm:$0xff] %v2181
  %v2634 = vld [vmem:[#allocation1] sm:$0xff]
  %v2635 = vld [vmem:[#allocation1 + $0x9] sm:$0xff]
  %2636 = vst [vmem:[#allocation1] ss:$9 sm:$0xff] %v2182
  %2637 = vst [vmem:[%s2580] ss:$9 sm:$0xff] %v2184
  %2638 = vst [vmem:[%s2582] ss:$9 sm:$0xff] %v2186
  %2639 = vst [vmem:[%s2584] ss:$9 sm:$0xff] %v2188
  %2640 = vst [vmem:[%s2586] ss:$9 sm:$0xff] %v2190
  %2641 = vst [vmem:[%s2588] ss:$9 sm:$0xff] %v2192
  %2642 = vst [vmem:[%s2590] ss:$9 sm:$0xff] %v2194
  %2643 = vst [vmem:[%s2592] ss:$9 sm:$0xff] %v2196
  %v2644 = vld [vmem:[#allocation1] sm:$0xff]
  %v2645 = vld [vmem:[#allocation1 + $0x9] sm:$0xff]
  %2646 = vst [vmem:[#allocation1] ss:$9 sm:$0xff] %v2197
  %2647 = vst [vmem:[%s2580] ss:$9 sm:$0xff] %v2199
  %2648 = vst [vmem:[%s2582] ss:$9 sm:$0xff] %v2201
  %2649 = vst [vmem:[%s2584] ss:$9 sm:$0xff] %v2203
  %2650 = vst [vmem:[%s2586] ss:$9 sm:$0xff] %v2205
  %2651 = vst [vmem:[%s2588] ss:$9 sm:$0xff] %v2207
  %2652 = vst [vmem:[%s2590] ss:$9 sm:$0xff] %v2209
  %2653 = vst [vmem:[%s2592] ss:$9 sm:$0xff] %v2211
  %v2654 = vld [vmem:[#allocation1] sm:$0xff]
  %v2655 = vld [vmem:[#allocation1 + $0x9] sm:$0xff]
  %2656 = vst [vmem:[#allocation1] ss:$9 sm:$0xff] %v2212
  %2657 = vst [vmem:[%s2580] ss:$9 sm:$0xff] %v2214
  %2658 = vst [vmem:[%s2582] ss:$9 sm:$0xff] %v2216
  %2659 = vst [vmem:[%s2584] ss:$9 sm:$0xff] %v2218
  %2660 = vst [vmem:[%s2586] ss:$9 sm:$0xff] %v2220
  %2661 = vst [vmem:[%s2588] ss:$9 sm:$0xff] %v2222
  %2662 = vst [vmem:[%s2590] ss:$9 sm:$0xff] %v2224
  %v2663 = vld [vmem:[#allocation1] sm:$0xff]
  %v2664 = vld [vmem:[#allocation1 + $0x9] sm:$0xff]
  %2665 = vst [vmem:[#allocation1] ss:$9 sm:$0xff] %v2226
  %2666 = vst [vmem:[%s2580] ss:$9 sm:$0xff] %v2227
  %2667 = vst [vmem:[%s2582] ss:$9 sm:$0xff] %v2229
  %2668 = vst [vmem:[%s2584] ss:$9 sm:$0xff] %v2231
  %2669 = vst [vmem:[%s2586] ss:$9 sm:$0xff] %v2233
  %2670 = vst [vmem:[%s2588] ss:$9 sm:$0xff] %v2235
  %2671 = vst [vmem:[%s2590] ss:$9 sm:$0xff] %v2237
  %2672 = vst [vmem:[%s2592] ss:$9 sm:$0xff] %v2239
  %v2673 = vld [vmem:[#allocation1] sm:$0xff]
  %v2674 = vld [vmem:[#allocation1 + $0x9] sm:$0xff]
  %2675 = vst [vmem:[#allocation1] ss:$9 sm:$0xff] %v2241
  %2676 = vst [vmem:[%s2580] ss:$9 sm:$0xff] %v2242
  %2677 = vst [vmem:[%s2582] ss:$9 sm:$0xff] %v2244
  %2678 = vst [vmem:[%s2584] ss:$9 sm:$0xff] %v2246
  %2679 = vst [vmem:[%s2586] ss:$9 sm:$0xff] %v2248
  %2680 = vst [vmem:[%s2588] ss:$9 sm:$0xff] %v2250
  %2681 = vst [vmem:[%s2590] ss:$9 sm:$0xff] %v2252
  %2682 = vst [vmem:[%s2592] ss:$9 sm:$0xff] %v2254
  %v2683 = vld [vmem:[#allocation1] sm:$0xff]
  %v2684 = vld [vmem:[#allocation1 + $0x9] sm:$0xff]
  %2685 = vst [vmem:[#allocation1] ss:$9 sm:$0xff] %v2256
  %2686 = vst [vmem:[%s2580] ss:$9 sm:$0xff] %v2257
  %2687 = vst [vmem:[%s2582] ss:$9 sm:$0xff] %v2259
  %2688 = vst [vmem:[%s2584] ss:$9 sm:$0xff] %v2261
  %2689 = vst [vmem:[%s2586] ss:$9 sm:$0xff] %v2263
  %2690 = vst [vmem:[%s2588] ss:$9 sm:$0xff] %v2265
  %2691 = vst [vmem:[%s2590] ss:$9 sm:$0xff] %v2267
  %2692 = vst [vmem:[%s2592] ss:$9 sm:$0xff] %v2269
  %v2693 = vld [vmem:[#allocation1] sm:$0xff]
  %v2694 = vld [vmem:[#allocation1 + $0x9] sm:$0xff]
  %2695 = vst [vmem:[#allocation1] ss:$9 sm:$0xff] %v2271
  %2696 = vst [vmem:[%s2580] ss:$9 sm:$0xff] %v2272
  %2697 = vst [vmem:[%s2582] ss:$9 sm:$0xff] %v2274
  %2698 = vst [vmem:[%s2584] ss:$9 sm:$0xff] %v2276
  %2699 = vst [vmem:[%s2586] ss:$9 sm:$0xff] %v2278
  %2700 = vst [vmem:[%s2588] ss:$9 sm:$0xff] %v2280
  %2701 = vst [vmem:[%s2590] ss:$9 sm:$0xff] %v2282
  %2702 = vst [vmem:[%s2592] ss:$9 sm:$0xff] %v2284
  %v2703 = vld [vmem:[#allocation1] sm:$0xff]
  %v2704 = vld [vmem:[#allocation1 + $0x9] sm:$0xff]
  %2705 = vst [vmem:[#allocation1] ss:$9 sm:$0xff] %v2286
  %2706 = vst [vmem:[%s2580] ss:$9 sm:$0xff] %v2287
  %2707 = vst [vmem:[%s2582] ss:$9 sm:$0xff] %v2289
  %2708 = vst [vmem:[%s2584] ss:$9 sm:$0xff] %v2291
  %2709 = vst [vmem:[%s2586] ss:$9 sm:$0xff] %v2293
  %2710 = vst [vmem:[%s2588] ss:$9 sm:$0xff] %v2295
  %2711 = vst [vmem:[%s2590] ss:$9 sm:$0xff] %v2297
  %2712 = vst [vmem:[%s2592] ss:$9 sm:$0xff] %v2299
  %v2713 = vld [vmem:[#allocation1] sm:$0xff]
  %v2714 = vld [vmem:[#allocation1 + $0x9] sm:$0xff]
  %2715 = vst [vmem:[#allocation1] ss:$9 sm:$0xff] %v2301
  %2716 = vst [vmem:[%s2580] ss:$9 sm:$0xff] %v2302
  %2717 = vst [vmem:[%s2582] ss:$9 sm:$0xff] %v2304
  %2718 = vst [vmem:[%s2584] ss:$9 sm:$0xff] %v2306
  %2719 = vst [vmem:[%s2586] ss:$9 sm:$0xff] %v2308
  %2720 = vst [vmem:[%s2588] ss:$9 sm:$0xff] %v2310
  %2721 = vst [vmem:[%s2590] ss:$9 sm:$0xff] %v2312
  %2722 = vst [vmem:[%s2592] ss:$9 sm:$0xff] %v2314
  %v2723 = vld [vmem:[#allocation1] sm:$0xff]
  %v2724 = vld [vmem:[#allocation1 + $0x9] sm:$0xff]
  %2725 = vst [vmem:[#allocation1] ss:$9 sm:$0xff] %v2316
  %2726 = vst [vmem:[%s2580] ss:$9 sm:$0xff] %v2317
  %2727 = vst [vmem:[%s2582] ss:$9 sm:$0xff] %v2319
  %2728 = vst [vmem:[%s2584] ss:$9 sm:$0xff] %v2321
  %2729 = vst [vmem:[%s2586] ss:$9 sm:$0xff] %v2323
  %2730 = vst [vmem:[%s2588] ss:$9 sm:$0xff] %v2325
  %2731 = vst [vmem:[%s2590] ss:$9 sm:$0xff] %v2327
  %2732 = vst [vmem:[%s2592] ss:$9 sm:$0xff] %v2329
  %v2733 = vld [vmem:[#allocation1] sm:$0xff]
  %v2734 = vld [vmem:[#allocation1 + $0x9] sm:$0xff]
  %2735 = vst [vmem:[#allocation1] ss:$9 sm:$0xff] %v2331
  %2736 = vst [vmem:[%s2580] ss:$9 sm:$0xff] %v2332
  %2737 = vst [vmem:[%s2582] ss:$9 sm:$0xff] %v2334
  %2738 = vst [vmem:[%s2584] ss:$9 sm:$0xff] %v2336
  %2739 = vst [vmem:[%s2586] ss:$9 sm:$0xff] %v2338
  %2740 = vst [vmem:[%s2588] ss:$9 sm:$0xff] %v2340
  %2741 = vst [vmem:[%s2590] ss:$9 sm:$0xff] %v2342
  %v2742 = vld [vmem:[#allocation1] sm:$0xff]
  %v2743 = vld [vmem:[#allocation1 + $0x9] sm:$0xff]
  %2744 = vst [vmem:[#allocation1] ss:$9 sm:$0xff] %v2344
  %2745 = vst [vmem:[%s2580] ss:$9 sm:$0xff] %v2346
  %2746 = vst [vmem:[%s2582] ss:$9 sm:$0xff] %v2347
  %2747 = vst [vmem:[%s2584] ss:$9 sm:$0xff] %v2349
  %2748 = vst [vmem:[%s2586] ss:$9 sm:$0xff] %v2351
  %2749 = vst [vmem:[%s2588] ss:$9 sm:$0xff] %v2353
  %2750 = vst [vmem:[%s2590] ss:$9 sm:$0xff] %v2355
  %2751 = vst [vmem:[%s2592] ss:$9 sm:$0xff] %v2357
  %v2752 = vld [vmem:[#allocation1] sm:$0xff]
  %v2753 = vld [vmem:[#allocation1 + $0x9] sm:$0xff]
  %2754 = vst [vmem:[#allocation1] ss:$9 sm:$0xff] %v2359
  %2755 = vst [vmem:[%s2580] ss:$9 sm:$0xff] %v2361
  %2756 = vst [vmem:[%s2582] ss:$9 sm:$0xff] %v2362
  %2757 = vst [vmem:[%s2584] ss:$9 sm:$0xff] %v2364
  %2758 = vst [vmem:[%s2586] ss:$9 sm:$0xff] %v2366
  %2759 = vst [vmem:[%s2588] ss:$9 sm:$0xff] %v2368
  %2760 = vst [vmem:[%s2590] ss:$9 sm:$0xff] %v2370
  %2761 = vst [vmem:[%s2592] ss:$9 sm:$0xff] %v2372
  %v2762 = vld [vmem:[#allocation1] sm:$0xff]
  %v2763 = vld [vmem:[#allocation1 + $0x9] sm:$0xff]
  %2764 = vst [vmem:[#allocation1] ss:$9 sm:$0xff] %v2374
  %2765 = vst [vmem:[%s2580] ss:$9 sm:$0xff] %v2376
  %2766 = vst [vmem:[%s2582] ss:$9 sm:$0xff] %v2377
  %2767 = vst [vmem:[%s2584] ss:$9 sm:$0xff] %v2379
  %2768 = vst [vmem:[%s2586] ss:$9 sm:$0xff] %v2381
  %2769 = vst [vmem:[%s2588] ss:$9 sm:$0xff] %v2383
  %2770 = vst [vmem:[%s2590] ss:$9 sm:$0xff] %v2385
  %2771 = vst [vmem:[%s2592] ss:$9 sm:$0xff] %v2387
  %v2772 = vld [vmem:[#allocation1] sm:$0xff]
  %v2773 = vld [vmem:[#allocation1 + $0x9] sm:$0xff]
  %2774 = vst [vmem:[#allocation1] ss:$9 sm:$0xff] %v2389
  %2775 = vst [vmem:[%s2580] ss:$9 sm:$0xff] %v2391
  %2776 = vst [vmem:[%s2582] ss:$9 sm:$0xff] %v2392
  %2777 = vst [vmem:[%s2584] ss:$9 sm:$0xff] %v2394
  %2778 = vst [vmem:[%s2586] ss:$9 sm:$0xff] %v2396
  %2779 = vst [vmem:[%s2588] ss:$9 sm:$0xff] %v2398
  %2780 = vst [vmem:[%s2590] ss:$9 sm:$0xff] %v2400
  %2781 = vst [vmem:[%s2592] ss:$9 sm:$0xff] %v2402
  %v2782 = vld [vmem:[#allocation1] sm:$0xff]
  %v2783 = vld [vmem:[#allocation1 + $0x9] sm:$0xff]
  %2784 = vst [vmem:[#allocation1] ss:$9 sm:$0xff] %v2404
  %2785 = vst [vmem:[%s2580] ss:$9 sm:$0xff] %v2406
  %2786 = vst [vmem:[%s2582] ss:$9 sm:$0xff] %v2407
  %2787 = vst [vmem:[%s2584] ss:$9 sm:$0xff] %v2409
  %2788 = vst [vmem:[%s2586] ss:$9 sm:$0xff] %v2411
  %2789 = vst [vmem:[%s2588] ss:$9 sm:$0xff] %v2413
  %2790 = vst [vmem:[%s2590] ss:$9 sm:$0xff] %v2415
  %2791 = vst [vmem:[%s2592] ss:$9 sm:$0xff] %v2417
  %v2792 = vld [vmem:[#allocation1] sm:$0xff]
  %v2793 = vld [vmem:[#allocation1 + $0x9] sm:$0xff]
  %2794 = vst [vmem:[#allocation1] ss:$9 sm:$0xff] %v2419
  %2795 = vst [vmem:[%s2580] ss:$9 sm:$0xff] %v2421
  %2796 = vst [vmem:[%s2582] ss:$9 sm:$0xff] %v2422
  %2797 = vst [vmem:[%s2584] ss:$9 sm:$0xff] %v2424
  %2798 = vst [vmem:[%s2586] ss:$9 sm:$0xff] %v2426
  %2799 = vst [vmem:[%s2588] ss:$9 sm:$0xff] %v2428
  %2800 = vst [vmem:[%s2590] ss:$9 sm:$0xff] %v2430
  %2801 = vst [vmem:[%s2592] ss:$9 sm:$0xff] %v2432
  %v2802 = vld [vmem:[#allocation1] sm:$0xff]
  %v2803 = vld [vmem:[#allocation1 + $0x9] sm:$0xff]
  %2804 = vst [vmem:[#allocation1] ss:$9 sm:$0xff] %v2434
  %2805 = vst [vmem:[%s2580] ss:$9 sm:$0xff] %v2436
  %2806 = vst [vmem:[%s2582] ss:$9 sm:$0xff] %v2437
  %2807 = vst [vmem:[%s2584] ss:$9 sm:$0xff] %v2439
  %2808 = vst [vmem:[%s2586] ss:$9 sm:$0xff] %v2441
  %2809 = vst [vmem:[%s2588] ss:$9 sm:$0xff] %v2443
  %2810 = vst [vmem:[%s2590] ss:$9 sm:$0xff] %v2445
  %2811 = vst [vmem:[%s2592] ss:$9 sm:$0xff] %v2447
  %v2812 = vld [vmem:[#allocation1] sm:$0xff]
  %v2813 = vld [vmem:[#allocation1 + $0x9] sm:$0xff]
  %2814 = vst [vmem:[#allocation1] ss:$9 sm:$0xff] %v2449
  %2815 = vst [vmem:[%s2580] ss:$9 sm:$0xff] %v2451
  %2816 = vst [vmem:[%s2582] ss:$9 sm:$0xff] %v2452
  %2817 = vst [vmem:[%s2584] ss:$9 sm:$0xff] %v2454
  %2818 = vst [vmem:[%s2586] ss:$9 sm:$0xff] %v2456
  %2819 = vst [vmem:[%s2588] ss:$9 sm:$0xff] %v2458
  %2820 = vst [vmem:[%s2590] ss:$9 sm:$0xff] %v2460
  %v2821 = vld [vmem:[#allocation1] sm:$0xff]
  %v2822 = vld [vmem:[#allocation1 + $0x9] sm:$0xff]
  %2823 = vst [vmem:[#allocation1] ss:$9 sm:$0xff] %v2462
  %2824 = vst [vmem:[%s2580] ss:$9 sm:$0xff] %v2464
  %2825 = vst [vmem:[%s2582] ss:$9 sm:$0xff] %v2466
  %2826 = vst [vmem:[%s2584] ss:$9 sm:$0xff] %v2467
  %2827 = vst [vmem:[%s2586] ss:$9 sm:$0xff] %v2469
  %2828 = vst [vmem:[%s2588] ss:$9 sm:$0xff] %v2471
  %2829 = vst [vmem:[%s2590] ss:$9 sm:$0xff] %v2473
  %2830 = vst [vmem:[%s2592] ss:$9 sm:$0xff] %v2475
  %v2831 = vld [vmem:[#allocation1] sm:$0xff]
  %v2832 = vld [vmem:[#allocation1 + $0x9] sm:$0xff]
  %2833 = vst [vmem:[#allocation1] ss:$9 sm:$0xff] %v2477
  %2834 = vst [vmem:[%s2580] ss:$9 sm:$0xff] %v2479
  %2835 = vst [vmem:[%s2582] ss:$9 sm:$0xff] %v2481
  %2836 = vst [vmem:[%s2584] ss:$9 sm:$0xff] %v2482
  %2837 = vst [vmem:[%s2586] ss:$9 sm:$0xff] %v2484
  %2838 = vst [vmem:[%s2588] ss:$9 sm:$0xff] %v2486
  %2839 = vst [vmem:[%s2590] ss:$9 sm:$0xff] %v2488
  %2840 = vst [vmem:[%s2592] ss:$9 sm:$0xff] %v2490
  %v2841 = vld [vmem:[#allocation1] sm:$0xff]
  %v2842 = vld [vmem:[#allocation1 + $0x9] sm:$0xff]
  %2843 = vst [vmem:[#allocation1] ss:$9 sm:$0xff] %v2492
  %2844 = vst [vmem:[%s2580] ss:$9 sm:$0xff] %v2494
  %2845 = vst [vmem:[%s2582] ss:$9 sm:$0xff] %v2496
  %2846 = vst [vmem:[%s2584] ss:$9 sm:$0xff] %v2497
  %2847 = vst [vmem:[%s2586] ss:$9 sm:$0xff] %v2499
  %2848 = vst [vmem:[%s2588] ss:$9 sm:$0xff] %v2501
  %2849 = vst [vmem:[%s2590] ss:$9 sm:$0xff] %v2503
  %2850 = vst [vmem:[%s2592] ss:$9 sm:$0xff] %v2505
  %v2851 = vld [vmem:[#allocation1] sm:$0xff]
  %v2852 = vld [vmem:[#allocation1 + $0x9] sm:$0xff]
  %2853 = vst [vmem:[#allocation1] ss:$9 sm:$0xff] %v2507
  %2854 = vst [vmem:[%s2580] ss:$9 sm:$0xff] %v2509
  %2855 = vst [vmem:[%s2582] ss:$9 sm:$0xff] %v2511
  %2856 = vst [vmem:[%s2584] ss:$9 sm:$0xff] %v2512
  %2857 = vst [vmem:[%s2586] ss:$9 sm:$0xff] %v2514
  %2858 = vst [vmem:[%s2588] ss:$9 sm:$0xff] %v2516
  %2859 = vst [vmem:[%s2590] ss:$9 sm:$0xff] %v2518
  %2860 = vst [vmem:[%s2592] ss:$9 sm:$0xff] %v2520
  %v2861 = vld [vmem:[#allocation1] sm:$0xff]
  %v2862 = vld [vmem:[#allocation1 + $0x9] sm:$0xff]
  %2863 = vst [vmem:[#allocation1] ss:$9 sm:$0xff] %v2522
  %2864 = vst [vmem:[%s2580] ss:$9 sm:$0xff] %v2524
  %2865 = vst [vmem:[%s2582] ss:$9 sm:$0xff] %v2526
  %2866 = vst [vmem:[%s2584] ss:$9 sm:$0xff] %v2527
  %2867 = vst [vmem:[%s2586] ss:$9 sm:$0xff] %v2529
  %2868 = vst [vmem:[%s2588] ss:$9 sm:$0xff] %v2531
  %2869 = vst [vmem:[%s2590] ss:$9 sm:$0xff] %v2533
  %2870 = vst [vmem:[%s2592] ss:$9 sm:$0xff] %v2535
  %v2871 = vld [vmem:[#allocation1] sm:$0xff]
  %v2872 = vld [vmem:[#allocation1 + $0x9] sm:$0xff]
  %2873 = vst [vmem:[#allocation1] ss:$9 sm:$0xff] %v2537
  %2874 = vst [vmem:[%s2580] ss:$9 sm:$0xff] %v2539
  %2875 = vst [vmem:[%s2582] ss:$9 sm:$0xff] %v2541
  %2876 = vst [vmem:[%s2584] ss:$9 sm:$0xff] %v2542
  %2877 = vst [vmem:[%s2586] ss:$9 sm:$0xff] %v2544
  %2878 = vst [vmem:[%s2588] ss:$9 sm:$0xff] %v2546
  %2879 = vst [vmem:[%s2590] ss:$9 sm:$0xff] %v2548
  %2880 = vst [vmem:[%s2592] ss:$9 sm:$0xff] %v2550
  %v2881 = vld [vmem:[#allocation1] sm:$0xff]
  %v2882 = vld [vmem:[#allocation1 + $0x9] sm:$0xff]
  %2883 = vst [vmem:[#allocation1] ss:$9 sm:$0xff] %v2552
  %2884 = vst [vmem:[%s2580] ss:$9 sm:$0xff] %v2554
  %2885 = vst [vmem:[%s2582] ss:$9 sm:$0xff] %v2556
  %2886 = vst [vmem:[%s2584] ss:$9 sm:$0xff] %v2557
  %2887 = vst [vmem:[%s2586] ss:$9 sm:$0xff] %v2559
  %2888 = vst [vmem:[%s2588] ss:$9 sm:$0xff] %v2561
  %2889 = vst [vmem:[%s2590] ss:$9 sm:$0xff] %v2563
  %2890 = vst [vmem:[%s2592] ss:$9 sm:$0xff] %v2565
  %v2891 = vld [vmem:[#allocation1] sm:$0xff]
  %v2892 = vld [vmem:[#allocation1 + $0x9] sm:$0xff]
  %2893 = vst [vmem:[#allocation1] ss:$9 sm:$0xff] %v2567
  %2894 = vst [vmem:[%s2580] ss:$9 sm:$0xff] %v2569
  %2895 = vst [vmem:[%s2582] ss:$9 sm:$0xff] %v2571
  %2896 = vst [vmem:[%s2584] ss:$9 sm:$0xff] %v2572
  %2897 = vst [vmem:[%s2586] ss:$9 sm:$0xff] %v2574
  %2898 = vst [vmem:[%s2588] ss:$9 sm:$0xff] %v2576
  %2899 = vst [vmem:[%s2590] ss:$9 sm:$0xff] %v2578
  %v2900 = vld [vmem:[#allocation1] sm:$0xff]
  %v2901 = vld [vmem:[#allocation1 + $0x9] sm:$0xff]
  %v2966 = vpack.c.bf16 %v2595, %v2594
  %v2967 = vpack.c.bf16 %v2605, %v2604
  %v2968 = vpack.c.bf16 %v2615, %v2614
  %v2969 = vpack.c.bf16 %v2625, %v2624
  %v2970 = vpack.c.bf16 %v2635, %v2634
  %v2971 = vpack.c.bf16 %v2645, %v2644
  %v2972 = vpack.c.bf16 %v2655, %v2654
  %v2973 = vpack.c.bf16 %v2664, %v2663
  %v2974 = vpack.c.bf16 %v2674, %v2673
  %v2975 = vpack.c.bf16 %v2684, %v2683
  %v2976 = vpack.c.bf16 %v2694, %v2693
  %v2977 = vpack.c.bf16 %v2704, %v2703
  %v2978 = vpack.c.bf16 %v2714, %v2713
  %v2979 = vpack.c.bf16 %v2724, %v2723
  %v2980 = vpack.c.bf16 %v2734, %v2733
  %v2981 = vpack.c.bf16 %v2743, %v2742
  %v2982 = vpack.c.bf16 %v2753, %v2752
  %v2983 = vpack.c.bf16 %v2763, %v2762
  %v2984 = vpack.c.bf16 %v2773, %v2772
  %v2985 = vpack.c.bf16 %v2783, %v2782
  %v2986 = vpack.c.bf16 %v2793, %v2792
  %v2987 = vpack.c.bf16 %v2803, %v2802
  %v2988 = vpack.c.bf16 %v2813, %v2812
  %v2989 = vpack.c.bf16 %v2822, %v2821
  %v2990 = vpack.c.bf16 %v2832, %v2831
  %v2991 = vpack.c.bf16 %v2842, %v2841
  %v2992 = vpack.c.bf16 %v2852, %v2851
  %v2993 = vpack.c.bf16 %v2862, %v2861
  %v2994 = vpack.c.bf16 %v2872, %v2871
  %v2995 = vpack.c.bf16 %v2882, %v2881
  %v2996 = vpack.c.bf16 %v2892, %v2891
  %v2997 = vpack.c.bf16 %v2901, %v2900
  %vm2998 = vcmask 1043456
  %vm2999 = vcmask 916484
  %vm3000 = vmor %vm2999, %vm2998
  %3001 = vst.msk [vmem:[%s4] sm:$0xff] %vm3000, %v2966
  %3002 = vst.msk [vmem:[%s4 + $0x8] sm:$0xff] %vm3000, %v2967
  %3003 = vst.msk [vmem:[%s4 + $0x10] sm:$0xff] %vm3000, %v2968
  %3004 = vst.msk [vmem:[%s4 + $0x18] sm:$0xff] %vm3000, %v2969
  %3005 = vst.msk [vmem:[%s4 + $0x20] sm:$0xff] %vm3000, %v2970
  %3006 = vst.msk [vmem:[%s4 + $0x28] sm:$0xff] %vm3000, %v2971
  %3007 = vst.msk [vmem:[%s4 + $0x30] sm:$0xff] %vm3000, %v2972
  %vm3008 = vcmask 1043456
  %vm3009 = vsmask.f32 3328
  %vm3010 = vmand %vm3008, %vm3009
  %vm3011 = vcmask 916484
  %vm3012 = vsmask.f32 7424
  %vm3013 = vmand %vm3011, %vm3012
  %vm3014 = vmor %vm3013, %vm3010
  %v3015 = vld [vmem:[%s4 + $0x38] sm:$0xff]
  %v3016 = vsel %vm3014, %v2973, %v3015
  %3017 = vst [vmem:[%s4 + $0x38] sm:$0xff] %v3016
  %3018 = vst.msk [vmem:[%s4 + $0x40] sm:$0xff] %vm3000, %v2974
  %3019 = vst.msk [vmem:[%s4 + $0x48] sm:$0xff] %vm3000, %v2975
  %3020 = vst.msk [vmem:[%s4 + $0x50] sm:$0xff] %vm3000, %v2976
  %3021 = vst.msk [vmem:[%s4 + $0x58] sm:$0xff] %vm3000, %v2977
  %3022 = vst.msk [vmem:[%s4 + $0x60] sm:$0xff] %vm3000, %v2978
  %3023 = vst.msk [vmem:[%s4 + $0x68] sm:$0xff] %vm3000, %v2979
  %3024 = vst.msk [vmem:[%s4 + $0x70] sm:$0xff] %vm3000, %v2980
  %v3025 = vld [vmem:[%s4 + $0x78] sm:$0xff]
  %v3026 = vsel %vm3014, %v2981, %v3025
  %3027 = vst [vmem:[%s4 + $0x78] sm:$0xff] %v3026
  %3028 = vst.msk [vmem:[%s4 + $0x80] sm:$0xff] %vm3000, %v2982
  %3029 = vst.msk [vmem:[%s4 + $0x88] sm:$0xff] %vm3000, %v2983
  %3030 = vst.msk [vmem:[%s4 + $0x90] sm:$0xff] %vm3000, %v2984
  %3031 = vst.msk [vmem:[%s4 + $0x98] sm:$0xff] %vm3000, %v2985
  %3032 = vst.msk [vmem:[%s4 + $0xa0] sm:$0xff] %vm3000, %v2986
  %3033 = vst.msk [vmem:[%s4 + $0xa8] sm:$0xff] %vm3000, %v2987
  %3034 = vst.msk [vmem:[%s4 + $0xb0] sm:$0xff] %vm3000, %v2988
  %v3035 = vld [vmem:[%s4 + $0xb8] sm:$0xff]
  %v3036 = vsel %vm3014, %v2989, %v3035
  %3037 = vst [vmem:[%s4 + $0xb8] sm:$0xff] %v3036
  %3038 = vst.msk [vmem:[%s4 + $0xc0] sm:$0xff] %vm3000, %v2990
  %3039 = vst.msk [vmem:[%s4 + $0xc8] sm:$0xff] %vm3000, %v2991
  %3040 = vst.msk [vmem:[%s4 + $0xd0] sm:$0xff] %vm3000, %v2992
  %3041 = vst.msk [vmem:[%s4 + $0xd8] sm:$0xff] %vm3000, %v2993
  %3042 = vst.msk [vmem:[%s4 + $0xe0] sm:$0xff] %vm3000, %v2994
  %3043 = vst.msk [vmem:[%s4 + $0xe8] sm:$0xff] %vm3000, %v2995
  %3044 = vst.msk [vmem:[%s4 + $0xf0] sm:$0xff] %vm3000, %v2996
  %v3045 = vld [vmem:[%s4 + $0xf8] sm:$0xff]
  %v3046 = vsel %vm3014, %v2997, %v3045
  %3047 = vst [vmem:[%s4 + $0xf8] sm:$0xff] %v3046
  // Predicated region
  $region18: #{patch_embedding_forward.2} parent=0 // pred_check
    _
  $region19: #{patch_embedding_forward.2} parent=0 // pred_check_branch
    %3049 = sbr.rel (0) target = $region21
  $region20: #{patch_embedding_forward.2} parent=0 // pred_region
    _
  $region21: #{patch_embedding_forward.2} parent=0 // pred_fallthru
    _
  // Predicated region
  $region22: #{patch_embedding_forward.2} parent=0 // pred_check
    _
  $region23: #{patch_embedding_forward.2} parent=0 // pred_check_branch
    %3051 = sbr.rel (0) target = $region25
  $region24: #{patch_embedding_forward.2} parent=0 // pred_region
    _
  $region25: #{patch_embedding_forward.2} parent=0 // pred_fallthru
    _

// kernel: patch_embedding_forward.3
$region0: #{patch_embedding_forward.3}
  #allocation0 [shape = 'u32[]', space=smem, size = 0x4, offset = 0x4, fixed_abs, tag = 'smem constant byte address 0x4 - core index']
  #allocation1 [shape = 'u32[72,128]{1,0:T(1,128)}', space=vmem, size = 0x9000, scoped, tag = 'internal scratch']
  %s0 = inlined_call_operand.vmem [shape: bf16[4,6,2520], index: 0, kind: input, shape index: {}]
  %s1 = inlined_call_operand.vmem [shape: bf16[2520,40], index: 1, kind: input, shape index: {}]
  %s2 = inlined_call_operand.vmem [shape: f32[1,40], index: 2, kind: input, shape index: {}]
  %s3 = inlined_call_operand.vmem [shape: f32[1,40], index: 3, kind: input, shape index: {}]
  %s4 = inlined_call_operand.vmem [shape: bf16[40,40], index: 4, kind: input, shape index: {}]
  %s5 = inlined_call_operand.vmem [shape: f32[1,40], index: 5, kind: input, shape index: {}]
  %s6 = inlined_call_operand.vmem [shape: f32[4,6,40], index: 6, kind: output, shape index: {}]
  %s7 = sld [smem:[#allocation0]]
  $region34: #{patch_embedding_forward.3} parent=0
    _
  %s9 = ssub.s32 1, %s7
  %s10 = scalar_select 0, %s9, %s7
  // Predicated region
  $region2: #{patch_embedding_forward.3} parent=0 // pred_check
    _
  $region3: #{patch_embedding_forward.3} parent=0 // pred_check_branch
    %12 = sbr.rel (0) target = $region5
  $region4: #{patch_embedding_forward.3} parent=0 // pred_region
    _
  $region5: #{patch_embedding_forward.3} parent=0 // pred_fallthru
    _
  // Predicated region
  $region6: #{patch_embedding_forward.3} parent=0 // pred_check
    _
  $region7: #{patch_embedding_forward.3} parent=0 // pred_check_branch
    %14 = sbr.rel (0) target = $region9
  $region8: #{patch_embedding_forward.3} parent=0 // pred_region
    _
  $region9: #{patch_embedding_forward.3} parent=0 // pred_fallthru
    _
  // Predicated region
  $region10: #{patch_embedding_forward.3} parent=0 // pred_check
    _
  $region11: #{patch_embedding_forward.3} parent=0 // pred_check_branch
    %16 = sbr.rel (0) target = $region13
  $region12: #{patch_embedding_forward.3} parent=0 // pred_region
    _
  $region13: #{patch_embedding_forward.3} parent=0 // pred_fallthru
    _
  // Predicated region
  $region14: #{patch_embedding_forward.3} parent=0 // pred_check
    _
  $region15: #{patch_embedding_forward.3} parent=0 // pred_check_branch
    %18 = sbr.rel (0) target = $region17
  $region16: #{patch_embedding_forward.3} parent=0 // pred_region
    _
  $region17: #{patch_embedding_forward.3} parent=0 // pred_fallthru
    _
  // Predicated region
  $region18: #{patch_embedding_forward.3} parent=0 // pred_check
    _
  $region19: #{patch_embedding_forward.3} parent=0 // pred_check_branch
    %20 = sbr.rel (0) target = $region21
  $region20: #{patch_embedding_forward.3} parent=0 // pred_region
    _
  $region21: #{patch_embedding_forward.3} parent=0 // pred_fallthru
    _
  // Predicated region
  $region22: #{patch_embedding_forward.3} parent=0 // pred_check
    _
  $region23: #{patch_embedding_forward.3} parent=0 // pred_check_branch
    %22 = sbr.rel (0) target = $region25
  $region24: #{patch_embedding_forward.3} parent=0 // pred_region
    _
  $region25: #{patch_embedding_forward.3} parent=0 // pred_fallthru
    _
  %v24 = vld [vmem:[%s0] sm:$0x77]
  %v25 = vld [vmem:[%s0 + $0x8] sm:$0x77]
  %v26 = vld [vmem:[%s0 + $0x10] sm:$0x77]
  %v27 = vld [vmem:[%s0 + $0x18] sm:$0x77]
  %v28 = vld [vmem:[%s0 + $0x20] sm:$0x77]
  %v29 = vld [vmem:[%s0 + $0x28] sm:$0x77]
  %v30 = vld [vmem:[%s0 + $0x30] sm:$0x77]
  %v31 = vld [vmem:[%s0 + $0x38] sm:$0x77]
  %v32 = vld [vmem:[%s0 + $0x40] sm:$0x77]
  %v33 = vld [vmem:[%s0 + $0x48] sm:$0x77]
  %v34 = vld [vmem:[%s0 + $0x50] sm:$0x77]
  %v35 = vld [vmem:[%s0 + $0x58] sm:$0x77]
  %v36 = vld [vmem:[%s0 + $0x60] sm:$0x77]
  %v37 = vld [vmem:[%s0 + $0x68] sm:$0x77]
  %v38 = vld [vmem:[%s0 + $0x70] sm:$0x77]
  %v39 = vld [vmem:[%s0 + $0x78] sm:$0x77]
  %v40 = vld [vmem:[%s0 + $0x80] sm:$0x77]
  %v41 = vld [vmem:[%s0 + $0x88] sm:$0x77]
  %v42 = vld [vmem:[%s0 + $0x90] sm:$0x77]
  %v43 = vld [vmem:[%s0 + $0x98] sm:$0x77]
  %v44 = vld [vmem:[%s0 + $0xa0] sm:$0x77]
  %v45 = vld [vmem:[%s0 + $0xa8] sm:$0x77]
  %v46 = vld [vmem:[%s0 + $0xb0] sm:$0x77]
  %v47 = vld [vmem:[%s0 + $0xb8] sm:$0x77]
  %v48 = vld [vmem:[%s0 + $0xc0] sm:$0x77]
  %v49 = vld [vmem:[%s0 + $0xc8] sm:$0x77]
  %v50 = vld [vmem:[%s0 + $0xd0] sm:$0x77]
  %v51 = vld [vmem:[%s0 + $0xd8] sm:$0x77]
  %v52 = vld [vmem:[%s0 + $0xe0] sm:$0x77]
  %v53 = vld [vmem:[%s0 + $0xe8] sm:$0x77]
  %v54 = vld [vmem:[%s0 + $0xf0] sm:$0x77]
  %v55 = vld [vmem:[%s0 + $0xf8] sm:$0x77]
  %v56 = vld [vmem:[%s0 + $0x100] sm:$0x77]
  %v57 = vld [vmem:[%s0 + $0x108] sm:$0x77]
  %v58 = vld [vmem:[%s0 + $0x110] sm:$0x77]
  %v59 = vld [vmem:[%s0 + $0x118] sm:$0x77]
  %v60 = vld [vmem:[%s0 + $0x120] sm:$0x77]
  %v61 = vld [vmem:[%s0 + $0x128] sm:$0x77]
  %v62 = vld [vmem:[%s0 + $0x130] sm:$0x77]
  %v63 = vld [vmem:[%s0 + $0x138] sm:$0x77]
  %v104 = vrot.slane %v24, 3
  %v105 = vrot.slane %v25, 6
  %v106 = vrot.slane %v25, 1
  %v107 = vrot.slane %v26, 4
  %v108 = vrot.slane %v26, 7
  %v109 = vrot.slane %v27, 2
  %v110 = vrot.slane %v27, 5
  %v111 = vrot.slane %v28, 3
  %v112 = vrot.slane %v29, 6
  %v113 = vrot.slane %v29, 1
  %v114 = vrot.slane %v30, 4
  %v115 = vrot.slane %v30, 7
  %v116 = vrot.slane %v31, 2
  %v117 = vrot.slane %v31, 5
  %v118 = vrot.slane %v32, 3
  %v119 = vrot.slane %v33, 6
  %v120 = vrot.slane %v33, 1
  %v121 = vrot.slane %v34, 3
  %v122 = vrot.slane %v35, 6
  %v123 = vrot.slane %v35, 1
  %v124 = vrot.slane %v36, 4
  %v125 = vrot.slane %v36, 7
  %v126 = vrot.slane %v37, 2
  %v127 = vrot.slane %v37, 5
  %v128 = vrot.slane %v38, 3
  %v129 = vrot.slane %v39, 6
  %v130 = vrot.slane %v39, 1
  %v131 = vrot.slane %v40, 4
  %v132 = vrot.slane %v40, 7
  %v133 = vrot.slane %v41, 2
  %v134 = vrot.slane %v41, 5
  %v135 = vrot.slane %v42, 3
  %v136 = vrot.slane %v43, 6
  %v137 = vrot.slane %v43, 1
  %v138 = vrot.slane %v44, 3
  %v139 = vrot.slane %v45, 6
  %v140 = vrot.slane %v45, 1
  %v141 = vrot.slane %v46, 4
  %v142 = vrot.slane %v46, 7
  %v143 = vrot.slane %v47, 2
  %v144 = vrot.slane %v47, 5
  %v145 = vrot.slane %v48, 3
  %v146 = vrot.slane %v49, 6
  %v147 = vrot.slane %v49, 1
  %v148 = vrot.slane %v50, 4
  %v149 = vrot.slane %v50, 7
  %v150 = vrot.slane %v51, 2
  %v151 = vrot.slane %v51, 5
  %v152 = vrot.slane %v52, 3
  %v153 = vrot.slane %v53, 6
  %v154 = vrot.slane %v53, 1
  %v155 = vrot.slane %v54, 3
  %v156 = vrot.slane %v55, 6
  %v157 = vrot.slane %v55, 1
  %v158 = vrot.slane %v56, 4
  %v159 = vrot.slane %v56, 7
  %v160 = vrot.slane %v57, 2
  %v161 = vrot.slane %v57, 5
  %v162 = vrot.slane %v58, 3
  %v163 = vrot.slane %v59, 6
  %v164 = vrot.slane %v59, 1
  %v165 = vrot.slane %v60, 4
  %v166 = vrot.slane %v60, 7
  %v167 = vrot.slane %v61, 2
  %v168 = vrot.slane %v61, 5
  %v169 = vrot.slane %v62, 3
  %v170 = vrot.slane %v63, 6
  %v171 = vrot.slane %v63, 1
  %vm172 = vcmask 1040384
  %v175 = vsel %vm172, %v24, %v104
  %vm176 = vcmask 1042434
  %v179 = vsel %vm176, %v105, %v106
  %vm180 = vcmask 1041408
  %v181 = vsel %vm180, %v175, %v179
  %vm182 = vcmask 1044484
  %v185 = vsel %vm182, %v107, %v108
  %vm186 = vcmask 1046534
  %v189 = vsel %vm186, %v109, %v110
  %vm190 = vcmask 1045508
  %v191 = vsel %vm190, %v185, %v189
  %vm192 = vcmask 1043456
  %v193 = vsel %vm192, %v181, %v191
  %v196 = vsel %vm172, %v28, %v111
  %v199 = vsel %vm176, %v112, %v113
  %v200 = vsel %vm180, %v196, %v199
  %v203 = vsel %vm182, %v114, %v115
  %v206 = vsel %vm186, %v116, %v117
  %v207 = vsel %vm190, %v203, %v206
  %v208 = vsel %vm192, %v200, %v207
  %v211 = vsel %vm172, %v32, %v118
  %v214 = vsel %vm176, %v119, %v120
  %v215 = vsel %vm180, %v211, %v214
  %vm216 = vcmask 1041409
  %v217 = vsel %vm216, %v24, %v104
  %vm218 = vcmask 1043459
  %v219 = vsel %vm218, %v105, %v106
  %vm220 = vcmask 1042433
  %v221 = vsel %vm220, %v217, %v219
  %vm222 = vcmask 1045509
  %v223 = vsel %vm222, %v107, %v108
  %vm224 = vcmask 1046528
  %v225 = vsel %vm224, %v110, %v109
  %vm226 = vcmask 1046533
  %v227 = vsel %vm226, %v223, %v225
  %vm228 = vcmask 1044481
  %v229 = vsel %vm228, %v221, %v227
  %v231 = vrot.slane %v229, 1
  %v232 = vsel %vm216, %v28, %v111
  %v233 = vsel %vm218, %v112, %v113
  %v234 = vsel %vm220, %v232, %v233
  %v235 = vsel %vm222, %v114, %v115
  %v236 = vsel %vm224, %v117, %v116
  %v237 = vsel %vm226, %v235, %v236
  %v238 = vsel %vm228, %v234, %v237
  %v240 = vrot.slane %v238, 1
  %v241 = vsel %vm216, %v32, %v118
  %v242 = vsel %vm218, %v119, %v120
  %v243 = vsel %vm220, %v241, %v242
  %v245 = vrot.slane %v243, 1
  %v246 = vsel %vm176, %v24, %v104
  %v247 = vsel %vm182, %v105, %v106
  %vm248 = vcmask 1043458
  %v249 = vsel %vm248, %v246, %v247
  %v250 = vsel %vm186, %v107, %v108
  %v251 = vsel %vm172, %v109, %v110
  %vm252 = vcmask 1045504
  %v253 = vsel %vm252, %v251, %v250
  %vm254 = vcmask 1045506
  %v255 = vsel %vm254, %v249, %v253
  %v257 = vrot.slane %v255, 2
  %v258 = vsel %vm176, %v28, %v111
  %v259 = vsel %vm182, %v112, %v113
  %v260 = vsel %vm248, %v258, %v259
  %v261 = vsel %vm186, %v114, %v115
  %v262 = vsel %vm172, %v116, %v117
  %v263 = vsel %vm252, %v262, %v261
  %v264 = vsel %vm254, %v260, %v263
  %v266 = vrot.slane %v264, 2
  %v267 = vsel %vm176, %v32, %v118
  %v268 = vsel %vm182, %v119, %v120
  %v269 = vsel %vm248, %v267, %v268
  %v271 = vrot.slane %v269, 2
  %v274 = vsel %vm172, %v34, %v121
  %v277 = vsel %vm176, %v122, %v123
  %v278 = vsel %vm180, %v274, %v277
  %v281 = vsel %vm182, %v124, %v125
  %v284 = vsel %vm186, %v126, %v127
  %v285 = vsel %vm190, %v281, %v284
  %v286 = vsel %vm192, %v278, %v285
  %v289 = vsel %vm172, %v38, %v128
  %v292 = vsel %vm176, %v129, %v130
  %v293 = vsel %vm180, %v289, %v292
  %v296 = vsel %vm182, %v131, %v132
  %v299 = vsel %vm186, %v133, %v134
  %v300 = vsel %vm190, %v296, %v299
  %v301 = vsel %vm192, %v293, %v300
  %v304 = vsel %vm172, %v42, %v135
  %v307 = vsel %vm176, %v136, %v137
  %v308 = vsel %vm180, %v304, %v307
  %v309 = vsel %vm216, %v34, %v121
  %v310 = vsel %vm218, %v122, %v123
  %v311 = vsel %vm220, %v309, %v310
  %v312 = vsel %vm222, %v124, %v125
  %v313 = vsel %vm224, %v127, %v126
  %v314 = vsel %vm226, %v312, %v313
  %v315 = vsel %vm228, %v311, %v314
  %v317 = vrot.slane %v315, 1
  %v318 = vsel %vm216, %v38, %v128
  %v319 = vsel %vm218, %v129, %v130
  %v320 = vsel %vm220, %v318, %v319
  %v321 = vsel %vm222, %v131, %v132
  %v322 = vsel %vm224, %v134, %v133
  %v323 = vsel %vm226, %v321, %v322
  %v324 = vsel %vm228, %v320, %v323
  %v326 = vrot.slane %v324, 1
  %v327 = vsel %vm216, %v42, %v135
  %v328 = vsel %vm218, %v136, %v137
  %v329 = vsel %vm220, %v327, %v328
  %v331 = vrot.slane %v329, 1
  %v332 = vsel %vm176, %v34, %v121
  %v333 = vsel %vm182, %v122, %v123
  %v334 = vsel %vm248, %v332, %v333
  %v335 = vsel %vm186, %v124, %v125
  %v336 = vsel %vm172, %v126, %v127
  %v337 = vsel %vm252, %v336, %v335
  %v338 = vsel %vm254, %v334, %v337
  %v340 = vrot.slane %v338, 2
  %v341 = vsel %vm176, %v38, %v128
  %v342 = vsel %vm182, %v129, %v130
  %v343 = vsel %vm248, %v341, %v342
  %v344 = vsel %vm186, %v131, %v132
  %v345 = vsel %vm172, %v133, %v134
  %v346 = vsel %vm252, %v345, %v344
  %v347 = vsel %vm254, %v343, %v346
  %v349 = vrot.slane %v347, 2
  %v350 = vsel %vm176, %v42, %v135
  %v351 = vsel %vm182, %v136, %v137
  %v352 = vsel %vm248, %v350, %v351
  %v354 = vrot.slane %v352, 2
  %v357 = vsel %vm172, %v44, %v138
  %v360 = vsel %vm176, %v139, %v140
  %v361 = vsel %vm180, %v357, %v360
  %v364 = vsel %vm182, %v141, %v142
  %v367 = vsel %vm186, %v143, %v144
  %v368 = vsel %vm190, %v364, %v367
  %v369 = vsel %vm192, %v361, %v368
  %v372 = vsel %vm172, %v48, %v145
  %v375 = vsel %vm176, %v146, %v147
  %v376 = vsel %vm180, %v372, %v375
  %v379 = vsel %vm182, %v148, %v149
  %v382 = vsel %vm186, %v150, %v151
  %v383 = vsel %vm190, %v379, %v382
  %v384 = vsel %vm192, %v376, %v383
  %v387 = vsel %vm172, %v52, %v152
  %v390 = vsel %vm176, %v153, %v154
  %v391 = vsel %vm180, %v387, %v390
  %v392 = vsel %vm216, %v44, %v138
  %v393 = vsel %vm218, %v139, %v140
  %v394 = vsel %vm220, %v392, %v393
  %v395 = vsel %vm222, %v141, %v142
  %v396 = vsel %vm224, %v144, %v143
  %v397 = vsel %vm226, %v395, %v396
  %v398 = vsel %vm228, %v394, %v397
  %v400 = vrot.slane %v398, 1
  %v401 = vsel %vm216, %v48, %v145
  %v402 = vsel %vm218, %v146, %v147
  %v403 = vsel %vm220, %v401, %v402
  %v404 = vsel %vm222, %v148, %v149
  %v405 = vsel %vm224, %v151, %v150
  %v406 = vsel %vm226, %v404, %v405
  %v407 = vsel %vm228, %v403, %v406
  %v409 = vrot.slane %v407, 1
  %v410 = vsel %vm216, %v52, %v152
  %v411 = vsel %vm218, %v153, %v154
  %v412 = vsel %vm220, %v410, %v411
  %v414 = vrot.slane %v412, 1
  %v415 = vsel %vm176, %v44, %v138
  %v416 = vsel %vm182, %v139, %v140
  %v417 = vsel %vm248, %v415, %v416
  %v418 = vsel %vm186, %v141, %v142
  %v419 = vsel %vm172, %v143, %v144
  %v420 = vsel %vm252, %v419, %v418
  %v421 = vsel %vm254, %v417, %v420
  %v423 = vrot.slane %v421, 2
  %v424 = vsel %vm176, %v48, %v145
  %v425 = vsel %vm182, %v146, %v147
  %v426 = vsel %vm248, %v424, %v425
  %v427 = vsel %vm186, %v148, %v149
  %v428 = vsel %vm172, %v150, %v151
  %v429 = vsel %vm252, %v428, %v427
  %v430 = vsel %vm254, %v426, %v429
  %v432 = vrot.slane %v430, 2
  %v433 = vsel %vm176, %v52, %v152
  %v434 = vsel %vm182, %v153, %v154
  %v435 = vsel %vm248, %v433, %v434
  %v437 = vrot.slane %v435, 2
  %v440 = vsel %vm172, %v54, %v155
  %v443 = vsel %vm176, %v156, %v157
  %v444 = vsel %vm180, %v440, %v443
  %v447 = vsel %vm182, %v158, %v159
  %v450 = vsel %vm186, %v160, %v161
  %v451 = vsel %vm190, %v447, %v450
  %v452 = vsel %vm192, %v444, %v451
  %v455 = vsel %vm172, %v58, %v162
  %v458 = vsel %vm176, %v163, %v164
  %v459 = vsel %vm180, %v455, %v458
  %v462 = vsel %vm182, %v165, %v166
  %v465 = vsel %vm186, %v167, %v168
  %v466 = vsel %vm190, %v462, %v465
  %v467 = vsel %vm192, %v459, %v466
  %v470 = vsel %vm172, %v62, %v169
  %v473 = vsel %vm176, %v170, %v171
  %v474 = vsel %vm180, %v470, %v473
  %v475 = vsel %vm216, %v54, %v155
  %v476 = vsel %vm218, %v156, %v157
  %v477 = vsel %vm220, %v475, %v476
  %v478 = vsel %vm222, %v158, %v159
  %v479 = vsel %vm224, %v161, %v160
  %v480 = vsel %vm226, %v478, %v479
  %v481 = vsel %vm228, %v477, %v480
  %v483 = vrot.slane %v481, 1
  %v484 = vsel %vm216, %v58, %v162
  %v485 = vsel %vm218, %v163, %v164
  %v486 = vsel %vm220, %v484, %v485
  %v487 = vsel %vm222, %v165, %v166
  %v488 = vsel %vm224, %v168, %v167
  %v489 = vsel %vm226, %v487, %v488
  %v490 = vsel %vm228, %v486, %v489
  %v492 = vrot.slane %v490, 1
  %v493 = vsel %vm216, %v62, %v169
  %v494 = vsel %vm218, %v170, %v171
  %v495 = vsel %vm220, %v493, %v494
  %v497 = vrot.slane %v495, 1
  %v498 = vsel %vm176, %v54, %v155
  %v499 = vsel %vm182, %v156, %v157
  %v500 = vsel %vm248, %v498, %v499
  %v501 = vsel %vm186, %v158, %v159
  %v502 = vsel %vm172, %v160, %v161
  %v503 = vsel %vm252, %v502, %v501
  %v504 = vsel %vm254, %v500, %v503
  %v506 = vrot.slane %v504, 2
  %v507 = vsel %vm176, %v58, %v162
  %v508 = vsel %vm182, %v163, %v164
  %v509 = vsel %vm248, %v507, %v508
  %v510 = vsel %vm186, %v165, %v166
  %v511 = vsel %vm172, %v167, %v168
  %v512 = vsel %vm252, %v511, %v510
  %v513 = vsel %vm254, %v509, %v512
  %v515 = vrot.slane %v513, 2
  %v516 = vsel %vm176, %v62, %v169
  %v517 = vsel %vm182, %v170, %v171
  %v518 = vsel %vm248, %v516, %v517
  %v520 = vrot.slane %v518, 2
  %v521 = vld [vmem:[%s1] sm:$0xf]
  %v522 = vld [vmem:[%s1 + $0x4] sm:$0xf]
  %v523 = vld [vmem:[%s1 + $0x8] sm:$0xf]
  %v524 = vld [vmem:[%s1 + $0xc] sm:$0xf]
  %v525 = vld [vmem:[%s1 + $0x10] sm:$0xf]
  %v526 = vld [vmem:[%s1 + $0x14] sm:$0xf]
  %v527 = vld [vmem:[%s1 + $0x18] sm:$0xf]
  %v528 = vld [vmem:[%s1 + $0x1c] sm:$0xf]
  %v529 = vld [vmem:[%s1 + $0x20] sm:$0xf]
  %v530 = vld [vmem:[%s1 + $0x24] sm:$0xf]
  %v531 = vld [vmem:[%s1 + $0x28] sm:$0xf]
  %v532 = vld [vmem:[%s1 + $0x2c] sm:$0xf]
  %v533 = vld [vmem:[%s1 + $0x30] sm:$0xf]
  %v534 = vld [vmem:[%s1 + $0x34] sm:$0xf]
  %v535 = vld [vmem:[%s1 + $0x38] sm:$0xf]
  %v536 = vld [vmem:[%s1 + $0x3c] sm:$0xf]
  %v537 = vld [vmem:[%s1 + $0x40] sm:$0xf]
  %v538 = vld [vmem:[%s1 + $0x44] sm:$0xf]
  %v539 = vld [vmem:[%s1 + $0x48] sm:$0xf]
  %v540 = vld [vmem:[%s1 + $0x4c] sm:$0xf]
  %v541 = vld [vmem:[%s1 + $0x50] sm:$0xf]
  %v542 = vld [vmem:[%s1 + $0x54] sm:$0xf]
  %v543 = vld [vmem:[%s1 + $0x58] sm:$0xf]
  %v544 = vld [vmem:[%s1 + $0x5c] sm:$0xf]
  %v545 = vld [vmem:[%s1 + $0x60] sm:$0xf]
  %v546 = vld [vmem:[%s1 + $0x64] sm:$0xf]
  %v547 = vld [vmem:[%s1 + $0x68] sm:$0xf]
  %v548 = vld [vmem:[%s1 + $0x6c] sm:$0xf]
  %v549 = vld [vmem:[%s1 + $0x70] sm:$0xf]
  %v550 = vld [vmem:[%s1 + $0x74] sm:$0xf]
  %v551 = vld [vmem:[%s1 + $0x78] sm:$0xf]
  %v552 = vld [vmem:[%s1 + $0x7c] sm:$0xf]
  %v553 = vld [vmem:[%s1 + $0x80] sm:$0xf]
  %v554 = vld [vmem:[%s1 + $0x84] sm:$0xf]
  %v555 = vld [vmem:[%s1 + $0x88] sm:$0xf]
  %v556 = vld [vmem:[%s1 + $0x8c] sm:$0xf]
  %v557 = vld [vmem:[%s1 + $0x90] sm:$0xf]
  %v558 = vld [vmem:[%s1 + $0x94] sm:$0xf]
  %v559 = vld [vmem:[%s1 + $0x98] sm:$0xf]
  %v560 = vld [vmem:[%s1 + $0x9c] sm:$0xf]
  %v561 = vld [vmem:[%s1 + $0xa0] sm:$0xf]
  %v562 = vld [vmem:[%s1 + $0xa4] sm:$0xf]
  %v563 = vld [vmem:[%s1 + $0xa8] sm:$0xf]
  %v564 = vld [vmem:[%s1 + $0xac] sm:$0xf]
  %v565 = vld [vmem:[%s1 + $0xb0] sm:$0xf]
  %v566 = vld [vmem:[%s1 + $0xb4] sm:$0xf]
  %v567 = vld [vmem:[%s1 + $0xb8] sm:$0xf]
  %v568 = vld [vmem:[%s1 + $0xbc] sm:$0xf]
  %v569 = vld [vmem:[%s1 + $0xc0] sm:$0xf]
  %v570 = vld [vmem:[%s1 + $0xc4] sm:$0xf]
  %v571 = vld [vmem:[%s1 + $0xc8] sm:$0xf]
  %v572 = vld [vmem:[%s1 + $0xcc] sm:$0xf]
  %v573 = vld [vmem:[%s1 + $0xd0] sm:$0xf]
  %v574 = vld [vmem:[%s1 + $0xd4] sm:$0xf]
  %v575 = vld [vmem:[%s1 + $0xd8] sm:$0xf]
  %v576 = vld [vmem:[%s1 + $0xdc] sm:$0xf]
  %v577 = vld [vmem:[%s1 + $0xe0] sm:$0xf]
  %v578 = vld [vmem:[%s1 + $0xe4] sm:$0xf]
  %v579 = vld [vmem:[%s1 + $0xe8] sm:$0xf]
  %v580 = vld [vmem:[%s1 + $0xec] sm:$0xf]
  %v581 = vld [vmem:[%s1 + $0xf0] sm:$0xf]
  %v582 = vld [vmem:[%s1 + $0xf4] sm:$0xf]
  %v583 = vld [vmem:[%s1 + $0xf8] sm:$0xf]
  %v584 = vld [vmem:[%s1 + $0xfc] sm:$0xf]
  %v585 = vld [vmem:[%s1 + $0x100] sm:$0xf]
  %v586 = vld [vmem:[%s1 + $0x104] sm:$0xf]
  %v587 = vld [vmem:[%s1 + $0x108] sm:$0xf]
  %v588 = vld [vmem:[%s1 + $0x10c] sm:$0xf]
  %v589 = vld [vmem:[%s1 + $0x110] sm:$0xf]
  %v590 = vld [vmem:[%s1 + $0x114] sm:$0xf]
  %v591 = vld [vmem:[%s1 + $0x118] sm:$0xf]
  %v592 = vld [vmem:[%s1 + $0x11c] sm:$0xf]
  %v593 = vld [vmem:[%s1 + $0x120] sm:$0xf]
  %v594 = vld [vmem:[%s1 + $0x124] sm:$0xf]
  %v595 = vld [vmem:[%s1 + $0x128] sm:$0xf]
  %v596 = vld [vmem:[%s1 + $0x12c] sm:$0xf]
  %v597 = vld [vmem:[%s1 + $0x130] sm:$0xf]
  %v598 = vld [vmem:[%s1 + $0x134] sm:$0xf]
  %v599 = vld [vmem:[%s1 + $0x138] sm:$0xf]
  %v600 = vld [vmem:[%s1 + $0x13c] sm:$0xf]
  %v601 = vld [vmem:[%s1 + $0x140] sm:$0xf]
  %v602 = vld [vmem:[%s1 + $0x144] sm:$0xf]
  %v603 = vld [vmem:[%s1 + $0x148] sm:$0xf]
  %v604 = vld [vmem:[%s1 + $0x14c] sm:$0xf]
  %v605 = vld [vmem:[%s1 + $0x150] sm:$0xf]
  %v606 = vld [vmem:[%s1 + $0x154] sm:$0xf]
  %v607 = vld [vmem:[%s1 + $0x158] sm:$0xf]
  %v608 = vld [vmem:[%s1 + $0x15c] sm:$0xf]
  %v609 = vld [vmem:[%s1 + $0x160] sm:$0xf]
  %v610 = vld [vmem:[%s1 + $0x164] sm:$0xf]
  %v611 = vld [vmem:[%s1 + $0x168] sm:$0xf]
  %v612 = vld [vmem:[%s1 + $0x16c] sm:$0xf]
  %v613 = vld [vmem:[%s1 + $0x170] sm:$0xf]
  %v614 = vld [vmem:[%s1 + $0x174] sm:$0xf]
  %v615 = vld [vmem:[%s1 + $0x178] sm:$0xf]
  %v616 = vld [vmem:[%s1 + $0x17c] sm:$0xf]
  %v617 = vld [vmem:[%s1 + $0x180] sm:$0xf]
  %v618 = vld [vmem:[%s1 + $0x184] sm:$0xf]
  %v619 = vld [vmem:[%s1 + $0x188] sm:$0xf]
  %v620 = vld [vmem:[%s1 + $0x18c] sm:$0xf]
  %v621 = vld [vmem:[%s1 + $0x190] sm:$0xf]
  %v622 = vld [vmem:[%s1 + $0x194] sm:$0xf]
  %v623 = vld [vmem:[%s1 + $0x198] sm:$0xf]
  %v624 = vld [vmem:[%s1 + $0x19c] sm:$0xf]
  %v625 = vld [vmem:[%s1 + $0x1a0] sm:$0xf]
  %v626 = vld [vmem:[%s1 + $0x1a4] sm:$0xf]
  %v627 = vld [vmem:[%s1 + $0x1a8] sm:$0xf]
  %v628 = vld [vmem:[%s1 + $0x1ac] sm:$0xf]
  %v629 = vld [vmem:[%s1 + $0x1b0] sm:$0xf]
  %v630 = vld [vmem:[%s1 + $0x1b4] sm:$0xf]
  %v631 = vld [vmem:[%s1 + $0x1b8] sm:$0xf]
  %v632 = vld [vmem:[%s1 + $0x1bc] sm:$0xf]
  %v633 = vld [vmem:[%s1 + $0x1c0] sm:$0xf]
  %v634 = vld [vmem:[%s1 + $0x1c4] sm:$0xf]
  %v635 = vld [vmem:[%s1 + $0x1c8] sm:$0xf]
  %v636 = vld [vmem:[%s1 + $0x1cc] sm:$0xf]
  %v637 = vld [vmem:[%s1 + $0x1d0] sm:$0xf]
  %v638 = vld [vmem:[%s1 + $0x1d4] sm:$0xf]
  %v639 = vld [vmem:[%s1 + $0x1d8] sm:$0xf]
  %v640 = vld [vmem:[%s1 + $0x1dc] sm:$0xf]
  %v641 = vld [vmem:[%s1 + $0x1e0] sm:$0xf]
  %v642 = vld [vmem:[%s1 + $0x1e4] sm:$0xf]
  %v643 = vld [vmem:[%s1 + $0x1e8] sm:$0xf]
  %v644 = vld [vmem:[%s1 + $0x1ec] sm:$0xf]
  %v645 = vld [vmem:[%s1 + $0x1f0] sm:$0xf]
  %v646 = vld [vmem:[%s1 + $0x1f4] sm:$0xf]
  %v647 = vld [vmem:[%s1 + $0x1f8] sm:$0xf]
  %v648 = vld [vmem:[%s1 + $0x1fc] sm:$0xf]
  %v649 = vld [vmem:[%s1 + $0x200] sm:$0xf]
  %v650 = vld [vmem:[%s1 + $0x204] sm:$0xf]
  %v651 = vld [vmem:[%s1 + $0x208] sm:$0xf]
  %v652 = vld [vmem:[%s1 + $0x20c] sm:$0xf]
  %v653 = vld [vmem:[%s1 + $0x210] sm:$0xf]
  %v654 = vld [vmem:[%s1 + $0x214] sm:$0xf]
  %v655 = vld [vmem:[%s1 + $0x218] sm:$0xf]
  %v656 = vld [vmem:[%s1 + $0x21c] sm:$0xf]
  %v657 = vld [vmem:[%s1 + $0x220] sm:$0xf]
  %v658 = vld [vmem:[%s1 + $0x224] sm:$0xf]
  %v659 = vld [vmem:[%s1 + $0x228] sm:$0xf]
  %v660 = vld [vmem:[%s1 + $0x22c] sm:$0xf]
  %v661 = vld [vmem:[%s1 + $0x230] sm:$0xf]
  %v662 = vld [vmem:[%s1 + $0x234] sm:$0xf]
  %v663 = vld [vmem:[%s1 + $0x238] sm:$0xf]
  %v664 = vld [vmem:[%s1 + $0x23c] sm:$0xf]
  %v665 = vld [vmem:[%s1 + $0x240] sm:$0xf]
  %v666 = vld [vmem:[%s1 + $0x244] sm:$0xf]
  %v667 = vld [vmem:[%s1 + $0x248] sm:$0xf]
  %v668 = vld [vmem:[%s1 + $0x24c] sm:$0xf]
  %v669 = vld [vmem:[%s1 + $0x250] sm:$0xf]
  %v670 = vld [vmem:[%s1 + $0x254] sm:$0xf]
  %v671 = vld [vmem:[%s1 + $0x258] sm:$0xf]
  %v672 = vld [vmem:[%s1 + $0x25c] sm:$0xf]
  %v673 = vld [vmem:[%s1 + $0x260] sm:$0xf]
  %v674 = vld [vmem:[%s1 + $0x264] sm:$0xf]
  %v675 = vld [vmem:[%s1 + $0x268] sm:$0xf]
  %v676 = vld [vmem:[%s1 + $0x26c] sm:$0xf]
  %v677 = vld [vmem:[%s1 + $0x270] sm:$0xf]
  %v678 = vld [vmem:[%s1 + $0x274] sm:$0xf]
  %v679 = vld [vmem:[%s1 + $0x278] sm:$0xf]
  %v680 = vld [vmem:[%s1 + $0x27c] sm:$0xf]
  %v681 = vld [vmem:[%s1 + $0x280] sm:$0xf]
  %v682 = vld [vmem:[%s1 + $0x284] sm:$0xf]
  %v683 = vld [vmem:[%s1 + $0x288] sm:$0xf]
  %v684 = vld [vmem:[%s1 + $0x28c] sm:$0xf]
  %v685 = vld [vmem:[%s1 + $0x290] sm:$0xf]
  %v686 = vld [vmem:[%s1 + $0x294] sm:$0xf]
  %v687 = vld [vmem:[%s1 + $0x298] sm:$0xf]
  %v688 = vld [vmem:[%s1 + $0x29c] sm:$0xf]
  %v689 = vld [vmem:[%s1 + $0x2a0] sm:$0xf]
  %v690 = vld [vmem:[%s1 + $0x2a4] sm:$0xf]
  %v691 = vld [vmem:[%s1 + $0x2a8] sm:$0xf]
  %v692 = vld [vmem:[%s1 + $0x2ac] sm:$0xf]
  %v693 = vld [vmem:[%s1 + $0x2b0] sm:$0xf]
  %v694 = vld [vmem:[%s1 + $0x2b4] sm:$0xf]
  %v695 = vld [vmem:[%s1 + $0x2b8] sm:$0xf]
  %v696 = vld [vmem:[%s1 + $0x2bc] sm:$0xf]
  %v697 = vld [vmem:[%s1 + $0x2c0] sm:$0xf]
  %v698 = vld [vmem:[%s1 + $0x2c4] sm:$0xf]
  %v699 = vld [vmem:[%s1 + $0x2c8] sm:$0xf]
  %v700 = vld [vmem:[%s1 + $0x2cc] sm:$0xf]
  %v701 = vld [vmem:[%s1 + $0x2d0] sm:$0xf]
  %v702 = vld [vmem:[%s1 + $0x2d4] sm:$0xf]
  %v703 = vld [vmem:[%s1 + $0x2d8] sm:$0xf]
  %v704 = vld [vmem:[%s1 + $0x2dc] sm:$0xf]
  %v705 = vld [vmem:[%s1 + $0x2e0] sm:$0xf]
  %v706 = vld [vmem:[%s1 + $0x2e4] sm:$0xf]
  %v707 = vld [vmem:[%s1 + $0x2e8] sm:$0xf]
  %v708 = vld [vmem:[%s1 + $0x2ec] sm:$0xf]
  %v709 = vld [vmem:[%s1 + $0x2f0] sm:$0xf]
  %v710 = vld [vmem:[%s1 + $0x2f4] sm:$0xf]
  %v711 = vld [vmem:[%s1 + $0x2f8] sm:$0xf]
  %v712 = vld [vmem:[%s1 + $0x2fc] sm:$0xf]
  %v713 = vld [vmem:[%s1 + $0x300] sm:$0xf]
  %v714 = vld [vmem:[%s1 + $0x304] sm:$0xf]
  %v715 = vld [vmem:[%s1 + $0x308] sm:$0xf]
  %v716 = vld [vmem:[%s1 + $0x30c] sm:$0xf]
  %v717 = vld [vmem:[%s1 + $0x310] sm:$0xf]
  %v718 = vld [vmem:[%s1 + $0x314] sm:$0xf]
  %v719 = vld [vmem:[%s1 + $0x318] sm:$0xf]
  %v720 = vld [vmem:[%s1 + $0x31c] sm:$0xf]
  %v721 = vld [vmem:[%s1 + $0x320] sm:$0xf]
  %v722 = vld [vmem:[%s1 + $0x324] sm:$0xf]
  %v723 = vld [vmem:[%s1 + $0x328] sm:$0xf]
  %v724 = vld [vmem:[%s1 + $0x32c] sm:$0xf]
  %v725 = vld [vmem:[%s1 + $0x330] sm:$0xf]
  %v726 = vld [vmem:[%s1 + $0x334] sm:$0xf]
  %v727 = vld [vmem:[%s1 + $0x338] sm:$0xf]
  %v728 = vld [vmem:[%s1 + $0x33c] sm:$0xf]
  %v729 = vld [vmem:[%s1 + $0x340] sm:$0xf]
  %v730 = vld [vmem:[%s1 + $0x344] sm:$0xf]
  %v731 = vld [vmem:[%s1 + $0x348] sm:$0xf]
  %v732 = vld [vmem:[%s1 + $0x34c] sm:$0xf]
  %v733 = vld [vmem:[%s1 + $0x350] sm:$0xf]
  %v734 = vld [vmem:[%s1 + $0x354] sm:$0xf]
  %v735 = vld [vmem:[%s1 + $0x358] sm:$0xf]
  %v736 = vld [vmem:[%s1 + $0x35c] sm:$0xf]
  %v737 = vld [vmem:[%s1 + $0x360] sm:$0xf]
  %v738 = vld [vmem:[%s1 + $0x364] sm:$0xf]
  %v739 = vld [vmem:[%s1 + $0x368] sm:$0xf]
  %v740 = vld [vmem:[%s1 + $0x36c] sm:$0xf]
  %v741 = vld [vmem:[%s1 + $0x370] sm:$0xf]
  %v742 = vld [vmem:[%s1 + $0x374] sm:$0xf]
  %v743 = vld [vmem:[%s1 + $0x378] sm:$0xf]
  %v744 = vld [vmem:[%s1 + $0x37c] sm:$0xf]
  %v745 = vld [vmem:[%s1 + $0x380] sm:$0xf]
  %v746 = vld [vmem:[%s1 + $0x384] sm:$0xf]
  %v747 = vld [vmem:[%s1 + $0x388] sm:$0xf]
  %v748 = vld [vmem:[%s1 + $0x38c] sm:$0xf]
  %v749 = vld [vmem:[%s1 + $0x390] sm:$0xf]
  %v750 = vld [vmem:[%s1 + $0x394] sm:$0xf]
  %v751 = vld [vmem:[%s1 + $0x398] sm:$0xf]
  %v752 = vld [vmem:[%s1 + $0x39c] sm:$0xf]
  %v753 = vld [vmem:[%s1 + $0x3a0] sm:$0xf]
  %v754 = vld [vmem:[%s1 + $0x3a4] sm:$0xf]
  %v755 = vld [vmem:[%s1 + $0x3a8] sm:$0xf]
  %v756 = vld [vmem:[%s1 + $0x3ac] sm:$0xf]
  %v757 = vld [vmem:[%s1 + $0x3b0] sm:$0xf]
  %v758 = vld [vmem:[%s1 + $0x3b4] sm:$0xf]
  %v759 = vld [vmem:[%s1 + $0x3b8] sm:$0xf]
  %v760 = vld [vmem:[%s1 + $0x3bc] sm:$0xf]
  %v761 = vld [vmem:[%s1 + $0x3c0] sm:$0xf]
  %v762 = vld [vmem:[%s1 + $0x3c4] sm:$0xf]
  %v763 = vld [vmem:[%s1 + $0x3c8] sm:$0xf]
  %v764 = vld [vmem:[%s1 + $0x3cc] sm:$0xf]
  %v765 = vld [vmem:[%s1 + $0x3d0] sm:$0xf]
  %v766 = vld [vmem:[%s1 + $0x3d4] sm:$0xf]
  %v767 = vld [vmem:[%s1 + $0x3d8] sm:$0xf]
  %v768 = vld [vmem:[%s1 + $0x3dc] sm:$0xf]
  %v769 = vld [vmem:[%s1 + $0x3e0] sm:$0xf]
  %v770 = vld [vmem:[%s1 + $0x3e4] sm:$0xf]
  %v771 = vld [vmem:[%s1 + $0x3e8] sm:$0xf]
  %v772 = vld [vmem:[%s1 + $0x3ec] sm:$0xf]
  %v773 = vld [vmem:[%s1 + $0x3f0] sm:$0xf]
  %v774 = vld [vmem:[%s1 + $0x3f4] sm:$0xf]
  %v775 = vld [vmem:[%s1 + $0x3f8] sm:$0xf]
  %v776 = vld [vmem:[%s1 + $0x3fc] sm:$0xf]
  %v777 = vld [vmem:[%s1 + $0x400] sm:$0xf]
  %v778 = vld [vmem:[%s1 + $0x404] sm:$0xf]
  %v779 = vld [vmem:[%s1 + $0x408] sm:$0xf]
  %v780 = vld [vmem:[%s1 + $0x40c] sm:$0xf]
  %v781 = vld [vmem:[%s1 + $0x410] sm:$0xf]
  %v782 = vld [vmem:[%s1 + $0x414] sm:$0xf]
  %v783 = vld [vmem:[%s1 + $0x418] sm:$0xf]
  %v784 = vld [vmem:[%s1 + $0x41c] sm:$0xf]
  %v785 = vld [vmem:[%s1 + $0x420] sm:$0xf]
  %v786 = vld [vmem:[%s1 + $0x424] sm:$0xf]
  %v787 = vld [vmem:[%s1 + $0x428] sm:$0xf]
  %v788 = vld [vmem:[%s1 + $0x42c] sm:$0xf]
  %v789 = vld [vmem:[%s1 + $0x430] sm:$0xf]
  %v790 = vld [vmem:[%s1 + $0x434] sm:$0xf]
  %v791 = vld [vmem:[%s1 + $0x438] sm:$0xf]
  %v792 = vld [vmem:[%s1 + $0x43c] sm:$0xf]
  %v793 = vld [vmem:[%s1 + $0x440] sm:$0xf]
  %v794 = vld [vmem:[%s1 + $0x444] sm:$0xf]
  %v795 = vld [vmem:[%s1 + $0x448] sm:$0xf]
  %v796 = vld [vmem:[%s1 + $0x44c] sm:$0xf]
  %v797 = vld [vmem:[%s1 + $0x450] sm:$0xf]
  %v798 = vld [vmem:[%s1 + $0x454] sm:$0xf]
  %v799 = vld [vmem:[%s1 + $0x458] sm:$0xf]
  %v800 = vld [vmem:[%s1 + $0x45c] sm:$0xf]
  %v801 = vld [vmem:[%s1 + $0x460] sm:$0xf]
  %v802 = vld [vmem:[%s1 + $0x464] sm:$0xf]
  %v803 = vld [vmem:[%s1 + $0x468] sm:$0xf]
  %v804 = vld [vmem:[%s1 + $0x46c] sm:$0xf]
  %v805 = vld [vmem:[%s1 + $0x470] sm:$0xf]
  %v806 = vld [vmem:[%s1 + $0x474] sm:$0xf]
  %v807 = vld [vmem:[%s1 + $0x478] sm:$0xf]
  %v808 = vld [vmem:[%s1 + $0x47c] sm:$0xf]
  %v809 = vld [vmem:[%s1 + $0x480] sm:$0xf]
  %v810 = vld [vmem:[%s1 + $0x484] sm:$0xf]
  %v811 = vld [vmem:[%s1 + $0x488] sm:$0xf]
  %v812 = vld [vmem:[%s1 + $0x48c] sm:$0xf]
  %v813 = vld [vmem:[%s1 + $0x490] sm:$0xf]
  %v814 = vld [vmem:[%s1 + $0x494] sm:$0xf]
  %v815 = vld [vmem:[%s1 + $0x498] sm:$0xf]
  %v816 = vld [vmem:[%s1 + $0x49c] sm:$0xf]
  %v817 = vld [vmem:[%s1 + $0x4a0] sm:$0xf]
  %v818 = vld [vmem:[%s1 + $0x4a4] sm:$0xf]
  %v819 = vld [vmem:[%s1 + $0x4a8] sm:$0xf]
  %v820 = vld [vmem:[%s1 + $0x4ac] sm:$0xf]
  %v821 = vld [vmem:[%s1 + $0x4b0] sm:$0xf]
  %v822 = vld [vmem:[%s1 + $0x4b4] sm:$0xf]
  %v823 = vld [vmem:[%s1 + $0x4b8] sm:$0xf]
  %v824 = vld [vmem:[%s1 + $0x4bc] sm:$0xf]
  %v825 = vld [vmem:[%s1 + $0x4c0] sm:$0xf]
  %v826 = vld [vmem:[%s1 + $0x4c4] sm:$0xf]
  %v827 = vld [vmem:[%s1 + $0x4c8] sm:$0xf]
  %v828 = vld [vmem:[%s1 + $0x4cc] sm:$0xf]
  %v829 = vld [vmem:[%s1 + $0x4d0] sm:$0xf]
  %v830 = vld [vmem:[%s1 + $0x4d4] sm:$0xf]
  %v831 = vld [vmem:[%s1 + $0x4d8] sm:$0xf]
  %v832 = vld [vmem:[%s1 + $0x4dc] sm:$0xf]
  %v833 = vld [vmem:[%s1 + $0x4e0] sm:$0xf]
  %v834 = vld [vmem:[%s1 + $0x4e4] sm:$0xf]
  %v835 = vld [vmem:[%s1 + $0x4e8] sm:$0xf]
  %836 = vst [vmem:[#allocation1] ss:$9 sm:$0xff] %v193
  %s838 = scalar_lea.vmem [#allocation1], 1
  %839 = vst [vmem:[%s838] ss:$9 sm:$0xff] %v231
  %s841 = scalar_lea.vmem [#allocation1], 2
  %842 = vst [vmem:[%s841] ss:$9 sm:$0xff] %v257
  %s843 = scalar_lea.vmem [#allocation1], 3
  %844 = vst [vmem:[%s843] ss:$9 sm:$0xff] %v286
  %s846 = scalar_lea.vmem [#allocation1], 4
  %847 = vst [vmem:[%s846] ss:$9 sm:$0xff] %v317
  %s849 = scalar_lea.vmem [#allocation1], 5
  %850 = vst [vmem:[%s849] ss:$9 sm:$0xff] %v340
  %s851 = scalar_lea.vmem [#allocation1], 6
  %852 = vst [vmem:[%s851] ss:$9 sm:$0xff] %v369
  %s854 = scalar_lea.vmem [#allocation1], 7
  %855 = vst [vmem:[%s854] ss:$9 sm:$0xff] %v400
  %v856 = vld [vmem:[#allocation1] sm:$0xff]
  %v857 = vld [vmem:[#allocation1 + $0x9] sm:$0xff]
  %v858 = vld [vmem:[#allocation1 + $0x12] sm:$0xff]
  %v859 = vld [vmem:[#allocation1 + $0x1b] sm:$0xff]
  %v860 = vld [vmem:[#allocation1 + $0x24] sm:$0xff]
  %v861 = vld [vmem:[#allocation1 + $0x2d] sm:$0xff]
  %v862 = vld [vmem:[#allocation1 + $0x36] sm:$0xff]
  %v863 = vld [vmem:[#allocation1 + $0x3f] sm:$0xff]
  %864 = vst [vmem:[#allocation1] ss:$9 sm:$0xff] %v208
  %866 = vst [vmem:[%s838] ss:$9 sm:$0xff] %v240
  %868 = vst [vmem:[%s841] ss:$9 sm:$0xff] %v266
  %869 = vst [vmem:[%s843] ss:$9 sm:$0xff] %v301
  %871 = vst [vmem:[%s846] ss:$9 sm:$0xff] %v326
  %873 = vst [vmem:[%s849] ss:$9 sm:$0xff] %v349
  %874 = vst [vmem:[%s851] ss:$9 sm:$0xff] %v384
  %876 = vst [vmem:[%s854] ss:$9 sm:$0xff] %v409
  %v877 = vld [vmem:[#allocation1] sm:$0xff]
  %v878 = vld [vmem:[#allocation1 + $0x9] sm:$0xff]
  %v879 = vld [vmem:[#allocation1 + $0x12] sm:$0xff]
  %v880 = vld [vmem:[#allocation1 + $0x1b] sm:$0xff]
  %v881 = vld [vmem:[#allocation1 + $0x24] sm:$0xff]
  %v882 = vld [vmem:[#allocation1 + $0x2d] sm:$0xff]
  %v883 = vld [vmem:[#allocation1 + $0x36] sm:$0xff]
  %v884 = vld [vmem:[#allocation1 + $0x3f] sm:$0xff]
  %885 = vst [vmem:[#allocation1] ss:$9 sm:$0xff] %v215
  %887 = vst [vmem:[%s838] ss:$9 sm:$0xff] %v245
  %889 = vst [vmem:[%s841] ss:$9 sm:$0xff] %v271
  %890 = vst [vmem:[%s843] ss:$9 sm:$0xff] %v308
  %892 = vst [vmem:[%s846] ss:$9 sm:$0xff] %v331
  %894 = vst [vmem:[%s849] ss:$9 sm:$0xff] %v354
  %895 = vst [vmem:[%s851] ss:$9 sm:$0xff] %v391
  %897 = vst [vmem:[%s854] ss:$9 sm:$0xff] %v414
  %v898 = vld [vmem:[#allocation1] sm:$0xff]
  %v899 = vld [vmem:[#allocation1 + $0x9] sm:$0xff]
  %v900 = vld [vmem:[#allocation1 + $0x12] sm:$0xff]
  %v901 = vld [vmem:[#allocation1 + $0x1b] sm:$0xff]
  %903 = vst [vmem:[#allocation1] ss:$9 sm:$0xff] %v423
  %904 = vst [vmem:[%s838] ss:$9 sm:$0xff] %v452
  %906 = vst [vmem:[%s841] ss:$9 sm:$0xff] %v483
  %908 = vst [vmem:[%s843] ss:$9 sm:$0xff] %v506
  %v909 = vld [vmem:[#allocation1] sm:$0xff]
  %v910 = vld [vmem:[#allocation1 + $0x9] sm:$0xff]
  %v911 = vld [vmem:[#allocation1 + $0x12] sm:$0xff]
  %v912 = vld [vmem:[#allocation1 + $0x1b] sm:$0xff]
  %v913 = vld [vmem:[#allocation1 + $0x24] sm:$0xff]
  %v914 = vld [vmem:[#allocation1 + $0x2d] sm:$0xff]
  %v915 = vld [vmem:[#allocation1 + $0x36] sm:$0xff]
  %v916 = vld [vmem:[#allocation1 + $0x3f] sm:$0xff]
  %918 = vst [vmem:[#allocation1] ss:$9 sm:$0xff] %v432
  %919 = vst [vmem:[%s838] ss:$9 sm:$0xff] %v467
  %921 = vst [vmem:[%s841] ss:$9 sm:$0xff] %v492
  %923 = vst [vmem:[%s843] ss:$9 sm:$0xff] %v515
  %v924 = vld [vmem:[#allocation1] sm:$0xff]
  %v925 = vld [vmem:[#allocation1 + $0x9] sm:$0xff]
  %v926 = vld [vmem:[#allocation1 + $0x12] sm:$0xff]
  %v927 = vld [vmem:[#allocation1 + $0x1b] sm:$0xff]
  %v928 = vld [vmem:[#allocation1 + $0x24] sm:$0xff]
  %v929 = vld [vmem:[#allocation1 + $0x2d] sm:$0xff]
  %v930 = vld [vmem:[#allocation1 + $0x36] sm:$0xff]
  %v931 = vld [vmem:[#allocation1 + $0x3f] sm:$0xff]
  %933 = vst [vmem:[#allocation1] ss:$9 sm:$0xff] %v437
  %934 = vst [vmem:[%s838] ss:$9 sm:$0xff] %v474
  %936 = vst [vmem:[%s841] ss:$9 sm:$0xff] %v497
  %938 = vst [vmem:[%s843] ss:$9 sm:$0xff] %v520
  %v939 = vld [vmem:[#allocation1] sm:$0xff]
  %v940 = vld [vmem:[#allocation1 + $0x9] sm:$0xff]
  %v941 = vld [vmem:[#allocation1 + $0x12] sm:$0xff]
  %v942 = vld [vmem:[#allocation1 + $0x1b] sm:$0xff]
  %v1296 = vunpack.c.l.b16 %v521
  %v1297 = vunpack.c.l.b16 %v522
  %v1298 = vunpack.c.l.b16 %v523
  %v1299 = vunpack.c.l.b16 %v524
  %v1300 = vunpack.c.l.b16 %v525
  %v1301 = vunpack.c.l.b16 %v526
  %v1302 = vunpack.c.l.b16 %v527
  %v1303 = vunpack.c.l.b16 %v528
  %v1304 = vunpack.c.l.b16 %v529
  %v1305 = vunpack.c.l.b16 %v530
  %v1306 = vunpack.c.l.b16 %v531
  %v1307 = vunpack.c.l.b16 %v532
  %v1308 = vunpack.c.l.b16 %v533
  %v1309 = vunpack.c.l.b16 %v534
  %v1310 = vunpack.c.l.b16 %v535
  %v1311 = vunpack.c.l.b16 %v536
  %v1312 = vunpack.c.l.b16 %v537
  %v1313 = vunpack.c.l.b16 %v538
  %v1314 = vunpack.c.l.b16 %v539
  %v1315 = vunpack.c.l.b16 %v540
  %v1316 = vunpack.c.l.b16 %v541
  %v1317 = vunpack.c.l.b16 %v542
  %v1318 = vunpack.c.l.b16 %v543
  %v1319 = vunpack.c.l.b16 %v544
  %v1320 = vunpack.c.l.b16 %v545
  %v1321 = vunpack.c.l.b16 %v546
  %v1322 = vunpack.c.l.b16 %v547
  %v1323 = vunpack.c.l.b16 %v548
  %v1324 = vunpack.c.l.b16 %v549
  %v1325 = vunpack.c.l.b16 %v550
  %v1326 = vunpack.c.l.b16 %v551
  %v1327 = vunpack.c.l.b16 %v552
  %v1328 = vunpack.c.l.b16 %v553
  %v1329 = vunpack.c.l.b16 %v554
  %v1330 = vunpack.c.l.b16 %v555
  %v1331 = vunpack.c.l.b16 %v556
  %v1332 = vunpack.c.l.b16 %v557
  %v1333 = vunpack.c.l.b16 %v558
  %v1334 = vunpack.c.l.b16 %v559
  %v1335 = vunpack.c.l.b16 %v560
  %v1336 = vunpack.c.l.b16 %v561
  %v1337 = vunpack.c.l.b16 %v562
  %v1338 = vunpack.c.l.b16 %v563
  %v1339 = vunpack.c.l.b16 %v564
  %v1340 = vunpack.c.l.b16 %v565
  %v1341 = vunpack.c.l.b16 %v566
  %v1342 = vunpack.c.l.b16 %v567
  %v1343 = vunpack.c.l.b16 %v568
  %v1344 = vunpack.c.l.b16 %v569
  %v1345 = vunpack.c.l.b16 %v570
  %v1346 = vunpack.c.l.b16 %v571
  %v1347 = vunpack.c.l.b16 %v572
  %v1348 = vunpack.c.l.b16 %v573
  %v1349 = vunpack.c.l.b16 %v574
  %v1350 = vunpack.c.l.b16 %v575
  %v1351 = vunpack.c.l.b16 %v576
  %v1352 = vunpack.c.l.b16 %v577
  %v1353 = vunpack.c.l.b16 %v578
  %v1354 = vunpack.c.l.b16 %v579
  %v1355 = vunpack.c.l.b16 %v580
  %v1356 = vunpack.c.l.b16 %v581
  %v1357 = vunpack.c.l.b16 %v582
  %v1358 = vunpack.c.l.b16 %v583
  %v1359 = vunpack.c.l.b16 %v584
  %v1360 = vunpack.c.l.b16 %v585
  %v1361 = vunpack.c.l.b16 %v586
  %v1362 = vunpack.c.l.b16 %v587
  %v1363 = vunpack.c.l.b16 %v588
  %v1364 = vunpack.c.l.b16 %v589
  %v1365 = vunpack.c.l.b16 %v590
  %v1366 = vunpack.c.l.b16 %v591
  %v1367 = vunpack.c.l.b16 %v592
  %v1368 = vunpack.c.l.b16 %v593
  %v1369 = vunpack.c.l.b16 %v594
  %v1370 = vunpack.c.l.b16 %v595
  %v1371 = vunpack.c.l.b16 %v596
  %v1372 = vunpack.c.l.b16 %v597
  %v1373 = vunpack.c.l.b16 %v598
  %v1374 = vunpack.c.l.b16 %v599
  %v1375 = vunpack.c.l.b16 %v600
  %v1376 = vunpack.c.l.b16 %v601
  %v1377 = vunpack.c.l.b16 %v602
  %v1378 = vunpack.c.l.b16 %v603
  %v1379 = vunpack.c.l.b16 %v604
  %v1380 = vunpack.c.l.b16 %v605
  %v1381 = vunpack.c.l.b16 %v606
  %v1382 = vunpack.c.l.b16 %v607
  %v1383 = vunpack.c.l.b16 %v608
  %v1384 = vunpack.c.l.b16 %v609
  %v1385 = vunpack.c.l.b16 %v610
  %v1386 = vunpack.c.l.b16 %v611
  %v1387 = vunpack.c.l.b16 %v612
  %v1388 = vunpack.c.l.b16 %v613
  %v1389 = vunpack.c.l.b16 %v614
  %v1390 = vunpack.c.l.b16 %v615
  %v1391 = vunpack.c.l.b16 %v616
  %v1392 = vunpack.c.l.b16 %v617
  %v1393 = vunpack.c.l.b16 %v618
  %v1394 = vunpack.c.l.b16 %v619
  %v1395 = vunpack.c.l.b16 %v620
  %v1396 = vunpack.c.l.b16 %v621
  %v1397 = vunpack.c.l.b16 %v622
  %v1398 = vunpack.c.l.b16 %v623
  %v1399 = vunpack.c.l.b16 %v624
  %v1400 = vunpack.c.l.b16 %v625
  %v1401 = vunpack.c.l.b16 %v626
  %v1402 = vunpack.c.l.b16 %v627
  %v1403 = vunpack.c.l.b16 %v628
  %v1404 = vunpack.c.l.b16 %v629
  %v1405 = vunpack.c.l.b16 %v630
  %v1406 = vunpack.c.l.b16 %v631
  %v1407 = vunpack.c.l.b16 %v632
  %v1408 = vunpack.c.l.b16 %v633
  %v1409 = vunpack.c.l.b16 %v634
  %v1410 = vunpack.c.l.b16 %v635
  %v1411 = vunpack.c.l.b16 %v636
  %v1412 = vunpack.c.l.b16 %v637
  %v1413 = vunpack.c.l.b16 %v638
  %v1414 = vunpack.c.l.b16 %v639
  %v1415 = vunpack.c.l.b16 %v640
  %v1416 = vunpack.c.l.b16 %v641
  %v1417 = vunpack.c.l.b16 %v642
  %v1418 = vunpack.c.l.b16 %v643
  %v1419 = vunpack.c.l.b16 %v644
  %v1420 = vunpack.c.l.b16 %v645
  %v1421 = vunpack.c.l.b16 %v646
  %v1422 = vunpack.c.l.b16 %v647
  %v1423 = vunpack.c.l.b16 %v648
  %v1424 = vunpack.c.l.b16 %v649
  %v1425 = vunpack.c.l.b16 %v650
  %v1426 = vunpack.c.l.b16 %v651
  %v1427 = vunpack.c.l.b16 %v652
  %v1428 = vunpack.c.l.b16 %v653
  %v1429 = vunpack.c.l.b16 %v654
  %v1430 = vunpack.c.l.b16 %v655
  %v1431 = vunpack.c.l.b16 %v656
  %v1432 = vunpack.c.l.b16 %v657
  %v1433 = vunpack.c.l.b16 %v658
  %v1434 = vunpack.c.l.b16 %v659
  %v1435 = vunpack.c.l.b16 %v660
  %v1436 = vunpack.c.l.b16 %v661
  %v1437 = vunpack.c.l.b16 %v662
  %v1438 = vunpack.c.l.b16 %v663
  %v1439 = vunpack.c.l.b16 %v664
  %v1440 = vunpack.c.l.b16 %v665
  %v1441 = vunpack.c.l.b16 %v666
  %v1442 = vunpack.c.l.b16 %v667
  %v1443 = vunpack.c.l.b16 %v668
  %v1444 = vunpack.c.l.b16 %v669
  %v1445 = vunpack.c.l.b16 %v670
  %v1446 = vunpack.c.l.b16 %v671
  %v1447 = vunpack.c.l.b16 %v672
  %v1448 = vunpack.c.l.b16 %v673
  %v1449 = vunpack.c.l.b16 %v674
  %v1450 = vunpack.c.l.b16 %v675
  %v1451 = vunpack.c.l.b16 %v676
  %v1452 = vunpack.c.l.b16 %v677
  %v1453 = vunpack.c.l.b16 %v678
  %v1454 = vunpack.c.l.b16 %v679
  %v1455 = vunpack.c.l.b16 %v680
  %v1456 = vunpack.c.l.b16 %v681
  %v1457 = vunpack.c.l.b16 %v682
  %v1458 = vunpack.c.l.b16 %v683
  %v1459 = vunpack.c.l.b16 %v684
  %v1460 = vunpack.c.l.b16 %v685
  %v1461 = vunpack.c.l.b16 %v686
  %v1462 = vunpack.c.l.b16 %v687
  %v1463 = vunpack.c.l.b16 %v688
  %v1464 = vunpack.c.l.b16 %v689
  %v1465 = vunpack.c.l.b16 %v690
  %v1466 = vunpack.c.l.b16 %v691
  %v1467 = vunpack.c.l.b16 %v692
  %v1468 = vunpack.c.l.b16 %v693
  %v1469 = vunpack.c.l.b16 %v694
  %v1470 = vunpack.c.l.b16 %v695
  %v1471 = vunpack.c.l.b16 %v696
  %v1472 = vunpack.c.l.b16 %v697
  %v1473 = vunpack.c.l.b16 %v698
  %v1474 = vunpack.c.l.b16 %v699
  %v1475 = vunpack.c.l.b16 %v700
  %v1476 = vunpack.c.l.b16 %v701
  %v1477 = vunpack.c.l.b16 %v702
  %v1478 = vunpack.c.l.b16 %v703
  %v1479 = vunpack.c.l.b16 %v704
  %v1480 = vunpack.c.l.b16 %v705
  %v1481 = vunpack.c.l.b16 %v706
  %v1482 = vunpack.c.l.b16 %v707
  %v1483 = vunpack.c.l.b16 %v708
  %v1484 = vunpack.c.l.b16 %v709
  %v1485 = vunpack.c.l.b16 %v710
  %v1486 = vunpack.c.l.b16 %v711
  %v1487 = vunpack.c.l.b16 %v712
  %v1488 = vunpack.c.l.b16 %v713
  %v1489 = vunpack.c.l.b16 %v714
  %v1490 = vunpack.c.l.b16 %v715
  %v1491 = vunpack.c.l.b16 %v716
  %v1492 = vunpack.c.l.b16 %v717
  %v1493 = vunpack.c.l.b16 %v718
  %v1494 = vunpack.c.l.b16 %v719
  %v1495 = vunpack.c.l.b16 %v720
  %v1496 = vunpack.c.l.b16 %v721
  %v1497 = vunpack.c.l.b16 %v722
  %v1498 = vunpack.c.l.b16 %v723
  %v1499 = vunpack.c.l.b16 %v724
  %v1500 = vunpack.c.l.b16 %v725
  %v1501 = vunpack.c.l.b16 %v726
  %v1502 = vunpack.c.l.b16 %v727
  %v1503 = vunpack.c.l.b16 %v728
  %v1504 = vunpack.c.l.b16 %v729
  %v1505 = vunpack.c.l.b16 %v730
  %v1506 = vunpack.c.l.b16 %v731
  %v1507 = vunpack.c.l.b16 %v732
  %v1508 = vunpack.c.l.b16 %v733
  %v1509 = vunpack.c.l.b16 %v734
  %v1510 = vunpack.c.l.b16 %v735
  %v1511 = vunpack.c.l.b16 %v736
  %v1512 = vunpack.c.l.b16 %v737
  %v1513 = vunpack.c.l.b16 %v738
  %v1514 = vunpack.c.l.b16 %v739
  %v1515 = vunpack.c.l.b16 %v740
  %v1516 = vunpack.c.l.b16 %v741
  %v1517 = vunpack.c.l.b16 %v742
  %v1518 = vunpack.c.l.b16 %v743
  %v1519 = vunpack.c.l.b16 %v744
  %v1520 = vunpack.c.l.b16 %v745
  %v1521 = vunpack.c.l.b16 %v746
  %v1522 = vunpack.c.l.b16 %v747
  %v1523 = vunpack.c.l.b16 %v748
  %v1524 = vunpack.c.l.b16 %v749
  %v1525 = vunpack.c.l.b16 %v750
  %v1526 = vunpack.c.l.b16 %v751
  %v1527 = vunpack.c.l.b16 %v752
  %v1528 = vunpack.c.l.b16 %v753
  %v1529 = vunpack.c.l.b16 %v754
  %v1530 = vunpack.c.l.b16 %v755
  %v1531 = vunpack.c.l.b16 %v756
  %v1532 = vunpack.c.l.b16 %v757
  %v1533 = vunpack.c.l.b16 %v758
  %v1534 = vunpack.c.l.b16 %v759
  %v1535 = vunpack.c.l.b16 %v760
  %v1536 = vunpack.c.l.b16 %v761
  %v1537 = vunpack.c.l.b16 %v762
  %v1538 = vunpack.c.l.b16 %v763
  %v1539 = vunpack.c.l.b16 %v764
  %v1540 = vunpack.c.l.b16 %v765
  %v1541 = vunpack.c.l.b16 %v766
  %v1542 = vunpack.c.l.b16 %v767
  %v1543 = vunpack.c.l.b16 %v768
  %v1544 = vunpack.c.l.b16 %v769
  %v1545 = vunpack.c.l.b16 %v770
  %v1546 = vunpack.c.l.b16 %v771
  %v1547 = vunpack.c.l.b16 %v772
  %v1548 = vunpack.c.l.b16 %v773
  %v1549 = vunpack.c.l.b16 %v774
  %v1550 = vunpack.c.l.b16 %v775
  %v1551 = vunpack.c.l.b16 %v776
  %v1552 = vunpack.c.l.b16 %v777
  %v1553 = vunpack.c.l.b16 %v778
  %v1554 = vunpack.c.l.b16 %v779
  %v1555 = vunpack.c.l.b16 %v780
  %v1556 = vunpack.c.l.b16 %v781
  %v1557 = vunpack.c.l.b16 %v782
  %v1558 = vunpack.c.l.b16 %v783
  %v1559 = vunpack.c.l.b16 %v784
  %v1560 = vunpack.c.l.b16 %v785
  %v1561 = vunpack.c.l.b16 %v786
  %v1562 = vunpack.c.l.b16 %v787
  %v1563 = vunpack.c.l.b16 %v788
  %v1564 = vunpack.c.l.b16 %v789
  %v1565 = vunpack.c.l.b16 %v790
  %v1566 = vunpack.c.l.b16 %v791
  %v1567 = vunpack.c.l.b16 %v792
  %v1568 = vunpack.c.l.b16 %v793
  %v1569 = vunpack.c.l.b16 %v794
  %v1570 = vunpack.c.l.b16 %v795
  %v1571 = vunpack.c.l.b16 %v796
  %v1572 = vunpack.c.l.b16 %v797
  %v1573 = vunpack.c.l.b16 %v798
  %v1574 = vunpack.c.l.b16 %v799
  %v1575 = vunpack.c.l.b16 %v800
  %v1576 = vunpack.c.l.b16 %v801
  %v1577 = vunpack.c.l.b16 %v802
  %v1578 = vunpack.c.l.b16 %v803
  %v1579 = vunpack.c.l.b16 %v804
  %v1580 = vunpack.c.l.b16 %v805
  %v1581 = vunpack.c.l.b16 %v806
  %v1582 = vunpack.c.l.b16 %v807
  %v1583 = vunpack.c.l.b16 %v808
  %v1584 = vunpack.c.l.b16 %v809
  %v1585 = vunpack.c.l.b16 %v810
  %v1586 = vunpack.c.l.b16 %v811
  %v1587 = vunpack.c.l.b16 %v812
  %v1588 = vunpack.c.l.b16 %v813
  %v1589 = vunpack.c.l.b16 %v814
  %v1590 = vunpack.c.l.b16 %v815
  %v1591 = vunpack.c.l.b16 %v816
  %v1592 = vunpack.c.l.b16 %v817
  %v1593 = vunpack.c.l.b16 %v818
  %v1594 = vunpack.c.l.b16 %v819
  %v1595 = vunpack.c.l.b16 %v820
  %v1596 = vunpack.c.l.b16 %v821
  %v1597 = vunpack.c.l.b16 %v822
  %v1598 = vunpack.c.l.b16 %v823
  %v1599 = vunpack.c.l.b16 %v824
  %v1600 = vunpack.c.l.b16 %v825
  %v1601 = vunpack.c.l.b16 %v826
  %v1602 = vunpack.c.l.b16 %v827
  %v1603 = vunpack.c.l.b16 %v828
  %v1604 = vunpack.c.l.b16 %v829
  %v1605 = vunpack.c.l.b16 %v830
  %v1606 = vunpack.c.l.b16 %v831
  %v1607 = vunpack.c.l.b16 %v832
  %v1608 = vunpack.c.l.b16 %v833
  %v1609 = vunpack.c.l.b16 %v834
  %v1610 = vunpack.c.l.b16 %v835
  %v1611 = vpack.c.b16 %v1297, %v1296
  %v1612 = vpack.c.b16 %v1299, %v1298
  %v1613 = vpack.c.b16 %v1301, %v1300
  %v1614 = vpack.c.b16 %v1303, %v1302
  %v1615 = vpack.c.b16 %v1305, %v1304
  %v1616 = vpack.c.b16 %v1307, %v1306
  %v1617 = vpack.c.b16 %v1309, %v1308
  %v1618 = vpack.c.b16 %v1311, %v1310
  %v1619 = vpack.c.b16 %v1313, %v1312
  %v1620 = vpack.c.b16 %v1315, %v1314
  %v1621 = vpack.c.b16 %v1317, %v1316
  %v1622 = vpack.c.b16 %v1319, %v1318
  %v1623 = vpack.c.b16 %v1321, %v1320
  %v1624 = vpack.c.b16 %v1323, %v1322
  %v1625 = vpack.c.b16 %v1325, %v1324
  %v1626 = vpack.c.b16 %v1327, %v1326
  %v1627 = vpack.c.b16 %v1329, %v1328
  %v1628 = vpack.c.b16 %v1331, %v1330
  %v1629 = vpack.c.b16 %v1333, %v1332
  %v1630 = vpack.c.b16 %v1335, %v1334
  %v1631 = vpack.c.b16 %v1337, %v1336
  %v1632 = vpack.c.b16 %v1339, %v1338
  %v1633 = vpack.c.b16 %v1341, %v1340
  %v1634 = vpack.c.b16 %v1343, %v1342
  %v1635 = vpack.c.b16 %v1345, %v1344
  %v1636 = vpack.c.b16 %v1347, %v1346
  %v1637 = vpack.c.b16 %v1349, %v1348
  %v1638 = vpack.c.b16 %v1351, %v1350
  %v1639 = vpack.c.b16 %v1353, %v1352
  %v1640 = vpack.c.b16 %v1355, %v1354
  %v1641 = vpack.c.b16 %v1357, %v1356
  %v1642 = vpack.c.b16 %v1359, %v1358
  %v1643 = vpack.c.b16 %v1361, %v1360
  %v1644 = vpack.c.b16 %v1363, %v1362
  %v1645 = vpack.c.b16 %v1365, %v1364
  %v1646 = vpack.c.b16 %v1367, %v1366
  %v1647 = vpack.c.b16 %v1369, %v1368
  %v1648 = vpack.c.b16 %v1371, %v1370
  %v1649 = vpack.c.b16 %v1373, %v1372
  %v1650 = vpack.c.b16 %v1375, %v1374
  %v1651 = vpack.c.b16 %v1377, %v1376
  %v1652 = vpack.c.b16 %v1379, %v1378
  %v1653 = vpack.c.b16 %v1381, %v1380
  %v1654 = vpack.c.b16 %v1383, %v1382
  %v1655 = vpack.c.b16 %v1385, %v1384
  %v1656 = vpack.c.b16 %v1387, %v1386
  %v1657 = vpack.c.b16 %v1389, %v1388
  %v1658 = vpack.c.b16 %v1391, %v1390
  %v1659 = vpack.c.b16 %v1393, %v1392
  %v1660 = vpack.c.b16 %v1395, %v1394
  %v1661 = vpack.c.b16 %v1397, %v1396
  %v1662 = vpack.c.b16 %v1399, %v1398
  %v1663 = vpack.c.b16 %v1401, %v1400
  %v1664 = vpack.c.b16 %v1403, %v1402
  %v1665 = vpack.c.b16 %v1405, %v1404
  %v1666 = vpack.c.b16 %v1407, %v1406
  %v1667 = vpack.c.b16 %v1409, %v1408
  %v1668 = vpack.c.b16 %v1411, %v1410
  %v1669 = vpack.c.b16 %v1413, %v1412
  %v1670 = vpack.c.b16 %v1415, %v1414
  %v1671 = vpack.c.b16 %v1417, %v1416
  %v1672 = vpack.c.b16 %v1419, %v1418
  %v1673 = vpack.c.b16 %v1421, %v1420
  %v1674 = vpack.c.b16 %v1423, %v1422
  %v1675 = vpack.c.b16 %v1425, %v1424
  %v1676 = vpack.c.b16 %v1427, %v1426
  %v1677 = vpack.c.b16 %v1429, %v1428
  %v1678 = vpack.c.b16 %v1431, %v1430
  %v1679 = vpack.c.b16 %v1433, %v1432
  %v1680 = vpack.c.b16 %v1435, %v1434
  %v1681 = vpack.c.b16 %v1437, %v1436
  %v1682 = vpack.c.b16 %v1439, %v1438
  %v1683 = vpack.c.b16 %v1441, %v1440
  %v1684 = vpack.c.b16 %v1443, %v1442
  %v1685 = vpack.c.b16 %v1445, %v1444
  %v1686 = vpack.c.b16 %v1447, %v1446
  %v1687 = vpack.c.b16 %v1449, %v1448
  %v1688 = vpack.c.b16 %v1451, %v1450
  %v1689 = vpack.c.b16 %v1453, %v1452
  %v1690 = vpack.c.b16 %v1455, %v1454
  %v1691 = vpack.c.b16 %v1457, %v1456
  %v1692 = vpack.c.b16 %v1459, %v1458
  %v1693 = vpack.c.b16 %v1461, %v1460
  %v1694 = vpack.c.b16 %v1463, %v1462
  %v1695 = vpack.c.b16 %v1465, %v1464
  %v1696 = vpack.c.b16 %v1467, %v1466
  %v1697 = vpack.c.b16 %v1469, %v1468
  %v1698 = vpack.c.b16 %v1471, %v1470
  %v1699 = vpack.c.b16 %v1473, %v1472
  %v1700 = vpack.c.b16 %v1475, %v1474
  %v1701 = vpack.c.b16 %v1477, %v1476
  %v1702 = vpack.c.b16 %v1479, %v1478
  %v1703 = vpack.c.b16 %v1481, %v1480
  %v1704 = vpack.c.b16 %v1483, %v1482
  %v1705 = vpack.c.b16 %v1485, %v1484
  %v1706 = vpack.c.b16 %v1487, %v1486
  %v1707 = vpack.c.b16 %v1489, %v1488
  %v1708 = vpack.c.b16 %v1491, %v1490
  %v1709 = vpack.c.b16 %v1493, %v1492
  %v1710 = vpack.c.b16 %v1495, %v1494
  %v1711 = vpack.c.b16 %v1497, %v1496
  %v1712 = vpack.c.b16 %v1499, %v1498
  %v1713 = vpack.c.b16 %v1501, %v1500
  %v1714 = vpack.c.b16 %v1503, %v1502
  %v1715 = vpack.c.b16 %v1505, %v1504
  %v1716 = vpack.c.b16 %v1507, %v1506
  %v1717 = vpack.c.b16 %v1509, %v1508
  %v1718 = vpack.c.b16 %v1511, %v1510
  %v1719 = vpack.c.b16 %v1513, %v1512
  %v1720 = vpack.c.b16 %v1515, %v1514
  %v1721 = vpack.c.b16 %v1517, %v1516
  %v1722 = vpack.c.b16 %v1519, %v1518
  %v1723 = vpack.c.b16 %v1521, %v1520
  %v1724 = vpack.c.b16 %v1523, %v1522
  %v1725 = vpack.c.b16 %v1525, %v1524
  %v1726 = vpack.c.b16 %v1527, %v1526
  %v1727 = vpack.c.b16 %v1529, %v1528
  %v1728 = vpack.c.b16 %v1531, %v1530
  %v1729 = vpack.c.b16 %v1533, %v1532
  %v1730 = vpack.c.b16 %v1535, %v1534
  %v1731 = vpack.c.b16 %v1537, %v1536
  %v1732 = vpack.c.b16 %v1539, %v1538
  %v1733 = vpack.c.b16 %v1541, %v1540
  %v1734 = vpack.c.b16 %v1543, %v1542
  %v1735 = vpack.c.b16 %v1545, %v1544
  %v1736 = vpack.c.b16 %v1547, %v1546
  %v1737 = vpack.c.b16 %v1549, %v1548
  %v1738 = vpack.c.b16 %v1551, %v1550
  %v1739 = vpack.c.b16 %v1553, %v1552
  %v1740 = vpack.c.b16 %v1555, %v1554
  %v1741 = vpack.c.b16 %v1557, %v1556
  %v1742 = vpack.c.b16 %v1559, %v1558
  %v1743 = vpack.c.b16 %v1561, %v1560
  %v1744 = vpack.c.b16 %v1563, %v1562
  %v1745 = vpack.c.b16 %v1565, %v1564
  %v1746 = vpack.c.b16 %v1567, %v1566
  %v1747 = vpack.c.b16 %v1569, %v1568
  %v1748 = vpack.c.b16 %v1571, %v1570
  %v1749 = vpack.c.b16 %v1573, %v1572
  %v1750 = vpack.c.b16 %v1575, %v1574
  %v1751 = vpack.c.b16 %v1577, %v1576
  %v1752 = vpack.c.b16 %v1579, %v1578
  %v1753 = vpack.c.b16 %v1581, %v1580
  %v1754 = vpack.c.b16 %v1583, %v1582
  %v1755 = vpack.c.b16 %v1585, %v1584
  %v1756 = vpack.c.b16 %v1587, %v1586
  %v1757 = vpack.c.b16 %v1589, %v1588
  %v1758 = vpack.c.b16 %v1591, %v1590
  %v1759 = vpack.c.b16 %v1593, %v1592
  %v1760 = vpack.c.b16 %v1595, %v1594
  %v1761 = vpack.c.b16 %v1597, %v1596
  %v1762 = vpack.c.b16 %v1599, %v1598
  %v1763 = vpack.c.b16 %v1601, %v1600
  %v1764 = vpack.c.b16 %v1603, %v1602
  %v1765 = vpack.c.b16 %v1605, %v1604
  %v1766 = vpack.c.b16 %v1607, %v1606
  %v1767 = vpack.c.b16 %v1609, %v1608
  %v1768 = vpack.c.b16 %v1610, %v1610
  %vm1926 = vcmask 719872
  %v1927 = vsel %vm1926, %v901, 0
  %v1929 = vsel %vm1926, %v942, 0
  %v1932 = vsel %vm192, %v1768, 0
  %1934 = vmatpush.bf16.msra.mxu0 %v1618
  %1935 = vmatpush.bf16.msra.mxu0 %v1617
  %1936 = vmatpush.bf16.msra.mxu0 %v1616
  %1937 = vmatpush.bf16.msra.mxu0 %v1615
  %1938 = vmatpush.bf16.msra.mxu0 %v1614
  %1939 = vmatpush.bf16.msra.mxu0 %v1613
  %1940 = vmatpush.bf16.msra.mxu0 %v1612
  %1941 = vmatpush.bf16.msra.mxu0 %v1611
  %1942 = vmatmul.bf16.gmra.mxu0 %v856
  %v1943 = vpop.f32.mrf.mxu0
  %v1944 = vadd.f32 0.0, %v1943
  %v1945 = vpop.f32.mrf.mxu0
  %v1946 = vadd.f32 0.0, %v1945
  %1947 = vmatmul.bf16.gmra.mxu0 %v909
  %v1948 = vpop.f32.mrf.mxu0
  %v1949 = vadd.f32 0.0, %v1948
  %v1950 = vpop.f32.mrf.mxu0
  %1951 = vdwg.mxu0
  %1952 = vmatpush.bf16.msra.mxu0 %v1626
  %1953 = vmatpush.bf16.msra.mxu0 %v1625
  %1954 = vmatpush.bf16.msra.mxu0 %v1624
  %1955 = vmatpush.bf16.msra.mxu0 %v1623
  %1956 = vmatpush.bf16.msra.mxu0 %v1622
  %1957 = vmatpush.bf16.msra.mxu0 %v1621
  %1958 = vmatpush.bf16.msra.mxu0 %v1620
  %1959 = vmatpush.bf16.msra.mxu0 %v1619
  %1960 = vmatmul.bf16.gmra.mxu0 %v857
  %v1961 = vpop.f32.mrf.mxu0
  %v1962 = vadd.f32 %v1944, %v1961
  %v1963 = vpop.f32.mrf.mxu0
  %v1964 = vadd.f32 %v1946, %v1963
  %1965 = vmatmul.bf16.gmra.mxu0 %v910
  %v1966 = vpop.f32.mrf.mxu0
  %v1967 = vadd.f32 %v1949, %v1966
  %v1968 = vpop.f32.mrf.mxu0
  %1969 = vdwg.mxu0
  %1970 = vmatpush.bf16.msra.mxu0 %v1634
  %1971 = vmatpush.bf16.msra.mxu0 %v1633
  %1972 = vmatpush.bf16.msra.mxu0 %v1632
  %1973 = vmatpush.bf16.msra.mxu0 %v1631
  %1974 = vmatpush.bf16.msra.mxu0 %v1630
  %1975 = vmatpush.bf16.msra.mxu0 %v1629
  %1976 = vmatpush.bf16.msra.mxu0 %v1628
  %1977 = vmatpush.bf16.msra.mxu0 %v1627
  %1978 = vmatmul.bf16.gmra.mxu0 %v858
  %v1979 = vpop.f32.mrf.mxu0
  %v1980 = vadd.f32 %v1962, %v1979
  %v1981 = vpop.f32.mrf.mxu0
  %v1982 = vadd.f32 %v1964, %v1981
  %1983 = vmatmul.bf16.gmra.mxu0 %v911
  %v1984 = vpop.f32.mrf.mxu0
  %v1985 = vadd.f32 %v1967, %v1984
  %v1986 = vpop.f32.mrf.mxu0
  %1987 = vdwg.mxu0
  %1988 = vmatpush.bf16.msra.mxu0 %v1642
  %1989 = vmatpush.bf16.msra.mxu0 %v1641
  %1990 = vmatpush.bf16.msra.mxu0 %v1640
  %1991 = vmatpush.bf16.msra.mxu0 %v1639
  %1992 = vmatpush.bf16.msra.mxu0 %v1638
  %1993 = vmatpush.bf16.msra.mxu0 %v1637
  %1994 = vmatpush.bf16.msra.mxu0 %v1636
  %1995 = vmatpush.bf16.msra.mxu0 %v1635
  %1996 = vmatmul.bf16.gmra.mxu0 %v859
  %v1997 = vpop.f32.mrf.mxu0
  %v1998 = vadd.f32 %v1980, %v1997
  %v1999 = vpop.f32.mrf.mxu0
  %v2000 = vadd.f32 %v1982, %v1999
  %2001 = vmatmul.bf16.gmra.mxu0 %v912
  %v2002 = vpop.f32.mrf.mxu0
  %v2003 = vadd.f32 %v1985, %v2002
  %v2004 = vpop.f32.mrf.mxu0
  %2005 = vdwg.mxu0
  %2006 = vmatpush.bf16.msra.mxu0 %v1650
  %2007 = vmatpush.bf16.msra.mxu0 %v1649
  %2008 = vmatpush.bf16.msra.mxu0 %v1648
  %2009 = vmatpush.bf16.msra.mxu0 %v1647
  %2010 = vmatpush.bf16.msra.mxu0 %v1646
  %2011 = vmatpush.bf16.msra.mxu0 %v1645
  %2012 = vmatpush.bf16.msra.mxu0 %v1644
  %2013 = vmatpush.bf16.msra.mxu0 %v1643
  %2014 = vmatmul.bf16.gmra.mxu0 %v860
  %v2015 = vpop.f32.mrf.mxu0
  %v2016 = vadd.f32 %v1998, %v2015
  %v2017 = vpop.f32.mrf.mxu0
  %v2018 = vadd.f32 %v2000, %v2017
  %2019 = vmatmul.bf16.gmra.mxu0 %v913
  %v2020 = vpop.f32.mrf.mxu0
  %v2021 = vadd.f32 %v2003, %v2020
  %v2022 = vpop.f32.mrf.mxu0
  %2023 = vdwg.mxu0
  %2024 = vmatpush.bf16.msra.mxu0 %v1658
  %2025 = vmatpush.bf16.msra.mxu0 %v1657
  %2026 = vmatpush.bf16.msra.mxu0 %v1656
  %2027 = vmatpush.bf16.msra.mxu0 %v1655
  %2028 = vmatpush.bf16.msra.mxu0 %v1654
  %2029 = vmatpush.bf16.msra.mxu0 %v1653
  %2030 = vmatpush.bf16.msra.mxu0 %v1652
  %2031 = vmatpush.bf16.msra.mxu0 %v1651
  %2032 = vmatmul.bf16.gmra.mxu0 %v861
  %v2033 = vpop.f32.mrf.mxu0
  %v2034 = vadd.f32 %v2016, %v2033
  %v2035 = vpop.f32.mrf.mxu0
  %v2036 = vadd.f32 %v2018, %v2035
  %2037 = vmatmul.bf16.gmra.mxu0 %v914
  %v2038 = vpop.f32.mrf.mxu0
  %v2039 = vadd.f32 %v2021, %v2038
  %v2040 = vpop.f32.mrf.mxu0
  %2041 = vdwg.mxu0
  %2042 = vmatpush.bf16.msra.mxu0 %v1666
  %2043 = vmatpush.bf16.msra.mxu0 %v1665
  %2044 = vmatpush.bf16.msra.mxu0 %v1664
  %2045 = vmatpush.bf16.msra.mxu0 %v1663
  %2046 = vmatpush.bf16.msra.mxu0 %v1662
  %2047 = vmatpush.bf16.msra.mxu0 %v1661
  %2048 = vmatpush.bf16.msra.mxu0 %v1660
  %2049 = vmatpush.bf16.msra.mxu0 %v1659
  %2050 = vmatmul.bf16.gmra.mxu0 %v862
  %v2051 = vpop.f32.mrf.mxu0
  %v2052 = vadd.f32 %v2034, %v2051
  %v2053 = vpop.f32.mrf.mxu0
  %v2054 = vadd.f32 %v2036, %v2053
  %2055 = vmatmul.bf16.gmra.mxu0 %v915
  %v2056 = vpop.f32.mrf.mxu0
  %v2057 = vadd.f32 %v2039, %v2056
  %v2058 = vpop.f32.mrf.mxu0
  %2059 = vdwg.mxu0
  %2060 = vmatpush.bf16.msra.mxu0 %v1674
  %2061 = vmatpush.bf16.msra.mxu0 %v1673
  %2062 = vmatpush.bf16.msra.mxu0 %v1672
  %2063 = vmatpush.bf16.msra.mxu0 %v1671
  %2064 = vmatpush.bf16.msra.mxu0 %v1670
  %2065 = vmatpush.bf16.msra.mxu0 %v1669
  %2066 = vmatpush.bf16.msra.mxu0 %v1668
  %2067 = vmatpush.bf16.msra.mxu0 %v1667
  %2068 = vmatmul.bf16.gmra.mxu0 %v863
  %v2069 = vpop.f32.mrf.mxu0
  %v2070 = vadd.f32 %v2052, %v2069
  %v2071 = vpop.f32.mrf.mxu0
  %v2072 = vadd.f32 %v2054, %v2071
  %2073 = vmatmul.bf16.gmra.mxu0 %v916
  %v2074 = vpop.f32.mrf.mxu0
  %v2075 = vadd.f32 %v2057, %v2074
  %v2076 = vpop.f32.mrf.mxu0
  %2077 = vdwg.mxu0
  %2078 = vmatpush.bf16.msra.mxu0 %v1682
  %2079 = vmatpush.bf16.msra.mxu0 %v1681
  %2080 = vmatpush.bf16.msra.mxu0 %v1680
  %2081 = vmatpush.bf16.msra.mxu0 %v1679
  %2082 = vmatpush.bf16.msra.mxu0 %v1678
  %2083 = vmatpush.bf16.msra.mxu0 %v1677
  %2084 = vmatpush.bf16.msra.mxu0 %v1676
  %2085 = vmatpush.bf16.msra.mxu0 %v1675
  %2086 = vmatmul.bf16.gmra.mxu0 %v877
  %v2087 = vpop.f32.mrf.mxu0
  %v2088 = vadd.f32 %v2070, %v2087
  %v2089 = vpop.f32.mrf.mxu0
  %v2090 = vadd.f32 %v2072, %v2089
  %2091 = vmatmul.bf16.gmra.mxu0 %v924
  %v2092 = vpop.f32.mrf.mxu0
  %v2093 = vadd.f32 %v2075, %v2092
  %v2094 = vpop.f32.mrf.mxu0
  %2095 = vdwg.mxu0
  %2096 = vmatpush.bf16.msra.mxu0 %v1690
  %2097 = vmatpush.bf16.msra.mxu0 %v1689
  %2098 = vmatpush.bf16.msra.mxu0 %v1688
  %2099 = vmatpush.bf16.msra.mxu0 %v1687
  %2100 = vmatpush.bf16.msra.mxu0 %v1686
  %2101 = vmatpush.bf16.msra.mxu0 %v1685
  %2102 = vmatpush.bf16.msra.mxu0 %v1684
  %2103 = vmatpush.bf16.msra.mxu0 %v1683
  %2104 = vmatmul.bf16.gmra.mxu0 %v878
  %v2105 = vpop.f32.mrf.mxu0
  %v2106 = vadd.f32 %v2088, %v2105
  %v2107 = vpop.f32.mrf.mxu0
  %v2108 = vadd.f32 %v2090, %v2107
  %2109 = vmatmul.bf16.gmra.mxu0 %v925
  %v2110 = vpop.f32.mrf.mxu0
  %v2111 = vadd.f32 %v2093, %v2110
  %v2112 = vpop.f32.mrf.mxu0
  %2113 = vdwg.mxu0
  %2114 = vmatpush.bf16.msra.mxu0 %v1698
  %2115 = vmatpush.bf16.msra.mxu0 %v1697
  %2116 = vmatpush.bf16.msra.mxu0 %v1696
  %2117 = vmatpush.bf16.msra.mxu0 %v1695
  %2118 = vmatpush.bf16.msra.mxu0 %v1694
  %2119 = vmatpush.bf16.msra.mxu0 %v1693
  %2120 = vmatpush.bf16.msra.mxu0 %v1692
  %2121 = vmatpush.bf16.msra.mxu0 %v1691
  %2122 = vmatmul.bf16.gmra.mxu0 %v879
  %v2123 = vpop.f32.mrf.mxu0
  %v2124 = vadd.f32 %v2106, %v2123
  %v2125 = vpop.f32.mrf.mxu0
  %v2126 = vadd.f32 %v2108, %v2125
  %2127 = vmatmul.bf16.gmra.mxu0 %v926
  %v2128 = vpop.f32.mrf.mxu0
  %v2129 = vadd.f32 %v2111, %v2128
  %v2130 = vpop.f32.mrf.mxu0
  %2131 = vdwg.mxu0
  %2132 = vmatpush.bf16.msra.mxu0 %v1706
  %2133 = vmatpush.bf16.msra.mxu0 %v1705
  %2134 = vmatpush.bf16.msra.mxu0 %v1704
  %2135 = vmatpush.bf16.msra.mxu0 %v1703
  %2136 = vmatpush.bf16.msra.mxu0 %v1702
  %2137 = vmatpush.bf16.msra.mxu0 %v1701
  %2138 = vmatpush.bf16.msra.mxu0 %v1700
  %2139 = vmatpush.bf16.msra.mxu0 %v1699
  %2140 = vmatmul.bf16.gmra.mxu0 %v880
  %v2141 = vpop.f32.mrf.mxu0
  %v2142 = vadd.f32 %v2124, %v2141
  %v2143 = vpop.f32.mrf.mxu0
  %v2144 = vadd.f32 %v2126, %v2143
  %2145 = vmatmul.bf16.gmra.mxu0 %v927
  %v2146 = vpop.f32.mrf.mxu0
  %v2147 = vadd.f32 %v2129, %v2146
  %v2148 = vpop.f32.mrf.mxu0
  %2149 = vdwg.mxu0
  %2150 = vmatpush.bf16.msra.mxu0 %v1714
  %2151 = vmatpush.bf16.msra.mxu0 %v1713
  %2152 = vmatpush.bf16.msra.mxu0 %v1712
  %2153 = vmatpush.bf16.msra.mxu0 %v1711
  %2154 = vmatpush.bf16.msra.mxu0 %v1710
  %2155 = vmatpush.bf16.msra.mxu0 %v1709
  %2156 = vmatpush.bf16.msra.mxu0 %v1708
  %2157 = vmatpush.bf16.msra.mxu0 %v1707
  %2158 = vmatmul.bf16.gmra.mxu0 %v881
  %v2159 = vpop.f32.mrf.mxu0
  %v2160 = vadd.f32 %v2142, %v2159
  %v2161 = vpop.f32.mrf.mxu0
  %v2162 = vadd.f32 %v2144, %v2161
  %2163 = vmatmul.bf16.gmra.mxu0 %v928
  %v2164 = vpop.f32.mrf.mxu0
  %v2165 = vadd.f32 %v2147, %v2164
  %v2166 = vpop.f32.mrf.mxu0
  %2167 = vdwg.mxu0
  %2168 = vmatpush.bf16.msra.mxu0 %v1722
  %2169 = vmatpush.bf16.msra.mxu0 %v1721
  %2170 = vmatpush.bf16.msra.mxu0 %v1720
  %2171 = vmatpush.bf16.msra.mxu0 %v1719
  %2172 = vmatpush.bf16.msra.mxu0 %v1718
  %2173 = vmatpush.bf16.msra.mxu0 %v1717
  %2174 = vmatpush.bf16.msra.mxu0 %v1716
  %2175 = vmatpush.bf16.msra.mxu0 %v1715
  %2176 = vmatmul.bf16.gmra.mxu0 %v882
  %v2177 = vpop.f32.mrf.mxu0
  %v2178 = vadd.f32 %v2160, %v2177
  %v2179 = vpop.f32.mrf.mxu0
  %v2180 = vadd.f32 %v2162, %v2179
  %2181 = vmatmul.bf16.gmra.mxu0 %v929
  %v2182 = vpop.f32.mrf.mxu0
  %v2183 = vadd.f32 %v2165, %v2182
  %v2184 = vpop.f32.mrf.mxu0
  %2185 = vdwg.mxu0
  %2186 = vmatpush.bf16.msra.mxu0 %v1730
  %2187 = vmatpush.bf16.msra.mxu0 %v1729
  %2188 = vmatpush.bf16.msra.mxu0 %v1728
  %2189 = vmatpush.bf16.msra.mxu0 %v1727
  %2190 = vmatpush.bf16.msra.mxu0 %v1726
  %2191 = vmatpush.bf16.msra.mxu0 %v1725
  %2192 = vmatpush.bf16.msra.mxu0 %v1724
  %2193 = vmatpush.bf16.msra.mxu0 %v1723
  %2194 = vmatmul.bf16.gmra.mxu0 %v883
  %v2195 = vpop.f32.mrf.mxu0
  %v2196 = vadd.f32 %v2178, %v2195
  %v2197 = vpop.f32.mrf.mxu0
  %v2198 = vadd.f32 %v2180, %v2197
  %2199 = vmatmul.bf16.gmra.mxu0 %v930
  %v2200 = vpop.f32.mrf.mxu0
  %v2201 = vadd.f32 %v2183, %v2200
  %v2202 = vpop.f32.mrf.mxu0
  %2203 = vdwg.mxu0
  %2204 = vmatpush.bf16.msra.mxu0 %v1738
  %2205 = vmatpush.bf16.msra.mxu0 %v1737
  %2206 = vmatpush.bf16.msra.mxu0 %v1736
  %2207 = vmatpush.bf16.msra.mxu0 %v1735
  %2208 = vmatpush.bf16.msra.mxu0 %v1734
  %2209 = vmatpush.bf16.msra.mxu0 %v1733
  %2210 = vmatpush.bf16.msra.mxu0 %v1732
  %2211 = vmatpush.bf16.msra.mxu0 %v1731
  %2212 = vmatmul.bf16.gmra.mxu0 %v884
  %v2213 = vpop.f32.mrf.mxu0
  %v2214 = vadd.f32 %v2196, %v2213
  %v2215 = vpop.f32.mrf.mxu0
  %v2216 = vadd.f32 %v2198, %v2215
  %2217 = vmatmul.bf16.gmra.mxu0 %v931
  %v2218 = vpop.f32.mrf.mxu0
  %v2219 = vadd.f32 %v2201, %v2218
  %v2220 = vpop.f32.mrf.mxu0
  %2221 = vdwg.mxu0
  %2222 = vmatpush.bf16.msra.mxu0 %v1746
  %2223 = vmatpush.bf16.msra.mxu0 %v1745
  %2224 = vmatpush.bf16.msra.mxu0 %v1744
  %2225 = vmatpush.bf16.msra.mxu0 %v1743
  %2226 = vmatpush.bf16.msra.mxu0 %v1742
  %2227 = vmatpush.bf16.msra.mxu0 %v1741
  %2228 = vmatpush.bf16.msra.mxu0 %v1740
  %2229 = vmatpush.bf16.msra.mxu0 %v1739
  %2230 = vmatmul.bf16.gmra.mxu0 %v898
  %v2231 = vpop.f32.mrf.mxu0
  %v2232 = vadd.f32 %v2214, %v2231
  %v2233 = vpop.f32.mrf.mxu0
  %v2234 = vadd.f32 %v2216, %v2233
  %2235 = vmatmul.bf16.gmra.mxu0 %v939
  %v2236 = vpop.f32.mrf.mxu0
  %v2237 = vadd.f32 %v2219, %v2236
  %v2238 = vpop.f32.mrf.mxu0
  %2239 = vdwg.mxu0
  %2240 = vmatpush.bf16.msra.mxu0 %v1754
  %2241 = vmatpush.bf16.msra.mxu0 %v1753
  %2242 = vmatpush.bf16.msra.mxu0 %v1752
  %2243 = vmatpush.bf16.msra.mxu0 %v1751
  %2244 = vmatpush.bf16.msra.mxu0 %v1750
  %2245 = vmatpush.bf16.msra.mxu0 %v1749
  %2246 = vmatpush.bf16.msra.mxu0 %v1748
  %2247 = vmatpush.bf16.msra.mxu0 %v1747
  %2248 = vmatmul.bf16.gmra.mxu0 %v899
  %v2249 = vpop.f32.mrf.mxu0
  %v2250 = vadd.f32 %v2232, %v2249
  %v2251 = vpop.f32.mrf.mxu0
  %v2252 = vadd.f32 %v2234, %v2251
  %2253 = vmatmul.bf16.gmra.mxu0 %v940
  %v2254 = vpop.f32.mrf.mxu0
  %v2255 = vadd.f32 %v2237, %v2254
  %v2256 = vpop.f32.mrf.mxu0
  %2257 = vdwg.mxu0
  %2258 = vmatpush.bf16.msra.mxu0 %v1762
  %2259 = vmatpush.bf16.msra.mxu0 %v1761
  %2260 = vmatpush.bf16.msra.mxu0 %v1760
  %2261 = vmatpush.bf16.msra.mxu0 %v1759
  %2262 = vmatpush.bf16.msra.mxu0 %v1758
  %2263 = vmatpush.bf16.msra.mxu0 %v1757
  %2264 = vmatpush.bf16.msra.mxu0 %v1756
  %2265 = vmatpush.bf16.msra.mxu0 %v1755
  %2266 = vmatmul.bf16.gmra.mxu0 %v900
  %v2267 = vpop.f32.mrf.mxu0
  %v2268 = vadd.f32 %v2250, %v2267
  %v2269 = vpop.f32.mrf.mxu0
  %v2270 = vadd.f32 %v2252, %v2269
  %2271 = vmatmul.bf16.gmra.mxu0 %v941
  %v2272 = vpop.f32.mrf.mxu0
  %v2273 = vadd.f32 %v2255, %v2272
  %v2274 = vpop.f32.mrf.mxu0
  %2275 = vdwg.mxu0
  %2276 = vmatpush.bf16.msra.mxu0 0
  %2277 = vmatpush.bf16.msra.mxu0 0
  %2278 = vmatpush.bf16.msra.mxu0 %v1932
  %2279 = vmatpush.bf16.msra.mxu0 %v1767
  %2280 = vmatpush.bf16.msra.mxu0 %v1766
  %2281 = vmatpush.bf16.msra.mxu0 %v1765
  %2282 = vmatpush.bf16.msra.mxu0 %v1764
  %2283 = vmatpush.bf16.msra.mxu0 %v1763
  %2284 = vmatmul.bf16.gmra.mxu0 %v1927
  %v2285 = vpop.f32.mrf.mxu0
  %v2286 = vadd.f32 %v2268, %v2285
  %v2287 = vpop.f32.mrf.mxu0
  %v2288 = vadd.f32 %v2270, %v2287
  %2289 = vmatmul.bf16.gmra.mxu0 %v1929
  %v2290 = vpop.f32.mrf.mxu0
  %v2291 = vadd.f32 %v2273, %v2290
  %v2292 = vpop.f32.mrf.mxu0
  %2293 = vdwg.mxu0
  %v2294 = vld [vmem:[%s2] sm:$0x1]
  %v2296 = vperm.slane %v2294, 0
  %v2298 = vmul.f32 %v2296, %v2286
  %v2299 = vmul.f32 %v2296, %v2288
  %v2300 = vmul.f32 %v2296, %v2291
  %v2301 = vld [vmem:[%s3] sm:$0x1]
  %v2303 = vperm.slane %v2301, 0
  %v2305 = vadd.f32 %v2298, %v2303
  %v2306 = vadd.f32 %v2299, %v2303
  %v2307 = vadd.f32 %v2300, %v2303
  %vm2308 = vcmp.gt.f32.partialorder %v2305, 0.0
  %vm2309 = vcmp.gt.f32.partialorder %v2306, 0.0
  %vm2310 = vcmp.gt.f32.partialorder %v2307, 0.0
  %v2311 = vmin.f32 %v2305, 0.0
  %v2312 = vmin.f32 %v2306, 0.0
  %v2313 = vmin.f32 %v2307, 0.0
  %v2314 = vmul.f32 %v2311, 1.442695
  %v2315 = vpow.pop %v2314
  %v2316 = vmul.f32 %v2312, 1.442695
  %v2317 = vpow.pop %v2316
  %v2318 = vmul.f32 %v2313, 1.442695
  %v2319 = vpow.pop %v2318
  %v2320 = vsub.f32 %v2315, 1.0
  %v2321 = vsub.f32 %v2317, 1.0
  %v2322 = vsub.f32 %v2319, 1.0
  %v2323 = vsel %vm2308, %v2305, %v2320
  %v2324 = vsel %vm2309, %v2306, %v2321
  %v2325 = vsel %vm2310, %v2307, %v2322
  %v2326 = vpack.c.bf16 %v2324, %v2323
  %v2327 = vpack.c.bf16 %v2325, %v2325
  %v2328 = vld [vmem:[%s4] sm:$0xf]
  %v2329 = vld [vmem:[%s4 + $0x4] sm:$0xf]
  %v2330 = vld [vmem:[%s4 + $0x8] sm:$0xf]
  %v2331 = vld [vmem:[%s4 + $0xc] sm:$0xf]
  %v2332 = vld [vmem:[%s4 + $0x10] sm:$0xf]
  %v2333 = vld [vmem:[%s5] sm:$0x1]
  %v2335 = vperm.slane %v2333, 0
  %v2342 = vunpack.c.l.b16 %v2328
  %v2343 = vunpack.c.l.b16 %v2329
  %v2344 = vunpack.c.l.b16 %v2330
  %v2345 = vunpack.c.l.b16 %v2331
  %v2346 = vunpack.c.l.b16 %v2332
  %v2347 = vpack.c.b16 %v2343, %v2342
  %v2348 = vpack.c.b16 %v2345, %v2344
  %v2349 = vpack.c.b16 %v2346, %v2346
  %vm2352 = vcmask 326656
  %v2354 = vsel %vm2352, %v2326, 0
  %v2357 = vsel %vm2352, %v2327, 0
  %v2360 = vsel %vm192, %v2349, 0
  %2362 = vmatpush.bf16.msra.mxu0 0
  %2363 = vmatpush.bf16.msra.mxu0 0
  %2364 = vmatpush.bf16.msra.mxu0 0
  %2365 = vmatpush.bf16.msra.mxu0 0
  %2366 = vmatpush.bf16.msra.mxu0 0
  %2367 = vmatpush.bf16.msra.mxu0 %v2360
  %2368 = vmatpush.bf16.msra.mxu0 %v2348
  %2369 = vmatpush.bf16.msra.mxu0 %v2347
  %2370 = vmatmul.bf16.gmra.mxu0 %v2354
  %v2371 = vpop.f32.mrf.mxu0
  %v2372 = vadd.f32 %v2335, %v2371
  %v2373 = vpop.f32.mrf.mxu0
  %v2374 = vadd.f32 %v2335, %v2373
  %2375 = vmatmul.bf16.gmra.mxu0 %v2357
  %v2376 = vpop.f32.mrf.mxu0
  %v2377 = vadd.f32 %v2335, %v2376
  %v2378 = vpop.f32.mrf.mxu0
  %2379 = vdwg.mxu0
  %v2383 = vrot.slane %v2372, 2
  %v2384 = vrot.slane %v2372, 4
  %v2385 = vrot.slane %v2372, 6
  %v2386 = vrot.slane %v2374, 2
  %v2387 = vrot.slane %v2374, 4
  %v2388 = vrot.slane %v2374, 6
  %v2389 = vrot.slane %v2377, 2
  %v2390 = vrot.slane %v2377, 4
  %v2391 = vrot.slane %v2377, 6
  %2392 = vst [vmem:[#allocation1] ss:$4 sm:$0xff] %v2372
  %s2393 = scalar_lea.vmem [#allocation1], 1
  %2394 = vst [vmem:[%s2393] ss:$4 sm:$0xff] %v2383
  %s2395 = scalar_lea.vmem [#allocation1], 2
  %2396 = vst [vmem:[%s2395] ss:$4 sm:$0xff] %v2384
  %v2397 = vld.sshfl [vmem:[#allocation1] sm:$0xff pattern:$0x73625140]
  %s2398 = scalar_lea.vmem [#allocation1], 32
  %2399 = vst [vmem:[%s2398] ss:$4 sm:$0xff] %v2385
  %s2400 = scalar_lea.vmem [#allocation1], 33
  %2401 = vst [vmem:[%s2400] ss:$4 sm:$0xff] %v2374
  %s2402 = scalar_lea.vmem [#allocation1], 34
  %2403 = vst [vmem:[%s2402] ss:$4 sm:$0xff] %v2386
  %v2404 = vld.sshfl [vmem:[#allocation1 + $0x20] sm:$0xff pattern:$0x73625140]
  %2405 = vst [vmem:[#allocation1] ss:$4 sm:$0xff] %v2387
  %2406 = vst [vmem:[%s2393] ss:$4 sm:$0xff] %v2388
  %2407 = vst [vmem:[%s2395] ss:$4 sm:$0xff] %v2377
  %v2408 = vld.sshfl [vmem:[#allocation1] sm:$0xff pattern:$0x73625140]
  %2409 = vst [vmem:[%s2398] ss:$4 sm:$0xff] %v2389
  %2410 = vst [vmem:[%s2400] ss:$4 sm:$0xff] %v2390
  %2411 = vst [vmem:[%s2402] ss:$4 sm:$0xff] %v2391
  %v2412 = vld.sshfl [vmem:[#allocation1 + $0x20] sm:$0xff pattern:$0x73625140]
  %vm2417 = vcmask 324608
  %2418 = vst.msk [vmem:[%s6] sm:$0x3f] %vm2417, %v2397
  %2419 = vst.msk [vmem:[%s6 + $0x8] sm:$0x3f] %vm2417, %v2404
  %2420 = vst.msk [vmem:[%s6 + $0x10] sm:$0x3f] %vm2417, %v2408
  %2421 = vst.msk [vmem:[%s6 + $0x18] sm:$0x3f] %vm2417, %v2412
  // Predicated region
  $region26: #{patch_embedding_forward.3} parent=0 // pred_check
    _
  $region27: #{patch_embedding_forward.3} parent=0 // pred_check_branch
    %2423 = sbr.rel (0) target = $region29
  $region28: #{patch_embedding_forward.3} parent=0 // pred_region
    _
  $region29: #{patch_embedding_forward.3} parent=0 // pred_fallthru
    _
  // Predicated region
  $region30: #{patch_embedding_forward.3} parent=0 // pred_check
    _
  $region31: #{patch_embedding_forward.3} parent=0 // pred_check_branch
    %2425 = sbr.rel (0) target = $region33
  $region32: #{patch_embedding_forward.3} parent=0 // pred_region
    _
  $region33: #{patch_embedding_forward.3} parent=0 // pred_fallthru
    _

</llo_original>
